<compile_context>
chip_gen: v7x
topology: tpu7x:2x2x1
jax: 0.10.0
libtpu: 0.0.40
codegen_flags: <defaults>
</compile_context>

<pallas_src>
import functools

import jax
import jax.numpy as jnp
from jax.experimental import pallas as pl
from jax.experimental.pallas import tpu as pltpu


# ---------------------------------------------------------------------------
# Tiling constants
# ---------------------------------------------------------------------------
_EDGE_TILE = 512          # edge rows per grid step (v5e/v6e: up to 1024; v7x: 256-512)
_NODE_TILE = 256          # node rows per grid step / seg-mean accumulator rows
_VMEM_LIMIT = 48 * 1024 * 1024   # safe on v7x (64 MiB phys); raise on v5e/v6e


def _round_up(n, m):
    return ((n + m - 1) // m) * m


# ---------------------------------------------------------------------------
# Pallas kernels
# ---------------------------------------------------------------------------
def _mlp2_multi_kernel(*refs, n_inputs):
    """out = relu(sum_i x_i @ W1_i + b1) @ W2 + b2 for one row-tile.

    The concatenation of the logical MLP input is realised by the row-split
    W1 blocks, so no concat ever hits HBM.  Inputs and weights are bf16
    (MXU fast path), accumulation and element-wise work are f32.
    Dropout p=0.0 == identity.
    """
    x_refs = refs[:n_inputs]
    w1_refs = refs[n_inputs:2 * n_inputs]
    b1_ref, w2_ref, b2_ref, o_ref = refs[2 * n_inputs:]

    h = jnp.dot(x_refs[0][...], w1_refs[0][...], preferred_element_type=jnp.float32)
    for x_ref, w_ref in zip(x_refs[1:], w1_refs[1:]):
        h = h + jnp.dot(x_ref[...], w_ref[...], preferred_element_type=jnp.float32)
    h = jnp.maximum(h + b1_ref[...], 0.0)                        # bias + ReLU (f32)
    o = jnp.dot(h.astype(jnp.bfloat16), w2_ref[...],
                preferred_element_type=jnp.float32) + b2_ref[...]
    o_ref[...] = o.astype(o_ref.dtype)


def _segment_mean_kernel(col_ref, msg_ref, o_ref, acc_ref, *, deg_lane):
    """Tiled scatter_mean(msg, col) with fused in-degree.

    Grid = (node tiles "parallel", edge tiles "arbitrary").  The (tN, Fp) f32
    scratch accumulator is resident across the edge reduction.  The one-hot is
    bf16 (exact 0/1), the messages are bf16, accumulation is f32.  Messages
    carry a constant 1.0 in column `deg_lane` (a zero-padded lane), so the same
    matmul accumulates per-node in-degree; the mean finalize multiplies by
    1/max(deg, 1) under pl.when(last).
    """
    e_step = pl.program_id(1)

    @pl.when(e_step == 0)
    def _():
        acc_ref[...] = jnp.zeros_like(acc_ref)

    tn = acc_ref.shape[0]
    base = pl.program_id(0) * tn
    node_ids = base + jax.lax.broadcasted_iota(jnp.int32, (tn, 1), 0)   # (tN, 1)
    onehot = (node_ids == col_ref[...]).astype(jnp.bfloat16)            # (tN, tE)
    acc_ref[...] += jnp.dot(onehot, msg_ref[...],
                            preferred_element_type=jnp.float32)

    @pl.when(e_step == pl.num_programs(1) - 1)
    def _():
        acc = acc_ref[...]
        deg = acc[:, deg_lane:deg_lane + 1]                              # (tN, 1)
        inv = pl.reciprocal(jnp.maximum(deg, 1.0), approx=False)
        o_ref[...] = (acc * inv).astype(o_ref.dtype)


# ---------------------------------------------------------------------------
# Wrappers
# ---------------------------------------------------------------------------
def mlp2_multi(inputs, p, *, row_tile, out_dtype):
    """Fused two-layer MLP over multiple padded bf16 operands (implicit concat)."""
    rows = inputs[0].shape[0]
    assert rows % row_tile == 0, (rows, row_tile)
    for x in inputs:
        assert x.shape[0] == rows
    n_in = len(inputs)
    hp = p["b1"].shape[1]
    fp = p["b2"].shape[1]

    in_specs = []
    for x in inputs:
        in_specs.append(pl.BlockSpec((row_tile, x.shape[1]), lambda r: (r, 0)))
    for w in p["w1s"]:                                  # resident bf16 W1 blocks
        in_specs.append(pl.BlockSpec(w.shape, lambda r: (0, 0)))
    in_specs += [
        pl.BlockSpec((1, hp), lambda r: (0, 0)),        # b1 resident
        pl.BlockSpec((hp, fp), lambda r: (0, 0)),       # W2 resident
        pl.BlockSpec((1, fp), lambda r: (0, 0)),        # b2 resident
    ]

    kernel = functools.partial(_mlp2_multi_kernel, n_inputs=n_in)
    return pl.pallas_call(
        kernel,
        out_shape=jax.ShapeDtypeStruct((rows, fp), out_dtype),
        grid=(rows // row_tile,),
        in_specs=in_specs,
        out_specs=pl.BlockSpec((row_tile, fp), lambda r: (r, 0)),
        compiler_params=pltpu.CompilerParams(
            dimension_semantics=("parallel",),
            vmem_limit_bytes=_VMEM_LIMIT),
    )(*inputs, *p["w1s"], p["b1"], p["w2"], p["b2"])


def segment_mean(msg_p, col_s, n_pad, node_tile, edge_tile, *, deg_lane):
    """scatter_mean over destination indices; degree fused via the `deg_lane` column."""
    ep, fp = msg_p.shape
    assert ep % edge_tile == 0 and n_pad % node_tile == 0

    kernel = functools.partial(_segment_mean_kernel, deg_lane=deg_lane)
    return pl.pallas_call(
        kernel,
        out_shape=jax.ShapeDtypeStruct((n_pad, fp), jnp.bfloat16),
        grid=(n_pad // node_tile, ep // edge_tile),
        in_specs=[
            pl.BlockSpec((1, edge_tile), lambda n, e: (0, e)),       # col tile (sentinel-padded)
            # TODO(synk): if profiling shows exposed DMA here, add
            # pipeline_mode=pl.Buffered(3) on this spec and sweep.
            pl.BlockSpec((edge_tile, fp), lambda n, e: (e, 0)),      # bf16 message tile
        ],
        out_specs=pl.BlockSpec((node_tile, fp), lambda n, e: (n, 0)),
        scratch_shapes=[pltpu.VMEM((node_tile, fp), jnp.float32)],   # f32 accumulator
        compiler_params=pltpu.CompilerParams(
            dimension_semantics=("parallel", "arbitrary"),
            vmem_limit_bytes=_VMEM_LIMIT),
    )(col_s, msg_p)


# ---------------------------------------------------------------------------
# Parameter construction (deterministic, synthetic).  Weights are pre-padded to
# lane-dense 128-multiples, split row-wise per input group, and stored bf16;
# biases stay f32.  (For production hidden_size > 128 on v6e/v7x, padding the
# contraction dims to 256-multiples better fills the 256x256 MXU.)
# ---------------------------------------------------------------------------
def _linear_params(key, f_in, f_out):
    kw, kb = jax.random.split(key)
    scale = 1.0 / jnp.sqrt(jnp.float32(f_in))
    w = jax.random.uniform(kw, (f_in, f_out), jnp.float32, -scale, scale)
    b = jax.random.uniform(kb, (f_out,), jnp.float32, -scale, scale)
    return w, b


def _mlp2_multi_params(key, groups, hidden, f_out, *, ones_lane=False):
    """groups: list of (logical_dim, padded_dim) matching the operand order."""
    f_in = sum(d for d, _ in groups)
    k1, k2 = jax.random.split(key)
    w1, b1 = _linear_params(k1, f_in, hidden)
    w2, b2 = _linear_params(k2, hidden, f_out)

    hp = _round_up(hidden, 128)
    fp = _round_up(f_out + (1 if ones_lane else 0), 128)

    w1s, off = [], 0
    for d, dp in groups:
        blk = jnp.zeros((dp, hp), jnp.float32).at[:d, :hidden].set(w1[off:off + d])
        w1s.append(blk.astype(jnp.bfloat16))
        off += d

    b1p = jnp.zeros((1, hp), jnp.float32).at[0, :hidden].set(b1)
    w2p = jnp.zeros((hp, fp), jnp.float32).at[:hidden, :f_out].set(w2).astype(jnp.bfloat16)
    b2p = jnp.zeros((1, fp), jnp.float32).at[0, :f_out].set(b2)
    if ones_lane:
        # Constant 1.0 in the first zero-padded output lane: the downstream
        # segment_mean one-hot matmul then accumulates per-node in-degree for
        # free (padded edges are masked by the col sentinel).
        b2p = b2p.at[0, f_out].set(1.0)

    return {"w1s": tuple(w1s), "b1": b1p, "w2": w2p, "b2": b2p, "f_out": f_out}


def init_mpgnn_params(key, *, hidden_size, node_features, edge_features,
                      latent_edge_features, out_features, skip=True):
    assert skip, "only skip=True (the module default) is implemented"
    NF, EF, H = node_features, edge_features, hidden_size
    LEF, OUT = latent_edge_features, out_features
    NFp = _round_up(NF, 128)
    EFp = _round_up(EF, 128)
    Hp = _round_up(H, 128)
    MSGp = _round_up(LEF + 1, 128)     # edge messages carry the degree lane

    k1, k2, k3, k4 = jax.random.split(key, 4)
    return {
        # cat([x[row], x[col], edge_attr])
        "gn1_edge": _mlp2_multi_params(
            k1, [(NF, NFp), (NF, NFp), (EF, EFp)], H, LEF, ones_lane=True),
        # cat([x, agg1])
        "gn1_node": _mlp2_multi_params(
            k2, [(NF, NFp), (LEF, MSGp)], H, H),
        # cat([x_1[row], x_1[col], edge_attr_1]) with x_1 = cat([x, x1raw]),
        # edge_attr_1 = cat([edge_attr, msg1])
        "gn2_edge": _mlp2_multi_params(
            k3, [(NF, NFp), (H, Hp), (NF, NFp), (H, Hp), (EF, EFp), (LEF, MSGp)],
            H, LEF, ones_lane=True),
        # cat([x_1, agg2])
        "gn2_node": _mlp2_multi_params(
            k4, [(NF, NFp), (H, Hp), (LEF, MSGp)], H, OUT),
        "dims": {"NF": NF, "EF": EF, "H": H, "LEF": LEF, "OUT": OUT,
                 "NFp": NFp, "EFp": EFp, "Hp": Hp, "MSGp": MSGp},
    }


# ---------------------------------------------------------------------------
# MPGNN forward (aggregate=False, skip=True, dropout=0.0)
# ---------------------------------------------------------------------------
def mpgnn_forward(params, x, edge_index, edge_attr):
    dims = params["dims"]
    NF, EF, LEF, OUT = dims["NF"], dims["EF"], dims["LEF"], dims["OUT"]
    NFp, EFp = dims["NFp"], dims["EFp"]

    n = x.shape[0]
    e = edge_attr.shape[0]
    tn = _NODE_TILE if n >= _NODE_TILE else _round_up(n, 8)
    te = _EDGE_TILE if e >= _EDGE_TILE else _round_up(e, 128)
    np_ = _round_up(n, tn)
    ep = _round_up(e, te)

    # Pad + cast ONCE; everything downstream stays lane-padded bf16.
    x_p = jnp.zeros((np_, NFp), jnp.bfloat16).at[:n, :NF].set(x.astype(jnp.bfloat16))
    ea_p = jnp.zeros((ep, EFp), jnp.bfloat16).at[:e, :EF].set(edge_attr.astype(jnp.bfloat16))

    row = edge_index[0].astype(jnp.int32)
    col = edge_index[1].astype(jnp.int32)
    row_g = jnp.zeros((ep,), jnp.int32).at[:e].set(row)              # gather pad -> node 0
    col_g = jnp.zeros((ep,), jnp.int32).at[:e].set(col)
    col_s = jnp.full((1, ep), np_, jnp.int32).at[0, :e].set(col)     # scatter pad -> sentinel

    # TODO(synk): fuse these gathers into the edge-MLP kernel via
    # PrefetchScalarGridSpec + per-tile in-kernel gather to drop the remaining
    # (E, 128)-sized gathered copies from HBM.
    xr = x_p[row_g]                                                  # (Ep, NFp) bf16
    xc = x_p[col_g]

    # ---- GN1 ----
    msg1 = mlp2_multi([xr, xc, ea_p], params["gn1_edge"],
                      row_tile=te, out_dtype=jnp.bfloat16)           # (Ep, MSGp)
    agg1 = segment_mean(msg1, col_s, np_, tn, te, deg_lane=LEF)      # (Np, MSGp)
    x1 = mlp2_multi([x_p, agg1], params["gn1_node"],
                    row_tile=tn, out_dtype=jnp.bfloat16)             # (Np, Hp)

    # ---- GN2 (skip connections realised by the split-W1 operands, no concats) ----
    x1r = x1[row_g]                                                  # (Ep, Hp)
    x1c = x1[col_g]
    msg2 = mlp2_multi([xr, x1r, xc, x1c, ea_p, msg1], params["gn2_edge"],
                      row_tile=te, out_dtype=jnp.bfloat16)           # (Ep, MSGp)
    agg2 = segment_mean(msg2, col_s, np_, tn, te, deg_lane=LEF)      # (Np, MSGp)
    out_p = mlp2_multi([x_p, x1, agg2], params["gn2_node"],
                       row_tile=tn, out_dtype=jnp.float32)           # (Np, OUTp)

    # Only slice back to logical widths at the very end.
    return out_p[:n, :OUT]


# ---------------------------------------------------------------------------
if __name__ == "__main__":
    key = jax.random.PRNGKey(0)
    k_x, k_e, k_src, k_dst, k_p = jax.random.split(key, 5)

    # small synthetic graph
    N_NODES, N_EDGES = 16, 48
    NODE_F, EDGE_F, HIDDEN, LATENT_EDGE_F, OUT_F = 5, 3, 32, 8, 4

    x = jax.random.normal(k_x, (N_NODES, NODE_F), jnp.float32)
    edge_attr = jax.random.normal(k_e, (N_EDGES, EDGE_F), jnp.float32)
    edge_index = jnp.stack([
        jax.random.randint(k_src, (N_EDGES,), 0, N_NODES),
        jax.random.randint(k_dst, (N_EDGES,), 0, N_NODES),
    ]).astype(jnp.int32)

    params = init_mpgnn_params(
        k_p,
        hidden_size=HIDDEN,
        node_features=NODE_F,
        edge_features=EDGE_F,
        latent_edge_features=LATENT_EDGE_F,
        out_features=OUT_F,
        skip=True,
    )

    fwd = jax.jit(functools.partial(mpgnn_forward, params))
    out = fwd(x, edge_index, edge_attr)
    jax.block_until_ready(out)

    assert out.shape == (N_NODES, OUT_F), out.shape
    assert out.dtype == jnp.float32
    assert bool(jnp.all(jnp.isfinite(out)))
    print("KERNEL_OK")
</pallas_src>

<mosaic_0001>
module attributes {stable_mosaic.version = 11 : i64} {
  func.func @_segment_mean_kernel(%arg0: i32, %arg1: i32, %arg2: memref<1x128xi32, #tpu.memory_space<vmem>>, %arg3: memref<128x128xbf16, #tpu.memory_space<vmem>>, %arg4: memref<16x128xbf16, #tpu.memory_space<vmem>>, %arg5: memref<16x128xf32, #tpu.memory_space<vmem>>) attributes {dimension_semantics = [#tpu.dimension_semantics<parallel>, #tpu.dimension_semantics<arbitrary>], iteration_bounds = array<i64: 1, 1>, scalar_prefetch = 0 : i64, scratch_operands = 1 : i64, tpu.core_type = #tpu.core_type<tc>, window_params = [{transform_indices = @transform_0, window_bounds = array<i64: 1, 128>}, {transform_indices = @transform_1, window_bounds = array<i64: 128, 128>}, {transform_indices = @transform_2, window_bounds = array<i64: 16, 128>}]} {
    %c0_i32 = arith.constant 0 : i32
    %0 = arith.cmpi eq, %arg1, %c0_i32 : i32
    %1 = arith.extui %0 : i1 to i32
    %c0_i32_0 = arith.constant 0 : i32
    %2 = arith.cmpi ne, %1, %c0_i32_0 : i32
    scf.if %2 {
      %cst_10 = arith.constant 0.000000e+00 : f32
      %22 = vector.broadcast %cst_10 : f32 to vector<16x128xf32>
      %c0_11 = arith.constant 0 : index
      %c0_12 = arith.constant 0 : index
      %23 = vector.load %arg5[%c0_11, %c0_12] : memref<16x128xf32, #tpu.memory_space<vmem>>, vector<16x128xf32>
      tpu.vector_store %arg5[%c0_11, %c0_12], %22 {strides = array<i32>} : memref<16x128xf32, #tpu.memory_space<vmem>>, vector<16x128xf32>,
    } else {
    }
    %c16_i32 = arith.constant 16 : i32
    %3 = arith.muli %arg0, %c16_i32 : i32
    %4 = tpu.iota {dimensions = array<i32: 0>} : vector<16x1xi32>
    %5 = vector.broadcast %3 : i32 to vector<16x1xi32>
    %6 = arith.addi %5, %4 : vector<16x1xi32>
    %c0 = arith.constant 0 : index
    %c0_1 = arith.constant 0 : index
    %7 = vector.load %arg2[%c0, %c0_1] : memref<1x128xi32, #tpu.memory_space<vmem>>, vector<1x128xi32>
    %8 = vector.broadcast %6 : vector<16x1xi32> to vector<16x128xi32>
    %9 = vector.broadcast %7 : vector<1x128xi32> to vector<16x128xi32>
    %10 = arith.cmpi eq, %8, %9 : vector<16x128xi32>
    %11 = arith.extui %10 : vector<16x128xi1> to vector<16x128xi32>
    %12 = arith.sitofp %11 : vector<16x128xi32> to vector<16x128xf32>
    %13 = arith.truncf %12 : vector<16x128xf32> to vector<16x128xbf16>
    %c0_2 = arith.constant 0 : index
    %c0_3 = arith.constant 0 : index
    %14 = vector.load %arg5[%c0_2, %c0_3] : memref<16x128xf32, #tpu.memory_space<vmem>>, vector<16x128xf32>
    %c0_4 = arith.constant 0 : index
    %c0_5 = arith.constant 0 : index
    %15 = vector.load %arg3[%c0_4, %c0_5] : memref<128x128xbf16, #tpu.memory_space<vmem>>, vector<128x128xbf16>
    %cst = arith.constant dense<0.000000e+00> : vector<16x128xf32>
    %16 = tpu.matmul %13, %15, %cst {dimension_numbers = #tpu.dot_dimension_numbers<[1], [0], [0], [1], [0, 0, 1, 1], [], []>} : vector<16x128xbf16>, vector<128x128xbf16>, vector<16x128xf32> -> vector<16x128xf32>
    %17 = arith.addf %14, %16 : vector<16x128xf32>
    %c0_6 = arith.constant 0 : index
    %c0_7 = arith.constant 0 : index
    %18 = vector.load %arg5[%c0_6, %c0_7] : memref<16x128xf32, #tpu.memory_space<vmem>>, vector<16x128xf32>
    tpu.vector_store %arg5[%c0_6, %c0_7], %17 {strides = array<i32>} : memref<16x128xf32, #tpu.memory_space<vmem>>, vector<16x128xf32>,
    %c0_i32_8 = arith.constant 0 : i32
    %19 = arith.cmpi eq, %arg1, %c0_i32_8 : i32
    %20 = arith.extui %19 : i1 to i32
    %c0_i32_9 = arith.constant 0 : i32
    %21 = arith.cmpi ne, %20, %c0_i32_9 : i32
    scf.if %21 {
      %c0_10 = arith.constant 0 : index
      %c0_11 = arith.constant 0 : index
      %22 = vector.load %arg5[%c0_10, %c0_11] : memref<16x128xf32, #tpu.memory_space<vmem>>, vector<16x128xf32>
      %23 = vector.extract_strided_slice %22 {offsets = [0, 8], sizes = [16, 1], strides = [1, 1]} : vector<16x128xf32> to vector<16x1xf32>
      %cst_12 = arith.constant 1.000000e+00 : f32
      %24 = vector.broadcast %cst_12 : f32 to vector<16x1xf32>
      %25 = arith.maximumf %23, %24 : vector<16x1xf32>
      %26 = tpu.reciprocal %25 : vector<16x1xf32> -> vector<16x1xf32>
      %27 = vector.broadcast %26 : vector<16x1xf32> to vector<16x128xf32>
      %28 = arith.mulf %22, %27 : vector<16x128xf32>
      %29 = arith.truncf %28 : vector<16x128xf32> to vector<16x128xbf16>
      %c0_13 = arith.constant 0 : index
      %c0_14 = arith.constant 0 : index
      %30 = vector.load %arg4[%c0_13, %c0_14] : memref<16x128xbf16, #tpu.memory_space<vmem>>, vector<16x128xbf16>
      tpu.vector_store %arg4[%c0_13, %c0_14], %29 {strides = array<i32>} : memref<16x128xbf16, #tpu.memory_space<vmem>>, vector<16x128xbf16>,
    } else {
    }
    return
  }
  func.func @transform_0(%arg0: i32, %arg1: i32) -> (i32, i32) {
    %c0_i32 = arith.constant 0 : i32
    %c0_i32_0 = arith.constant 0 : i32
    return %c0_i32, %arg1 : i32, i32
  }
  func.func @transform_1(%arg0: i32, %arg1: i32) -> (i32, i32) {
    %c0_i32 = arith.constant 0 : i32
    %c0_i32_0 = arith.constant 0 : i32
    return %arg1, %c0_i32 : i32, i32
  }
  func.func @transform_2(%arg0: i32, %arg1: i32) -> (i32, i32) {
    %c0_i32 = arith.constant 0 : i32
    %c0_i32_0 = arith.constant 0 : i32
    return %arg0, %c0_i32 : i32, i32
  }
}

module attributes {stable_mosaic.version = 11 : i64} {
  func.func @_mlp2_multi_kernel(%arg0: i32, %arg1: memref<128x128xbf16, #tpu.memory_space<vmem>>, %arg2: memref<128x128xbf16, #tpu.memory_space<vmem>>, %arg3: memref<128x128xbf16, #tpu.memory_space<vmem>>, %arg4: memref<128x128xbf16, #tpu.memory_space<vmem>>, %arg5: memref<128x128xbf16, #tpu.memory_space<vmem>>, %arg6: memref<128x128xbf16, #tpu.memory_space<vmem>>, %arg7: memref<1x128xf32, #tpu.memory_space<vmem>>, %arg8: memref<128x128xbf16, #tpu.memory_space<vmem>>, %arg9: memref<1x128xf32, #tpu.memory_space<vmem>>, %arg10: memref<128x128xbf16, #tpu.memory_space<vmem>>) attributes {dimension_semantics = [#tpu.dimension_semantics<parallel>], iteration_bounds = array<i64: 1>, scalar_prefetch = 0 : i64, scratch_operands = 0 : i64, tpu.core_type = #tpu.core_type<tc>, window_params = [{transform_indices = @transform_0, window_bounds = array<i64: 128, 128>}, {transform_indices = @transform_1, window_bounds = array<i64: 128, 128>}, {transform_indices = @transform_2, window_bounds = array<i64: 128, 128>}, {pipeline_mode = #tpu.pipeline_mode<synchronous>, transform_indices = @transform_3, window_bounds = array<i64: 128, 128>}, {pipeline_mode = #tpu.pipeline_mode<synchronous>, transform_indices = @transform_4, window_bounds = array<i64: 128, 128>}, {pipeline_mode = #tpu.pipeline_mode<synchronous>, transform_indices = @transform_5, window_bounds = array<i64: 128, 128>}, {pipeline_mode = #tpu.pipeline_mode<synchronous>, transform_indices = @transform_6, window_bounds = array<i64: 1, 128>}, {pipeline_mode = #tpu.pipeline_mode<synchronous>, transform_indices = @transform_7, window_bounds = array<i64: 128, 128>}, {pipeline_mode = #tpu.pipeline_mode<synchronous>, transform_indices = @transform_8, window_bounds = array<i64: 1, 128>}, {transform_indices = @transform_9, window_bounds = array<i64: 128, 128>}]} {
    %c0 = arith.constant 0 : index
    %c0_0 = arith.constant 0 : index
    %0 = vector.load %arg1[%c0, %c0_0] : memref<128x128xbf16, #tpu.memory_space<vmem>>, vector<128x128xbf16>
    %c0_1 = arith.constant 0 : index
    %c0_2 = arith.constant 0 : index
    %1 = vector.load %arg4[%c0_1, %c0_2] : memref<128x128xbf16, #tpu.memory_space<vmem>>, vector<128x128xbf16>
    %cst = arith.constant dense<0.000000e+00> : vector<128x128xf32>
    %2 = tpu.matmul %0, %1, %cst {dimension_numbers = #tpu.dot_dimension_numbers<[1], [0], [0], [1], [0, 0, 1, 1], [], []>} : vector<128x128xbf16>, vector<128x128xbf16>, vector<128x128xf32> -> vector<128x128xf32>
    %c0_3 = arith.constant 0 : index
    %c0_4 = arith.constant 0 : index
    %3 = vector.load %arg2[%c0_3, %c0_4] : memref<128x128xbf16, #tpu.memory_space<vmem>>, vector<128x128xbf16>
    %c0_5 = arith.constant 0 : index
    %c0_6 = arith.constant 0 : index
    %4 = vector.load %arg5[%c0_5, %c0_6] : memref<128x128xbf16, #tpu.memory_space<vmem>>, vector<128x128xbf16>
    %cst_7 = arith.constant dense<0.000000e+00> : vector<128x128xf32>
    %5 = tpu.matmul %3, %4, %cst_7 {dimension_numbers = #tpu.dot_dimension_numbers<[1], [0], [0], [1], [0, 0, 1, 1], [], []>} : vector<128x128xbf16>, vector<128x128xbf16>, vector<128x128xf32> -> vector<128x128xf32>
    %6 = arith.addf %2, %5 : vector<128x128xf32>
    %c0_8 = arith.constant 0 : index
    %c0_9 = arith.constant 0 : index
    %7 = vector.load %arg3[%c0_8, %c0_9] : memref<128x128xbf16, #tpu.memory_space<vmem>>, vector<128x128xbf16>
    %c0_10 = arith.constant 0 : index
    %c0_11 = arith.constant 0 : index
    %8 = vector.load %arg6[%c0_10, %c0_11] : memref<128x128xbf16, #tpu.memory_space<vmem>>, vector<128x128xbf16>
    %cst_12 = arith.constant dense<0.000000e+00> : vector<128x128xf32>
    %9 = tpu.matmul %7, %8, %cst_12 {dimension_numbers = #tpu.dot_dimension_numbers<[1], [0], [0], [1], [0, 0, 1, 1], [], []>} : vector<128x128xbf16>, vector<128x128xbf16>, vector<128x128xf32> -> vector<128x128xf32>
    %10 = arith.addf %6, %9 : vector<128x128xf32>
    %c0_13 = arith.constant 0 : index
    %c0_14 = arith.constant 0 : index
    %11 = vector.load %arg7[%c0_13, %c0_14] : memref<1x128xf32, #tpu.memory_space<vmem>>, vector<1x128xf32>
    %12 = vector.broadcast %11 : vector<1x128xf32> to vector<128x128xf32>
    %13 = arith.addf %10, %12 : vector<128x128xf32>
    %cst_15 = arith.constant 0.000000e+00 : f32
    %14 = vector.broadcast %cst_15 : f32 to vector<128x128xf32>
    %15 = arith.maximumf %13, %14 : vector<128x128xf32>
    %16 = arith.truncf %15 : vector<128x128xf32> to vector<128x128xbf16>
    %c0_16 = arith.constant 0 : index
    %c0_17 = arith.constant 0 : index
    %17 = vector.load %arg8[%c0_16, %c0_17] : memref<128x128xbf16, #tpu.memory_space<vmem>>, vector<128x128xbf16>
    %cst_18 = arith.constant dense<0.000000e+00> : vector<128x128xf32>
    %18 = tpu.matmul %16, %17, %cst_18 {dimension_numbers = #tpu.dot_dimension_numbers<[1], [0], [0], [1], [0, 0, 1, 1], [], []>} : vector<128x128xbf16>, vector<128x128xbf16>, vector<128x128xf32> -> vector<128x128xf32>
    %c0_19 = arith.constant 0 : index
    %c0_20 = arith.constant 0 : index
    %19 = vector.load %arg9[%c0_19, %c0_20] : memref<1x128xf32, #tpu.memory_space<vmem>>, vector<1x128xf32>
    %20 = vector.broadcast %19 : vector<1x128xf32> to vector<128x128xf32>
    %21 = arith.addf %18, %20 : vector<128x128xf32>
    %22 = arith.truncf %21 : vector<128x128xf32> to vector<128x128xbf16>
    %c0_21 = arith.constant 0 : index
    %c0_22 = arith.constant 0 : index
    %23 = vector.load %arg10[%c0_21, %c0_22] : memref<128x128xbf16, #tpu.memory_space<vmem>>, vector<128x128xbf16>
    tpu.vector_store %arg10[%c0_21, %c0_22], %22 {strides = array<i32>} : memref<128x128xbf16, #tpu.memory_space<vmem>>, vector<128x128xbf16>,
    return
  }
  func.func @transform_0(%arg0: i32) -> (i32, i32) {
    %c0_i32 = arith.constant 0 : i32
    %c0_i32_0 = arith.constant 0 : i32
    return %arg0, %c0_i32 : i32, i32
  }
  func.func @transform_1(%arg0: i32) -> (i32, i32) {
    %c0_i32 = arith.constant 0 : i32
    %c0_i32_0 = arith.constant 0 : i32
    return %arg0, %c0_i32 : i32, i32
  }
  func.func @transform_2(%arg0: i32) -> (i32, i32) {
    %c0_i32 = arith.constant 0 : i32
    %c0_i32_0 = arith.constant 0 : i32
    return %arg0, %c0_i32 : i32, i32
  }
  func.func @transform_3(%arg0: i32) -> (i32, i32) {
    %c0_i32 = arith.constant 0 : i32
    %c0_i32_0 = arith.constant 0 : i32
    %c0_i32_1 = arith.constant 0 : i32
    return %c0_i32, %c0_i32_0 : i32, i32
  }
  func.func @transform_4(%arg0: i32) -> (i32, i32) {
    %c0_i32 = arith.constant 0 : i32
    %c0_i32_0 = arith.constant 0 : i32
    %c0_i32_1 = arith.constant 0 : i32
    return %c0_i32, %c0_i32_0 : i32, i32
  }
  func.func @transform_5(%arg0: i32) -> (i32, i32) {
    %c0_i32 = arith.constant 0 : i32
    %c0_i32_0 = arith.constant 0 : i32
    %c0_i32_1 = arith.constant 0 : i32
    return %c0_i32, %c0_i32_0 : i32, i32
  }
  func.func @transform_6(%arg0: i32) -> (i32, i32) {
    %c0_i32 = arith.constant 0 : i32
    %c0_i32_0 = arith.constant 0 : i32
    %c0_i32_1 = arith.constant 0 : i32
    return %c0_i32, %c0_i32_0 : i32, i32
  }
  func.func @transform_7(%arg0: i32) -> (i32, i32) {
    %c0_i32 = arith.constant 0 : i32
    %c0_i32_0 = arith.constant 0 : i32
    %c0_i32_1 = arith.constant 0 : i32
    return %c0_i32, %c0_i32_0 : i32, i32
  }
  func.func @transform_8(%arg0: i32) -> (i32, i32) {
    %c0_i32 = arith.constant 0 : i32
    %c0_i32_0 = arith.constant 0 : i32
    %c0_i32_1 = arith.constant 0 : i32
    return %c0_i32, %c0_i32_0 : i32, i32
  }
  func.func @transform_9(%arg0: i32) -> (i32, i32) {
    %c0_i32 = arith.constant 0 : i32
    %c0_i32_0 = arith.constant 0 : i32
    return %arg0, %c0_i32 : i32, i32
  }
}

module attributes {stable_mosaic.version = 11 : i64} {
  func.func @_mlp2_multi_kernel(%arg0: i32, %arg1: memref<16x128xbf16, #tpu.memory_space<vmem>>, %arg2: memref<16x128xbf16, #tpu.memory_space<vmem>>, %arg3: memref<128x128xbf16, #tpu.memory_space<vmem>>, %arg4: memref<128x128xbf16, #tpu.memory_space<vmem>>, %arg5: memref<1x128xf32, #tpu.memory_space<vmem>>, %arg6: memref<128x128xbf16, #tpu.memory_space<vmem>>, %arg7: memref<1x128xf32, #tpu.memory_space<vmem>>, %arg8: memref<16x128xbf16, #tpu.memory_space<vmem>>) attributes {dimension_semantics = [#tpu.dimension_semantics<parallel>], iteration_bounds = array<i64: 1>, scalar_prefetch = 0 : i64, scratch_operands = 0 : i64, tpu.core_type = #tpu.core_type<tc>, window_params = [{transform_indices = @transform_0, window_bounds = array<i64: 16, 128>}, {transform_indices = @transform_1, window_bounds = array<i64: 16, 128>}, {pipeline_mode = #tpu.pipeline_mode<synchronous>, transform_indices = @transform_2, window_bounds = array<i64: 128, 128>}, {pipeline_mode = #tpu.pipeline_mode<synchronous>, transform_indices = @transform_3, window_bounds = array<i64: 128, 128>}, {pipeline_mode = #tpu.pipeline_mode<synchronous>, transform_indices = @transform_4, window_bounds = array<i64: 1, 128>}, {pipeline_mode = #tpu.pipeline_mode<synchronous>, transform_indices = @transform_5, window_bounds = array<i64: 128, 128>}, {pipeline_mode = #tpu.pipeline_mode<synchronous>, transform_indices = @transform_6, window_bounds = array<i64: 1, 128>}, {transform_indices = @transform_7, window_bounds = array<i64: 16, 128>}]} {
    %c0 = arith.constant 0 : index
    %c0_0 = arith.constant 0 : index
    %0 = vector.load %arg1[%c0, %c0_0] : memref<16x128xbf16, #tpu.memory_space<vmem>>, vector<16x128xbf16>
    %c0_1 = arith.constant 0 : index
    %c0_2 = arith.constant 0 : index
    %1 = vector.load %arg3[%c0_1, %c0_2] : memref<128x128xbf16, #tpu.memory_space<vmem>>, vector<128x128xbf16>
    %cst = arith.constant dense<0.000000e+00> : vector<16x128xf32>
    %2 = tpu.matmul %0, %1, %cst {dimension_numbers = #tpu.dot_dimension_numbers<[1], [0], [0], [1], [0, 0, 1, 1], [], []>} : vector<16x128xbf16>, vector<128x128xbf16>, vector<16x128xf32> -> vector<16x128xf32>
    %c0_3 = arith.constant 0 : index
    %c0_4 = arith.constant 0 : index
    %3 = vector.load %arg2[%c0_3, %c0_4] : memref<16x128xbf16, #tpu.memory_space<vmem>>, vector<16x128xbf16>
    %c0_5 = arith.constant 0 : index
    %c0_6 = arith.constant 0 : index
    %4 = vector.load %arg4[%c0_5, %c0_6] : memref<128x128xbf16, #tpu.memory_space<vmem>>, vector<128x128xbf16>
    %cst_7 = arith.constant dense<0.000000e+00> : vector<16x128xf32>
    %5 = tpu.matmul %3, %4, %cst_7 {dimension_numbers = #tpu.dot_dimension_numbers<[1], [0], [0], [1], [0, 0, 1, 1], [], []>} : vector<16x128xbf16>, vector<128x128xbf16>, vector<16x128xf32> -> vector<16x128xf32>
    %6 = arith.addf %2, %5 : vector<16x128xf32>
    %c0_8 = arith.constant 0 : index
    %c0_9 = arith.constant 0 : index
    %7 = vector.load %arg5[%c0_8, %c0_9] : memref<1x128xf32, #tpu.memory_space<vmem>>, vector<1x128xf32>
    %8 = vector.broadcast %7 : vector<1x128xf32> to vector<16x128xf32>
    %9 = arith.addf %6, %8 : vector<16x128xf32>
    %cst_10 = arith.constant 0.000000e+00 : f32
    %10 = vector.broadcast %cst_10 : f32 to vector<16x128xf32>
    %11 = arith.maximumf %9, %10 : vector<16x128xf32>
    %12 = arith.truncf %11 : vector<16x128xf32> to vector<16x128xbf16>
    %c0_11 = arith.constant 0 : index
    %c0_12 = arith.constant 0 : index
    %13 = vector.load %arg6[%c0_11, %c0_12] : memref<128x128xbf16, #tpu.memory_space<vmem>>, vector<128x128xbf16>
    %cst_13 = arith.constant dense<0.000000e+00> : vector<16x128xf32>
    %14 = tpu.matmul %12, %13, %cst_13 {dimension_numbers = #tpu.dot_dimension_numbers<[1], [0], [0], [1], [0, 0, 1, 1], [], []>} : vector<16x128xbf16>, vector<128x128xbf16>, vector<16x128xf32> -> vector<16x128xf32>
    %c0_14 = arith.constant 0 : index
    %c0_15 = arith.constant 0 : index
    %15 = vector.load %arg7[%c0_14, %c0_15] : memref<1x128xf32, #tpu.memory_space<vmem>>, vector<1x128xf32>
    %16 = vector.broadcast %15 : vector<1x128xf32> to vector<16x128xf32>
    %17 = arith.addf %14, %16 : vector<16x128xf32>
    %18 = arith.truncf %17 : vector<16x128xf32> to vector<16x128xbf16>
    %c0_16 = arith.constant 0 : index
    %c0_17 = arith.constant 0 : index
    %19 = vector.load %arg8[%c0_16, %c0_17] : memref<16x128xbf16, #tpu.memory_space<vmem>>, vector<16x128xbf16>
    tpu.vector_store %arg8[%c0_16, %c0_17], %18 {strides = array<i32>} : memref<16x128xbf16, #tpu.memory_space<vmem>>, vector<16x128xbf16>,
    return
  }
  func.func @transform_0(%arg0: i32) -> (i32, i32) {
    %c0_i32 = arith.constant 0 : i32
    %c0_i32_0 = arith.constant 0 : i32
    return %arg0, %c0_i32 : i32, i32
  }
  func.func @transform_1(%arg0: i32) -> (i32, i32) {
    %c0_i32 = arith.constant 0 : i32
    %c0_i32_0 = arith.constant 0 : i32
    return %arg0, %c0_i32 : i32, i32
  }
  func.func @transform_2(%arg0: i32) -> (i32, i32) {
    %c0_i32 = arith.constant 0 : i32
    %c0_i32_0 = arith.constant 0 : i32
    %c0_i32_1 = arith.constant 0 : i32
    return %c0_i32, %c0_i32_0 : i32, i32
  }
  func.func @transform_3(%arg0: i32) -> (i32, i32) {
    %c0_i32 = arith.constant 0 : i32
    %c0_i32_0 = arith.constant 0 : i32
    %c0_i32_1 = arith.constant 0 : i32
    return %c0_i32, %c0_i32_0 : i32, i32
  }
  func.func @transform_4(%arg0: i32) -> (i32, i32) {
    %c0_i32 = arith.constant 0 : i32
    %c0_i32_0 = arith.constant 0 : i32
    %c0_i32_1 = arith.constant 0 : i32
    return %c0_i32, %c0_i32_0 : i32, i32
  }
  func.func @transform_5(%arg0: i32) -> (i32, i32) {
    %c0_i32 = arith.constant 0 : i32
    %c0_i32_0 = arith.constant 0 : i32
    %c0_i32_1 = arith.constant 0 : i32
    return %c0_i32, %c0_i32_0 : i32, i32
  }
  func.func @transform_6(%arg0: i32) -> (i32, i32) {
    %c0_i32 = arith.constant 0 : i32
    %c0_i32_0 = arith.constant 0 : i32
    %c0_i32_1 = arith.constant 0 : i32
    return %c0_i32, %c0_i32_0 : i32, i32
  }
  func.func @transform_7(%arg0: i32) -> (i32, i32) {
    %c0_i32 = arith.constant 0 : i32
    %c0_i32_0 = arith.constant 0 : i32
    return %arg0, %c0_i32 : i32, i32
  }
}

module attributes {stable_mosaic.version = 11 : i64} {
  func.func @_mlp2_multi_kernel(%arg0: i32, %arg1: memref<128x128xbf16, #tpu.memory_space<vmem>>, %arg2: memref<128x128xbf16, #tpu.memory_space<vmem>>, %arg3: memref<128x128xbf16, #tpu.memory_space<vmem>>, %arg4: memref<128x128xbf16, #tpu.memory_space<vmem>>, %arg5: memref<128x128xbf16, #tpu.memory_space<vmem>>, %arg6: memref<128x128xbf16, #tpu.memory_space<vmem>>, %arg7: memref<128x128xbf16, #tpu.memory_space<vmem>>, %arg8: memref<128x128xbf16, #tpu.memory_space<vmem>>, %arg9: memref<128x128xbf16, #tpu.memory_space<vmem>>, %arg10: memref<128x128xbf16, #tpu.memory_space<vmem>>, %arg11: memref<128x128xbf16, #tpu.memory_space<vmem>>, %arg12: memref<128x128xbf16, #tpu.memory_space<vmem>>, %arg13: memref<1x128xf32, #tpu.memory_space<vmem>>, %arg14: memref<128x128xbf16, #tpu.memory_space<vmem>>, %arg15: memref<1x128xf32, #tpu.memory_space<vmem>>, %arg16: memref<128x128xbf16, #tpu.memory_space<vmem>>) attributes {dimension_semantics = [#tpu.dimension_semantics<parallel>], iteration_bounds = array<i64: 1>, scalar_prefetch = 0 : i64, scratch_operands = 0 : i64, tpu.core_type = #tpu.core_type<tc>, window_params = [{transform_indices = @transform_0, window_bounds = array<i64: 128, 128>}, {transform_indices = @transform_1, window_bounds = array<i64: 128, 128>}, {transform_indices = @transform_2, window_bounds = array<i64: 128, 128>}, {transform_indices = @transform_3, window_bounds = array<i64: 128, 128>}, {transform_indices = @transform_4, window_bounds = array<i64: 128, 128>}, {transform_indices = @transform_5, window_bounds = array<i64: 128, 128>}, {pipeline_mode = #tpu.pipeline_mode<synchronous>, transform_indices = @transform_6, window_bounds = array<i64: 128, 128>}, {pipeline_mode = #tpu.pipeline_mode<synchronous>, transform_indices = @transform_7, window_bounds = array<i64: 128, 128>}, {pipeline_mode = #tpu.pipeline_mode<synchronous>, transform_indices = @transform_8, window_bounds = array<i64: 128, 128>}, {pipeline_mode = #tpu.pipeline_mode<synchronous>, transform_indices = @transform_9, window_bounds = array<i64: 128, 128>}, {pipeline_mode = #tpu.pipeline_mode<synchronous>, transform_indices = @transform_10, window_bounds = array<i64: 128, 128>}, {pipeline_mode = #tpu.pipeline_mode<synchronous>, transform_indices = @transform_11, window_bounds = array<i64: 128, 128>}, {pipeline_mode = #tpu.pipeline_mode<synchronous>, transform_indices = @transform_12, window_bounds = array<i64: 1, 128>}, {pipeline_mode = #tpu.pipeline_mode<synchronous>, transform_indices = @transform_13, window_bounds = array<i64: 128, 128>}, {pipeline_mode = #tpu.pipeline_mode<synchronous>, transform_indices = @transform_14, window_bounds = array<i64: 1, 128>}, {transform_indices = @transform_15, window_bounds = array<i64: 128, 128>}]} {
    %c0 = arith.constant 0 : index
    %c0_0 = arith.constant 0 : index
    %0 = vector.load %arg1[%c0, %c0_0] : memref<128x128xbf16, #tpu.memory_space<vmem>>, vector<128x128xbf16>
    %c0_1 = arith.constant 0 : index
    %c0_2 = arith.constant 0 : index
    %1 = vector.load %arg7[%c0_1, %c0_2] : memref<128x128xbf16, #tpu.memory_space<vmem>>, vector<128x128xbf16>
    %cst = arith.constant dense<0.000000e+00> : vector<128x128xf32>
    %2 = tpu.matmul %0, %1, %cst {dimension_numbers = #tpu.dot_dimension_numbers<[1], [0], [0], [1], [0, 0, 1, 1], [], []>} : vector<128x128xbf16>, vector<128x128xbf16>, vector<128x128xf32> -> vector<128x128xf32>
    %c0_3 = arith.constant 0 : index
    %c0_4 = arith.constant 0 : index
    %3 = vector.load %arg2[%c0_3, %c0_4] : memref<128x128xbf16, #tpu.memory_space<vmem>>, vector<128x128xbf16>
    %c0_5 = arith.constant 0 : index
    %c0_6 = arith.constant 0 : index
    %4 = vector.load %arg8[%c0_5, %c0_6] : memref<128x128xbf16, #tpu.memory_space<vmem>>, vector<128x128xbf16>
    %cst_7 = arith.constant dense<0.000000e+00> : vector<128x128xf32>
    %5 = tpu.matmul %3, %4, %cst_7 {dimension_numbers = #tpu.dot_dimension_numbers<[1], [0], [0], [1], [0, 0, 1, 1], [], []>} : vector<128x128xbf16>, vector<128x128xbf16>, vector<128x128xf32> -> vector<128x128xf32>
    %6 = arith.addf %2, %5 : vector<128x128xf32>
    %c0_8 = arith.constant 0 : index
    %c0_9 = arith.constant 0 : index
    %7 = vector.load %arg3[%c0_8, %c0_9] : memref<128x128xbf16, #tpu.memory_space<vmem>>, vector<128x128xbf16>
    %c0_10 = arith.constant 0 : index
    %c0_11 = arith.constant 0 : index
    %8 = vector.load %arg9[%c0_10, %c0_11] : memref<128x128xbf16, #tpu.memory_space<vmem>>, vector<128x128xbf16>
    %cst_12 = arith.constant dense<0.000000e+00> : vector<128x128xf32>
    %9 = tpu.matmul %7, %8, %cst_12 {dimension_numbers = #tpu.dot_dimension_numbers<[1], [0], [0], [1], [0, 0, 1, 1], [], []>} : vector<128x128xbf16>, vector<128x128xbf16>, vector<128x128xf32> -> vector<128x128xf32>
    %10 = arith.addf %6, %9 : vector<128x128xf32>
    %c0_13 = arith.constant 0 : index
    %c0_14 = arith.constant 0 : index
    %11 = vector.load %arg4[%c0_13, %c0_14] : memref<128x128xbf16, #tpu.memory_space<vmem>>, vector<128x128xbf16>
    %c0_15 = arith.constant 0 : index
    %c0_16 = arith.constant 0 : index
    %12 = vector.load %arg10[%c0_15, %c0_16] : memref<128x128xbf16, #tpu.memory_space<vmem>>, vector<128x128xbf16>
    %cst_17 = arith.constant dense<0.000000e+00> : vector<128x128xf32>
    %13 = tpu.matmul %11, %12, %cst_17 {dimension_numbers = #tpu.dot_dimension_numbers<[1], [0], [0], [1], [0, 0, 1, 1], [], []>} : vector<128x128xbf16>, vector<128x128xbf16>, vector<128x128xf32> -> vector<128x128xf32>
    %14 = arith.addf %10, %13 : vector<128x128xf32>
    %c0_18 = arith.constant 0 : index
    %c0_19 = arith.constant 0 : index
    %15 = vector.load %arg5[%c0_18, %c0_19] : memref<128x128xbf16, #tpu.memory_space<vmem>>, vector<128x128xbf16>
    %c0_20 = arith.constant 0 : index
    %c0_21 = arith.constant 0 : index
    %16 = vector.load %arg11[%c0_20, %c0_21] : memref<128x128xbf16, #tpu.memory_space<vmem>>, vector<128x128xbf16>
    %cst_22 = arith.constant dense<0.000000e+00> : vector<128x128xf32>
    %17 = tpu.matmul %15, %16, %cst_22 {dimension_numbers = #tpu.dot_dimension_numbers<[1], [0], [0], [1], [0, 0, 1, 1], [], []>} : vector<128x128xbf16>, vector<128x128xbf16>, vector<128x128xf32> -> vector<128x128xf32>
    %18 = arith.addf %14, %17 : vector<128x128xf32>
    %c0_23 = arith.constant 0 : index
    %c0_24 = arith.constant 0 : index
    %19 = vector.load %arg6[%c0_23, %c0_24] : memref<128x128xbf16, #tpu.memory_space<vmem>>, vector<128x128xbf16>
    %c0_25 = arith.constant 0 : index
    %c0_26 = arith.constant 0 : index
    %20 = vector.load %arg12[%c0_25, %c0_26] : memref<128x128xbf16, #tpu.memory_space<vmem>>, vector<128x128xbf16>
    %cst_27 = arith.constant dense<0.000000e+00> : vector<128x128xf32>
    %21 = tpu.matmul %19, %20, %cst_27 {dimension_numbers = #tpu.dot_dimension_numbers<[1], [0], [0], [1], [0, 0, 1, 1], [], []>} : vector<128x128xbf16>, vector<128x128xbf16>, vector<128x128xf32> -> vector<128x128xf32>
    %22 = arith.addf %18, %21 : vector<128x128xf32>
    %c0_28 = arith.constant 0 : index
    %c0_29 = arith.constant 0 : index
    %23 = vector.load %arg13[%c0_28, %c0_29] : memref<1x128xf32, #tpu.memory_space<vmem>>, vector<1x128xf32>
    %24 = vector.broadcast %23 : vector<1x128xf32> to vector<128x128xf32>
    %25 = arith.addf %22, %24 : vector<128x128xf32>
    %cst_30 = arith.constant 0.000000e+00 : f32
    %26 = vector.broadcast %cst_30 : f32 to vector<128x128xf32>
    %27 = arith.maximumf %25, %26 : vector<128x128xf32>
    %28 = arith.truncf %27 : vector<128x128xf32> to vector<128x128xbf16>
    %c0_31 = arith.constant 0 : index
    %c0_32 = arith.constant 0 : index
    %29 = vector.load %arg14[%c0_31, %c0_32] : memref<128x128xbf16, #tpu.memory_space<vmem>>, vector<128x128xbf16>
    %cst_33 = arith.constant dense<0.000000e+00> : vector<128x128xf32>
    %30 = tpu.matmul %28, %29, %cst_33 {dimension_numbers = #tpu.dot_dimension_numbers<[1], [0], [0], [1], [0, 0, 1, 1], [], []>} : vector<128x128xbf16>, vector<128x128xbf16>, vector<128x128xf32> -> vector<128x128xf32>
    %c0_34 = arith.constant 0 : index
    %c0_35 = arith.constant 0 : index
    %31 = vector.load %arg15[%c0_34, %c0_35] : memref<1x128xf32, #tpu.memory_space<vmem>>, vector<1x128xf32>
    %32 = vector.broadcast %31 : vector<1x128xf32> to vector<128x128xf32>
    %33 = arith.addf %30, %32 : vector<128x128xf32>
    %34 = arith.truncf %33 : vector<128x128xf32> to vector<128x128xbf16>
    %c0_36 = arith.constant 0 : index
    %c0_37 = arith.constant 0 : index
    %35 = vector.load %arg16[%c0_36, %c0_37] : memref<128x128xbf16, #tpu.memory_space<vmem>>, vector<128x128xbf16>
    tpu.vector_store %arg16[%c0_36, %c0_37], %34 {strides = array<i32>} : memref<128x128xbf16, #tpu.memory_space<vmem>>, vector<128x128xbf16>,
    return
  }
  func.func @transform_0(%arg0: i32) -> (i32, i32) {
    %c0_i32 = arith.constant 0 : i32
    %c0_i32_0 = arith.constant 0 : i32
    return %arg0, %c0_i32 : i32, i32
  }
  func.func @transform_1(%arg0: i32) -> (i32, i32) {
    %c0_i32 = arith.constant 0 : i32
    %c0_i32_0 = arith.constant 0 : i32
    return %arg0, %c0_i32 : i32, i32
  }
  func.func @transform_2(%arg0: i32) -> (i32, i32) {
    %c0_i32 = arith.constant 0 : i32
    %c0_i32_0 = arith.constant 0 : i32
    return %arg0, %c0_i32 : i32, i32
  }
  func.func @transform_3(%arg0: i32) -> (i32, i32) {
    %c0_i32 = arith.constant 0 : i32
    %c0_i32_0 = arith.constant 0 : i32
    return %arg0, %c0_i32 : i32, i32
  }
  func.func @transform_4(%arg0: i32) -> (i32, i32) {
    %c0_i32 = arith.constant 0 : i32
    %c0_i32_0 = arith.constant 0 : i32
    return %arg0, %c0_i32 : i32, i32
  }
  func.func @transform_5(%arg0: i32) -> (i32, i32) {
    %c0_i32 = arith.constant 0 : i32
    %c0_i32_0 = arith.constant 0 : i32
    return %arg0, %c0_i32 : i32, i32
  }
  func.func @transform_6(%arg0: i32) -> (i32, i32) {
    %c0_i32 = arith.constant 0 : i32
    %c0_i32_0 = arith.constant 0 : i32
    %c0_i32_1 = arith.constant 0 : i32
    return %c0_i32, %c0_i32_0 : i32, i32
  }
  func.func @transform_7(%arg0: i32) -> (i32, i32) {
    %c0_i32 = arith.constant 0 : i32
    %c0_i32_0 = arith.constant 0 : i32
    %c0_i32_1 = arith.constant 0 : i32
    return %c0_i32, %c0_i32_0 : i32, i32
  }
  func.func @transform_8(%arg0: i32) -> (i32, i32) {
    %c0_i32 = arith.constant 0 : i32
    %c0_i32_0 = arith.constant 0 : i32
    %c0_i32_1 = arith.constant 0 : i32
    return %c0_i32, %c0_i32_0 : i32, i32
  }
  func.func @transform_9(%arg0: i32) -> (i32, i32) {
    %c0_i32 = arith.constant 0 : i32
    %c0_i32_0 = arith.constant 0 : i32
    %c0_i32_1 = arith.constant 0 : i32
    return %c0_i32, %c0_i32_0 : i32, i32
  }
  func.func @transform_10(%arg0: i32) -> (i32, i32) {
    %c0_i32 = arith.constant 0 : i32
    %c0_i32_0 = arith.constant 0 : i32
    %c0_i32_1 = arith.constant 0 : i32
    return %c0_i32, %c0_i32_0 : i32, i32
  }
  func.func @transform_11(%arg0: i32) -> (i32, i32) {
    %c0_i32 = arith.constant 0 : i32
    %c0_i32_0 = arith.constant 0 : i32
    %c0_i32_1 = arith.constant 0 : i32
    return %c0_i32, %c0_i32_0 : i32, i32
  }
  func.func @transform_12(%arg0: i32) -> (i32, i32) {
    %c0_i32 = arith.constant 0 : i32
    %c0_i32_0 = arith.constant 0 : i32
    %c0_i32_1 = arith.constant 0 : i32
    return %c0_i32, %c0_i32_0 : i32, i32
  }
  func.func @transform_13(%arg0: i32) -> (i32, i32) {
    %c0_i32 = arith.constant 0 : i32
    %c0_i32_0 = arith.constant 0 : i32
    %c0_i32_1 = arith.constant 0 : i32
    return %c0_i32, %c0_i32_0 : i32, i32
  }
  func.func @transform_14(%arg0: i32) -> (i32, i32) {
    %c0_i32 = arith.constant 0 : i32
    %c0_i32_0 = arith.constant 0 : i32
    %c0_i32_1 = arith.constant 0 : i32
    return %c0_i32, %c0_i32_0 : i32, i32
  }
  func.func @transform_15(%arg0: i32) -> (i32, i32) {
    %c0_i32 = arith.constant 0 : i32
    %c0_i32_0 = arith.constant 0 : i32
    return %arg0, %c0_i32 : i32, i32
  }
}

module attributes {stable_mosaic.version = 11 : i64} {
  func.func @_mlp2_multi_kernel(%arg0: i32, %arg1: memref<16x128xbf16, #tpu.memory_space<vmem>>, %arg2: memref<16x128xbf16, #tpu.memory_space<vmem>>, %arg3: memref<16x128xbf16, #tpu.memory_space<vmem>>, %arg4: memref<128x128xbf16, #tpu.memory_space<vmem>>, %arg5: memref<128x128xbf16, #tpu.memory_space<vmem>>, %arg6: memref<128x128xbf16, #tpu.memory_space<vmem>>, %arg7: memref<1x128xf32, #tpu.memory_space<vmem>>, %arg8: memref<128x128xbf16, #tpu.memory_space<vmem>>, %arg9: memref<1x128xf32, #tpu.memory_space<vmem>>, %arg10: memref<16x128xf32, #tpu.memory_space<vmem>>) attributes {dimension_semantics = [#tpu.dimension_semantics<parallel>], iteration_bounds = array<i64: 1>, scalar_prefetch = 0 : i64, scratch_operands = 0 : i64, tpu.core_type = #tpu.core_type<tc>, window_params = [{transform_indices = @transform_0, window_bounds = array<i64: 16, 128>}, {transform_indices = @transform_1, window_bounds = array<i64: 16, 128>}, {transform_indices = @transform_2, window_bounds = array<i64: 16, 128>}, {pipeline_mode = #tpu.pipeline_mode<synchronous>, transform_indices = @transform_3, window_bounds = array<i64: 128, 128>}, {pipeline_mode = #tpu.pipeline_mode<synchronous>, transform_indices = @transform_4, window_bounds = array<i64: 128, 128>}, {pipeline_mode = #tpu.pipeline_mode<synchronous>, transform_indices = @transform_5, window_bounds = array<i64: 128, 128>}, {pipeline_mode = #tpu.pipeline_mode<synchronous>, transform_indices = @transform_6, window_bounds = array<i64: 1, 128>}, {pipeline_mode = #tpu.pipeline_mode<synchronous>, transform_indices = @transform_7, window_bounds = array<i64: 128, 128>}, {pipeline_mode = #tpu.pipeline_mode<synchronous>, transform_indices = @transform_8, window_bounds = array<i64: 1, 128>}, {transform_indices = @transform_9, window_bounds = array<i64: 16, 128>}]} {
    %c0 = arith.constant 0 : index
    %c0_0 = arith.constant 0 : index
    %0 = vector.load %arg1[%c0, %c0_0] : memref<16x128xbf16, #tpu.memory_space<vmem>>, vector<16x128xbf16>
    %c0_1 = arith.constant 0 : index
    %c0_2 = arith.constant 0 : index
    %1 = vector.load %arg4[%c0_1, %c0_2] : memref<128x128xbf16, #tpu.memory_space<vmem>>, vector<128x128xbf16>
    %cst = arith.constant dense<0.000000e+00> : vector<16x128xf32>
    %2 = tpu.matmul %0, %1, %cst {dimension_numbers = #tpu.dot_dimension_numbers<[1], [0], [0], [1], [0, 0, 1, 1], [], []>} : vector<16x128xbf16>, vector<128x128xbf16>, vector<16x128xf32> -> vector<16x128xf32>
    %c0_3 = arith.constant 0 : index
    %c0_4 = arith.constant 0 : index
    %3 = vector.load %arg2[%c0_3, %c0_4] : memref<16x128xbf16, #tpu.memory_space<vmem>>, vector<16x128xbf16>
    %c0_5 = arith.constant 0 : index
    %c0_6 = arith.constant 0 : index
    %4 = vector.load %arg5[%c0_5, %c0_6] : memref<128x128xbf16, #tpu.memory_space<vmem>>, vector<128x128xbf16>
    %cst_7 = arith.constant dense<0.000000e+00> : vector<16x128xf32>
    %5 = tpu.matmul %3, %4, %cst_7 {dimension_numbers = #tpu.dot_dimension_numbers<[1], [0], [0], [1], [0, 0, 1, 1], [], []>} : vector<16x128xbf16>, vector<128x128xbf16>, vector<16x128xf32> -> vector<16x128xf32>
    %6 = arith.addf %2, %5 : vector<16x128xf32>
    %c0_8 = arith.constant 0 : index
    %c0_9 = arith.constant 0 : index
    %7 = vector.load %arg3[%c0_8, %c0_9] : memref<16x128xbf16, #tpu.memory_space<vmem>>, vector<16x128xbf16>
    %c0_10 = arith.constant 0 : index
    %c0_11 = arith.constant 0 : index
    %8 = vector.load %arg6[%c0_10, %c0_11] : memref<128x128xbf16, #tpu.memory_space<vmem>>, vector<128x128xbf16>
    %cst_12 = arith.constant dense<0.000000e+00> : vector<16x128xf32>
    %9 = tpu.matmul %7, %8, %cst_12 {dimension_numbers = #tpu.dot_dimension_numbers<[1], [0], [0], [1], [0, 0, 1, 1], [], []>} : vector<16x128xbf16>, vector<128x128xbf16>, vector<16x128xf32> -> vector<16x128xf32>
    %10 = arith.addf %6, %9 : vector<16x128xf32>
    %c0_13 = arith.constant 0 : index
    %c0_14 = arith.constant 0 : index
    %11 = vector.load %arg7[%c0_13, %c0_14] : memref<1x128xf32, #tpu.memory_space<vmem>>, vector<1x128xf32>
    %12 = vector.broadcast %11 : vector<1x128xf32> to vector<16x128xf32>
    %13 = arith.addf %10, %12 : vector<16x128xf32>
    %cst_15 = arith.constant 0.000000e+00 : f32
    %14 = vector.broadcast %cst_15 : f32 to vector<16x128xf32>
    %15 = arith.maximumf %13, %14 : vector<16x128xf32>
    %16 = arith.truncf %15 : vector<16x128xf32> to vector<16x128xbf16>
    %c0_16 = arith.constant 0 : index
    %c0_17 = arith.constant 0 : index
    %17 = vector.load %arg8[%c0_16, %c0_17] : memref<128x128xbf16, #tpu.memory_space<vmem>>, vector<128x128xbf16>
    %cst_18 = arith.constant dense<0.000000e+00> : vector<16x128xf32>
    %18 = tpu.matmul %16, %17, %cst_18 {dimension_numbers = #tpu.dot_dimension_numbers<[1], [0], [0], [1], [0, 0, 1, 1], [], []>} : vector<16x128xbf16>, vector<128x128xbf16>, vector<16x128xf32> -> vector<16x128xf32>
    %c0_19 = arith.constant 0 : index
    %c0_20 = arith.constant 0 : index
    %19 = vector.load %arg9[%c0_19, %c0_20] : memref<1x128xf32, #tpu.memory_space<vmem>>, vector<1x128xf32>
    %20 = vector.broadcast %19 : vector<1x128xf32> to vector<16x128xf32>
    %21 = arith.addf %18, %20 : vector<16x128xf32>
    %c0_21 = arith.constant 0 : index
    %c0_22 = arith.constant 0 : index
    %22 = vector.load %arg10[%c0_21, %c0_22] : memref<16x128xf32, #tpu.memory_space<vmem>>, vector<16x128xf32>
    tpu.vector_store %arg10[%c0_21, %c0_22], %21 {strides = array<i32>} : memref<16x128xf32, #tpu.memory_space<vmem>>, vector<16x128xf32>,
    return
  }
  func.func @transform_0(%arg0: i32) -> (i32, i32) {
    %c0_i32 = arith.constant 0 : i32
    %c0_i32_0 = arith.constant 0 : i32
    return %arg0, %c0_i32 : i32, i32
  }
  func.func @transform_1(%arg0: i32) -> (i32, i32) {
    %c0_i32 = arith.constant 0 : i32
    %c0_i32_0 = arith.constant 0 : i32
    return %arg0, %c0_i32 : i32, i32
  }
  func.func @transform_2(%arg0: i32) -> (i32, i32) {
    %c0_i32 = arith.constant 0 : i32
    %c0_i32_0 = arith.constant 0 : i32
    return %arg0, %c0_i32 : i32, i32
  }
  func.func @transform_3(%arg0: i32) -> (i32, i32) {
    %c0_i32 = arith.constant 0 : i32
    %c0_i32_0 = arith.constant 0 : i32
    %c0_i32_1 = arith.constant 0 : i32
    return %c0_i32, %c0_i32_0 : i32, i32
  }
  func.func @transform_4(%arg0: i32) -> (i32, i32) {
    %c0_i32 = arith.constant 0 : i32
    %c0_i32_0 = arith.constant 0 : i32
    %c0_i32_1 = arith.constant 0 : i32
    return %c0_i32, %c0_i32_0 : i32, i32
  }
  func.func @transform_5(%arg0: i32) -> (i32, i32) {
    %c0_i32 = arith.constant 0 : i32
    %c0_i32_0 = arith.constant 0 : i32
    %c0_i32_1 = arith.constant 0 : i32
    return %c0_i32, %c0_i32_0 : i32, i32
  }
  func.func @transform_6(%arg0: i32) -> (i32, i32) {
    %c0_i32 = arith.constant 0 : i32
    %c0_i32_0 = arith.constant 0 : i32
    %c0_i32_1 = arith.constant 0 : i32
    return %c0_i32, %c0_i32_0 : i32, i32
  }
  func.func @transform_7(%arg0: i32) -> (i32, i32) {
    %c0_i32 = arith.constant 0 : i32
    %c0_i32_0 = arith.constant 0 : i32
    %c0_i32_1 = arith.constant 0 : i32
    return %c0_i32, %c0_i32_0 : i32, i32
  }
  func.func @transform_8(%arg0: i32) -> (i32, i32) {
    %c0_i32 = arith.constant 0 : i32
    %c0_i32_0 = arith.constant 0 : i32
    %c0_i32_1 = arith.constant 0 : i32
    return %c0_i32, %c0_i32_0 : i32, i32
  }
  func.func @transform_9(%arg0: i32) -> (i32, i32) {
    %c0_i32 = arith.constant 0 : i32
    %c0_i32_0 = arith.constant 0 : i32
    return %arg0, %c0_i32 : i32, i32
  }
}

</mosaic_0001>

<llo_original>
// kernel: mpgnn_forward.7
$region0: #{mpgnn_forward.7}
  #allocation0 [shape = 'u32[]', space=smem, size = 0x4, offset = 0x4, fixed_abs, tag = 'smem constant byte address 0x4 - core index']
  #allocation1 [shape = 'u32[144,128]{1,0:T(1,128)}', space=vmem, size = 0x12000, scoped, tag = 'internal scratch']
  #allocation2 [shape = 'f32[16,128]{1,0:T(8,128)}', space=vmem, size = 0x2000, scoped, tag = 'scratch operand']
  %s0 = inlined_call_operand.vmem [shape: s32[1,128], index: 0, kind: input, shape index: {}]
  %s1 = inlined_call_operand.vmem [shape: bf16[128,128], index: 1, kind: input, shape index: {}]
  %s2 = inlined_call_operand.vmem [shape: bf16[16,128], index: 2, kind: output, shape index: {}]
  %s3 = sld [smem:[#allocation0]]
  $region26: #{mpgnn_forward.7} parent=0
    _
  %s5 = ssub.s32 1, %s3
  %s6 = scalar_select 0, %s5, %s3
  // Predicated region
  $region2: #{mpgnn_forward.7} parent=0 // pred_check
    _
  $region3: #{mpgnn_forward.7} parent=0 // pred_check_branch
    %8 = sbr.rel (0) target = $region5
  $region4: #{mpgnn_forward.7} parent=0 // pred_region
    _
  $region5: #{mpgnn_forward.7} parent=0 // pred_fallthru
    _
  // Predicated region
  $region6: #{mpgnn_forward.7} parent=0 // pred_check
    _
  $region7: #{mpgnn_forward.7} parent=0 // pred_check_branch
    %10 = sbr.rel (0) target = $region9
  $region8: #{mpgnn_forward.7} parent=0 // pred_region
    _
  $region9: #{mpgnn_forward.7} parent=0 // pred_fallthru
    _
  %p12 = scmp.eq.s32.totalorder 0, 0
  // Predicated region
  $region10: #{mpgnn_forward.7} parent=0 // pred_check
    %p13 = pneg %p12
  $region11: #{mpgnn_forward.7} parent=0 // pred_check_branch
    %15 = sbr.rel (%p13) target = $region13
  $region12: #{mpgnn_forward.7} parent=0 // pred_region
    %16 = vst [vmem:[#allocation2] sm:$0xff] 0.0
    %17 = vst [vmem:[#allocation2 + $0x8] sm:$0xff] 0.0
  $region13: #{mpgnn_forward.7} parent=0 // pred_fallthru
    _
  %s18 = smul.u32 0, 16
  %v19 = vlaneseq
  %v20 = vshrl.u32 %v19, 7
  %v21 = vadd.s32 %v20, 8
  %v22 = vstv %s18
  %v23 = vadd.s32 %v22, %v20
  %v24 = vadd.s32 %v22, %v21
  %v25 = vld [vmem:[%s0] sm:$0x1]
  %v26 = vlaneseq
  %v27 = vshrl.u32 %v26, 7
  %v28 = vsub.s32 0, %v27
  %v29 = vrot.slane %v25, %v28
  %vm30 = vcmp.eq.s32.totalorder %v23, %v29
  %vm31 = vcmp.eq.s32.totalorder %v24, %v29
  %v32 = vsel %vm30, 1, 0
  %v33 = vsel %vm31, 1, 0
  %v34 = vcvt.s32.f32 %v32
  %v35 = vcvt.s32.f32 %v33
  %v36 = vpack.c.bf16 %v35, %v34
  %v37 = vld [vmem:[#allocation2] sm:$0xff]
  %v38 = vld [vmem:[#allocation2 + $0x8] sm:$0xff]
  %v39 = vld [vmem:[%s1] sm:$0xf]
  %v40 = vld [vmem:[%s1 + $0x4] sm:$0xf]
  %v41 = vld [vmem:[%s1 + $0x8] sm:$0xf]
  %v42 = vld [vmem:[%s1 + $0xc] sm:$0xf]
  %v43 = vld [vmem:[%s1 + $0x10] sm:$0xf]
  %v44 = vld [vmem:[%s1 + $0x14] sm:$0xf]
  %v45 = vld [vmem:[%s1 + $0x18] sm:$0xf]
  %v46 = vld [vmem:[%s1 + $0x1c] sm:$0xf]
  %v47 = vld [vmem:[%s1 + $0x20] sm:$0xf]
  %v48 = vld [vmem:[%s1 + $0x24] sm:$0xf]
  %v49 = vld [vmem:[%s1 + $0x28] sm:$0xf]
  %v50 = vld [vmem:[%s1 + $0x2c] sm:$0xf]
  %v51 = vld [vmem:[%s1 + $0x30] sm:$0xf]
  %v52 = vld [vmem:[%s1 + $0x34] sm:$0xf]
  %v53 = vld [vmem:[%s1 + $0x38] sm:$0xf]
  %v54 = vld [vmem:[%s1 + $0x3c] sm:$0xf]
  %v71 = vunpack.c.l.b16 %v39
  %v72 = vunpack.c.l.b16 %v40
  %v73 = vunpack.c.l.b16 %v41
  %v74 = vunpack.c.l.b16 %v42
  %v75 = vunpack.c.l.b16 %v43
  %v76 = vunpack.c.l.b16 %v44
  %v77 = vunpack.c.l.b16 %v45
  %v78 = vunpack.c.l.b16 %v46
  %v79 = vunpack.c.l.b16 %v47
  %v80 = vunpack.c.l.b16 %v48
  %v81 = vunpack.c.l.b16 %v49
  %v82 = vunpack.c.l.b16 %v50
  %v83 = vunpack.c.l.b16 %v51
  %v84 = vunpack.c.l.b16 %v52
  %v85 = vunpack.c.l.b16 %v53
  %v86 = vunpack.c.l.b16 %v54
  %v87 = vpack.c.b16 %v72, %v71
  %v88 = vpack.c.b16 %v74, %v73
  %v89 = vpack.c.b16 %v76, %v75
  %v90 = vpack.c.b16 %v78, %v77
  %v91 = vpack.c.b16 %v80, %v79
  %v92 = vpack.c.b16 %v82, %v81
  %v93 = vpack.c.b16 %v84, %v83
  %v94 = vpack.c.b16 %v86, %v85
  %103 = vmatprep.subr.bf16.mxu0 0
  %104 = vmatpush1.bf16.msra.mxu0 %v87
  %105 = vmatprep.subr.bf16.mxu0 0
  %106 = vmatpush1.bf16.msra.mxu0 %v88
  %107 = vmatprep.subr.bf16.mxu0 0
  %108 = vmatpush1.bf16.msra.mxu0 %v89
  %109 = vmatprep.subr.bf16.mxu0 0
  %110 = vmatpush1.bf16.msra.mxu0 %v90
  %111 = vmatprep.subr.bf16.mxu0 0
  %112 = vmatpush1.bf16.msra.mxu0 %v91
  %113 = vmatprep.subr.bf16.mxu0 0
  %114 = vmatpush1.bf16.msra.mxu0 %v92
  %115 = vmatprep.subr.bf16.mxu0 0
  %116 = vmatpush1.bf16.msra.mxu0 %v93
  %117 = vmatprep.subr.bf16.mxu0 0
  %118 = vmatpush1.bf16.msra.mxu0 %v94
  %119 = vmatprep.subr.bf16.mxu0 0
  %120 = vmatpush1.bf16.msra.mxu0 0
  %121 = vmatprep.subr.bf16.mxu0 0
  %122 = vmatpush1.bf16.msra.mxu0 0
  %123 = vmatprep.subr.bf16.mxu0 0
  %124 = vmatpush1.bf16.msra.mxu0 0
  %125 = vmatprep.subr.bf16.mxu0 0
  %126 = vmatpush1.bf16.msra.mxu0 0
  %127 = vmatprep.subr.bf16.mxu0 0
  %128 = vmatpush1.bf16.msra.mxu0 0
  %129 = vmatprep.subr.bf16.mxu0 0
  %130 = vmatpush1.bf16.msra.mxu0 0
  %131 = vmatprep.subr.bf16.mxu0 0
  %132 = vmatpush1.bf16.msra.mxu0 0
  %133 = vmatprep.subr.bf16.mxu0 0
  %134 = vmatpush1.bf16.msra.mxu0 0
  %135 = vmatprep.mubr.bf16.mxu0 0
  %136 = vmatmul.mubr.bf16.gmra.mrb[0].mxu0 %v36
  %v137 = vpop.f32.mrb[0].mxu0
  %v138 = vadd.f32 0.0, %v137
  %v139 = vpop.f32.mrb[0].mxu0
  %v140 = vpop.f32.mrb[0].mxu0
  %v141 = vadd.f32 0.0, %v140
  %v142 = vpop.f32.mrb[0].mxu0
  %143 = vdwg.mxu0
  %v144 = vadd.f32 %v37, %v138
  %v145 = vadd.f32 %v38, %v141
  %146 = vst [vmem:[#allocation2] sm:$0xff] %v144
  %147 = vst [vmem:[#allocation2 + $0x8] sm:$0xff] %v145
  // Predicated region
  $region14: #{mpgnn_forward.7} parent=0 // pred_check
    %p148 = pneg %p12
  $region15: #{mpgnn_forward.7} parent=0 // pred_check_branch
    %150 = sbr.rel (%p148) target = $region17
  $region16: #{mpgnn_forward.7} parent=0 // pred_region
    %v151 = vld [vmem:[#allocation2] sm:$0xff]
    %v152 = vld [vmem:[#allocation2 + $0x8] sm:$0xff]
    %v153 = vmax.f32 %v151, 1.0
    %v154 = vmax.f32 %v152, 1.0
    %v155 = vrcp.pop %v153
    %v156 = vrcp.pop %v154
    %158 = vset.pattern.permute.xlu0 8
    %159 = vperm.xlu0 %158, %v155
    %v160 = vpop.permute.xlu0 %159
    %163 = vset.pattern.permute.xlu0 8
    %164 = vperm.xlu0 %163, %v156
    %v165 = vpop.permute.xlu0 %164
    %v167 = vmul.f32 %v151, %v160
    %v168 = vmul.f32 %v152, %v165
    %v169 = vpack.c.bf16 %v168, %v167
    %v171 = vunpack.c.l.b16 %v169
    %v172 = vunpack.c.h.b16 %v169
    %v173 = vpack.c.b16 %v171, %v171
    %v174 = vpack.c.b16 %v172, %v172
    %177 = vst [vmem:[%s2] sm:$0xf] %v173
    %178 = vst [vmem:[%s2 + $0x4] sm:$0xf] %v174
  $region17: #{mpgnn_forward.7} parent=0 // pred_fallthru
    _
  // Predicated region
  $region18: #{mpgnn_forward.7} parent=0 // pred_check
    _
  $region19: #{mpgnn_forward.7} parent=0 // pred_check_branch
    %180 = sbr.rel (0) target = $region21
  $region20: #{mpgnn_forward.7} parent=0 // pred_region
    _
  $region21: #{mpgnn_forward.7} parent=0 // pred_fallthru
    _
  // Predicated region
  $region22: #{mpgnn_forward.7} parent=0 // pred_check
    _
  $region23: #{mpgnn_forward.7} parent=0 // pred_check_branch
    %182 = sbr.rel (0) target = $region25
  $region24: #{mpgnn_forward.7} parent=0 // pred_region
    _
  $region25: #{mpgnn_forward.7} parent=0 // pred_fallthru
    _

// kernel: mpgnn_forward.8
$region0: #{mpgnn_forward.8}
  #allocation0 [shape = 'u32[]', space=smem, size = 0x4, offset = 0x4, fixed_abs, tag = 'smem constant byte address 0x4 - core index']
  #allocation1 [shape = 'u32[144,128]{1,0:T(1,128)}', space=vmem, size = 0x12000, scoped, tag = 'internal scratch']
  %s0 = inlined_call_operand.vmem [shape: bf16[16,128], index: 0, kind: input, shape index: {}]
  %s1 = inlined_call_operand.vmem [shape: bf16[16,128], index: 1, kind: input, shape index: {}]
  %s2 = inlined_call_operand.vmem [shape: bf16[128,128], index: 2, kind: input, shape index: {}]
  %s3 = inlined_call_operand.vmem [shape: bf16[128,128], index: 3, kind: input, shape index: {}]
  %s4 = inlined_call_operand.vmem [shape: f32[1,128], index: 4, kind: input, shape index: {}]
  %s5 = inlined_call_operand.vmem [shape: bf16[128,128], index: 5, kind: input, shape index: {}]
  %s6 = inlined_call_operand.vmem [shape: f32[1,128], index: 6, kind: input, shape index: {}]
  %s7 = inlined_call_operand.vmem [shape: bf16[16,128], index: 7, kind: output, shape index: {}]
  %s8 = sld [smem:[#allocation0]]
  $region38: #{mpgnn_forward.8} parent=0
    _
  %s10 = ssub.s32 1, %s8
  %s11 = scalar_select 0, %s10, %s8
  // Predicated region
  $region2: #{mpgnn_forward.8} parent=0 // pred_check
    _
  $region3: #{mpgnn_forward.8} parent=0 // pred_check_branch
    %13 = sbr.rel (0) target = $region5
  $region4: #{mpgnn_forward.8} parent=0 // pred_region
    _
  $region5: #{mpgnn_forward.8} parent=0 // pred_fallthru
    _
  // Predicated region
  $region6: #{mpgnn_forward.8} parent=0 // pred_check
    _
  $region7: #{mpgnn_forward.8} parent=0 // pred_check_branch
    %15 = sbr.rel (0) target = $region9
  $region8: #{mpgnn_forward.8} parent=0 // pred_region
    _
  $region9: #{mpgnn_forward.8} parent=0 // pred_fallthru
    _
  // Predicated region
  $region10: #{mpgnn_forward.8} parent=0 // pred_check
    _
  $region11: #{mpgnn_forward.8} parent=0 // pred_check_branch
    %17 = sbr.rel (0) target = $region13
  $region12: #{mpgnn_forward.8} parent=0 // pred_region
    _
  $region13: #{mpgnn_forward.8} parent=0 // pred_fallthru
    _
  // Predicated region
  $region14: #{mpgnn_forward.8} parent=0 // pred_check
    _
  $region15: #{mpgnn_forward.8} parent=0 // pred_check_branch
    %19 = sbr.rel (0) target = $region17
  $region16: #{mpgnn_forward.8} parent=0 // pred_region
    _
  $region17: #{mpgnn_forward.8} parent=0 // pred_fallthru
    _
  // Predicated region
  $region18: #{mpgnn_forward.8} parent=0 // pred_check
    _
  $region19: #{mpgnn_forward.8} parent=0 // pred_check_branch
    %21 = sbr.rel (0) target = $region21
  $region20: #{mpgnn_forward.8} parent=0 // pred_region
    _
  $region21: #{mpgnn_forward.8} parent=0 // pred_fallthru
    _
  // Predicated region
  $region22: #{mpgnn_forward.8} parent=0 // pred_check
    _
  $region23: #{mpgnn_forward.8} parent=0 // pred_check_branch
    %23 = sbr.rel (0) target = $region25
  $region24: #{mpgnn_forward.8} parent=0 // pred_region
    _
  $region25: #{mpgnn_forward.8} parent=0 // pred_fallthru
    _
  // Predicated region
  $region26: #{mpgnn_forward.8} parent=0 // pred_check
    _
  $region27: #{mpgnn_forward.8} parent=0 // pred_check_branch
    %25 = sbr.rel (0) target = $region29
  $region28: #{mpgnn_forward.8} parent=0 // pred_region
    _
  $region29: #{mpgnn_forward.8} parent=0 // pred_fallthru
    _
  %v27 = vld [vmem:[%s0] sm:$0xf]
  %v28 = vld [vmem:[%s0 + $0x4] sm:$0xf]
  %v29 = vld [vmem:[%s2] sm:$0xf]
  %v30 = vld [vmem:[%s2 + $0x4] sm:$0xf]
  %v31 = vld [vmem:[%s2 + $0x8] sm:$0xf]
  %v32 = vld [vmem:[%s2 + $0xc] sm:$0xf]
  %v33 = vld [vmem:[%s2 + $0x10] sm:$0xf]
  %v34 = vld [vmem:[%s2 + $0x14] sm:$0xf]
  %v35 = vld [vmem:[%s2 + $0x18] sm:$0xf]
  %v36 = vld [vmem:[%s2 + $0x1c] sm:$0xf]
  %v37 = vld [vmem:[%s2 + $0x20] sm:$0xf]
  %v38 = vld [vmem:[%s2 + $0x24] sm:$0xf]
  %v39 = vld [vmem:[%s2 + $0x28] sm:$0xf]
  %v40 = vld [vmem:[%s2 + $0x2c] sm:$0xf]
  %v41 = vld [vmem:[%s2 + $0x30] sm:$0xf]
  %v42 = vld [vmem:[%s2 + $0x34] sm:$0xf]
  %v43 = vld [vmem:[%s2 + $0x38] sm:$0xf]
  %v44 = vld [vmem:[%s2 + $0x3c] sm:$0xf]
  %v45 = vld [vmem:[%s1] sm:$0xf]
  %v46 = vld [vmem:[%s1 + $0x4] sm:$0xf]
  %v47 = vld [vmem:[%s3] sm:$0xf]
  %v48 = vld [vmem:[%s3 + $0x4] sm:$0xf]
  %v49 = vld [vmem:[%s3 + $0x8] sm:$0xf]
  %v50 = vld [vmem:[%s3 + $0xc] sm:$0xf]
  %v51 = vld [vmem:[%s3 + $0x10] sm:$0xf]
  %v52 = vld [vmem:[%s3 + $0x14] sm:$0xf]
  %v53 = vld [vmem:[%s3 + $0x18] sm:$0xf]
  %v54 = vld [vmem:[%s3 + $0x1c] sm:$0xf]
  %v55 = vld [vmem:[%s3 + $0x20] sm:$0xf]
  %v56 = vld [vmem:[%s3 + $0x24] sm:$0xf]
  %v57 = vld [vmem:[%s3 + $0x28] sm:$0xf]
  %v58 = vld [vmem:[%s3 + $0x2c] sm:$0xf]
  %v59 = vld [vmem:[%s3 + $0x30] sm:$0xf]
  %v60 = vld [vmem:[%s3 + $0x34] sm:$0xf]
  %v61 = vld [vmem:[%s3 + $0x38] sm:$0xf]
  %v62 = vld [vmem:[%s3 + $0x3c] sm:$0xf]
  %v65 = vunpack.c.l.b16 %v45
  %v66 = vunpack.c.l.b16 %v46
  %v67 = vpack.c.b16 %v66, %v65
  %v85 = vunpack.c.l.b16 %v47
  %v86 = vunpack.c.l.b16 %v48
  %v87 = vunpack.c.l.b16 %v49
  %v88 = vunpack.c.l.b16 %v50
  %v89 = vunpack.c.l.b16 %v51
  %v90 = vunpack.c.l.b16 %v52
  %v91 = vunpack.c.l.b16 %v53
  %v92 = vunpack.c.l.b16 %v54
  %v93 = vunpack.c.l.b16 %v55
  %v94 = vunpack.c.l.b16 %v56
  %v95 = vunpack.c.l.b16 %v57
  %v96 = vunpack.c.l.b16 %v58
  %v97 = vunpack.c.l.b16 %v59
  %v98 = vunpack.c.l.b16 %v60
  %v99 = vunpack.c.l.b16 %v61
  %v100 = vunpack.c.l.b16 %v62
  %v101 = vpack.c.b16 %v86, %v85
  %v102 = vpack.c.b16 %v88, %v87
  %v103 = vpack.c.b16 %v90, %v89
  %v104 = vpack.c.b16 %v92, %v91
  %v105 = vpack.c.b16 %v94, %v93
  %v106 = vpack.c.b16 %v96, %v95
  %v107 = vpack.c.b16 %v98, %v97
  %v108 = vpack.c.b16 %v100, %v99
  %117 = vmatprep.subr.bf16.mxu0 0
  %118 = vmatpush1.bf16.msra.mxu0 %v101
  %119 = vmatprep.subr.bf16.mxu0 0
  %120 = vmatpush1.bf16.msra.mxu0 %v102
  %121 = vmatprep.subr.bf16.mxu0 0
  %122 = vmatpush1.bf16.msra.mxu0 %v103
  %123 = vmatprep.subr.bf16.mxu0 0
  %124 = vmatpush1.bf16.msra.mxu0 %v104
  %125 = vmatprep.subr.bf16.mxu0 0
  %126 = vmatpush1.bf16.msra.mxu0 %v105
  %127 = vmatprep.subr.bf16.mxu0 0
  %128 = vmatpush1.bf16.msra.mxu0 %v106
  %129 = vmatprep.subr.bf16.mxu0 0
  %130 = vmatpush1.bf16.msra.mxu0 %v107
  %131 = vmatprep.subr.bf16.mxu0 0
  %132 = vmatpush1.bf16.msra.mxu0 %v108
  %133 = vmatprep.subr.bf16.mxu0 0
  %134 = vmatpush1.bf16.msra.mxu0 0
  %135 = vmatprep.subr.bf16.mxu0 0
  %136 = vmatpush1.bf16.msra.mxu0 0
  %137 = vmatprep.subr.bf16.mxu0 0
  %138 = vmatpush1.bf16.msra.mxu0 0
  %139 = vmatprep.subr.bf16.mxu0 0
  %140 = vmatpush1.bf16.msra.mxu0 0
  %141 = vmatprep.subr.bf16.mxu0 0
  %142 = vmatpush1.bf16.msra.mxu0 0
  %143 = vmatprep.subr.bf16.mxu0 0
  %144 = vmatpush1.bf16.msra.mxu0 0
  %145 = vmatprep.subr.bf16.mxu0 0
  %146 = vmatpush1.bf16.msra.mxu0 0
  %147 = vmatprep.subr.bf16.mxu0 0
  %148 = vmatpush1.bf16.msra.mxu0 0
  %149 = vmatprep.mubr.bf16.mxu0 0
  %150 = vmatmul.mubr.bf16.gmra.mrb[0].mxu0 %v67
  %v151 = vpop.f32.mrb[0].mxu0
  %v152 = vadd.f32 0.0, %v151
  %v153 = vpop.f32.mrb[0].mxu0
  %v154 = vpop.f32.mrb[0].mxu0
  %v155 = vadd.f32 0.0, %v154
  %v156 = vpop.f32.mrb[0].mxu0
  %157 = vdwg.mxu0
  %v160 = vunpack.c.l.b16 %v27
  %v161 = vunpack.c.l.b16 %v28
  %v162 = vpack.c.b16 %v161, %v160
  %v180 = vunpack.c.l.b16 %v29
  %v181 = vunpack.c.l.b16 %v30
  %v182 = vunpack.c.l.b16 %v31
  %v183 = vunpack.c.l.b16 %v32
  %v184 = vunpack.c.l.b16 %v33
  %v185 = vunpack.c.l.b16 %v34
  %v186 = vunpack.c.l.b16 %v35
  %v187 = vunpack.c.l.b16 %v36
  %v188 = vunpack.c.l.b16 %v37
  %v189 = vunpack.c.l.b16 %v38
  %v190 = vunpack.c.l.b16 %v39
  %v191 = vunpack.c.l.b16 %v40
  %v192 = vunpack.c.l.b16 %v41
  %v193 = vunpack.c.l.b16 %v42
  %v194 = vunpack.c.l.b16 %v43
  %v195 = vunpack.c.l.b16 %v44
  %v196 = vpack.c.b16 %v181, %v180
  %v197 = vpack.c.b16 %v183, %v182
  %v198 = vpack.c.b16 %v185, %v184
  %v199 = vpack.c.b16 %v187, %v186
  %v200 = vpack.c.b16 %v189, %v188
  %v201 = vpack.c.b16 %v191, %v190
  %v202 = vpack.c.b16 %v193, %v192
  %v203 = vpack.c.b16 %v195, %v194
  %212 = vmatprep.subr.bf16.mxu0 0
  %213 = vmatpush1.bf16.msra.mxu0 %v196
  %214 = vmatprep.subr.bf16.mxu0 0
  %215 = vmatpush1.bf16.msra.mxu0 %v197
  %216 = vmatprep.subr.bf16.mxu0 0
  %217 = vmatpush1.bf16.msra.mxu0 %v198
  %218 = vmatprep.subr.bf16.mxu0 0
  %219 = vmatpush1.bf16.msra.mxu0 %v199
  %220 = vmatprep.subr.bf16.mxu0 0
  %221 = vmatpush1.bf16.msra.mxu0 %v200
  %222 = vmatprep.subr.bf16.mxu0 0
  %223 = vmatpush1.bf16.msra.mxu0 %v201
  %224 = vmatprep.subr.bf16.mxu0 0
  %225 = vmatpush1.bf16.msra.mxu0 %v202
  %226 = vmatprep.subr.bf16.mxu0 0
  %227 = vmatpush1.bf16.msra.mxu0 %v203
  %228 = vmatprep.subr.bf16.mxu0 0
  %229 = vmatpush1.bf16.msra.mxu0 0
  %230 = vmatprep.subr.bf16.mxu0 0
  %231 = vmatpush1.bf16.msra.mxu0 0
  %232 = vmatprep.subr.bf16.mxu0 0
  %233 = vmatpush1.bf16.msra.mxu0 0
  %234 = vmatprep.subr.bf16.mxu0 0
  %235 = vmatpush1.bf16.msra.mxu0 0
  %236 = vmatprep.subr.bf16.mxu0 0
  %237 = vmatpush1.bf16.msra.mxu0 0
  %238 = vmatprep.subr.bf16.mxu0 0
  %239 = vmatpush1.bf16.msra.mxu0 0
  %240 = vmatprep.subr.bf16.mxu0 0
  %241 = vmatpush1.bf16.msra.mxu0 0
  %242 = vmatprep.subr.bf16.mxu0 0
  %243 = vmatpush1.bf16.msra.mxu0 0
  %244 = vmatprep.mubr.bf16.mxu0 0
  %245 = vmatmul.mubr.bf16.gmra.mrb[0].mxu0 %v162
  %v246 = vpop.f32.mrb[0].mxu0
  %v247 = vadd.f32 %v152, %v246
  %v248 = vpop.f32.mrb[0].mxu0
  %v249 = vpop.f32.mrb[0].mxu0
  %v250 = vadd.f32 %v155, %v249
  %v251 = vpop.f32.mrb[0].mxu0
  %252 = vdwg.mxu0
  %v253 = vld [vmem:[%s4] sm:$0x1]
  %v255 = vlaneseq
  %v256 = vshrl.u32 %v255, 7
  %v257 = vsub.s32 0, %v256
  %v258 = vrot.slane %v253, %v257
  %v260 = vadd.f32 %v247, %v258
  %v261 = vadd.f32 %v250, %v258
  %v262 = vmax.f32 %v260, 0.0
  %v263 = vmax.f32 %v261, 0.0
  %v264 = vpack.c.bf16 %v263, %v262
  %v265 = vld [vmem:[%s5] sm:$0xf]
  %v266 = vld [vmem:[%s5 + $0x4] sm:$0xf]
  %v267 = vld [vmem:[%s5 + $0x8] sm:$0xf]
  %v268 = vld [vmem:[%s5 + $0xc] sm:$0xf]
  %v269 = vld [vmem:[%s5 + $0x10] sm:$0xf]
  %v270 = vld [vmem:[%s5 + $0x14] sm:$0xf]
  %v271 = vld [vmem:[%s5 + $0x18] sm:$0xf]
  %v272 = vld [vmem:[%s5 + $0x1c] sm:$0xf]
  %v273 = vld [vmem:[%s5 + $0x20] sm:$0xf]
  %v274 = vld [vmem:[%s5 + $0x24] sm:$0xf]
  %v275 = vld [vmem:[%s5 + $0x28] sm:$0xf]
  %v276 = vld [vmem:[%s5 + $0x2c] sm:$0xf]
  %v277 = vld [vmem:[%s5 + $0x30] sm:$0xf]
  %v278 = vld [vmem:[%s5 + $0x34] sm:$0xf]
  %v279 = vld [vmem:[%s5 + $0x38] sm:$0xf]
  %v280 = vld [vmem:[%s5 + $0x3c] sm:$0xf]
  %v281 = vld [vmem:[%s6] sm:$0x1]
  %v283 = vlaneseq
  %v284 = vshrl.u32 %v283, 7
  %v285 = vsub.s32 0, %v284
  %v286 = vrot.slane %v281, %v285
  %v304 = vunpack.c.l.b16 %v265
  %v305 = vunpack.c.l.b16 %v266
  %v306 = vunpack.c.l.b16 %v267
  %v307 = vunpack.c.l.b16 %v268
  %v308 = vunpack.c.l.b16 %v269
  %v309 = vunpack.c.l.b16 %v270
  %v310 = vunpack.c.l.b16 %v271
  %v311 = vunpack.c.l.b16 %v272
  %v312 = vunpack.c.l.b16 %v273
  %v313 = vunpack.c.l.b16 %v274
  %v314 = vunpack.c.l.b16 %v275
  %v315 = vunpack.c.l.b16 %v276
  %v316 = vunpack.c.l.b16 %v277
  %v317 = vunpack.c.l.b16 %v278
  %v318 = vunpack.c.l.b16 %v279
  %v319 = vunpack.c.l.b16 %v280
  %v320 = vpack.c.b16 %v305, %v304
  %v321 = vpack.c.b16 %v307, %v306
  %v322 = vpack.c.b16 %v309, %v308
  %v323 = vpack.c.b16 %v311, %v310
  %v324 = vpack.c.b16 %v313, %v312
  %v325 = vpack.c.b16 %v315, %v314
  %v326 = vpack.c.b16 %v317, %v316
  %v327 = vpack.c.b16 %v319, %v318
  %336 = vmatprep.subr.bf16.mxu0 0
  %337 = vmatpush1.bf16.msra.mxu0 %v320
  %338 = vmatprep.subr.bf16.mxu0 0
  %339 = vmatpush1.bf16.msra.mxu0 %v321
  %340 = vmatprep.subr.bf16.mxu0 0
  %341 = vmatpush1.bf16.msra.mxu0 %v322
  %342 = vmatprep.subr.bf16.mxu0 0
  %343 = vmatpush1.bf16.msra.mxu0 %v323
  %344 = vmatprep.subr.bf16.mxu0 0
  %345 = vmatpush1.bf16.msra.mxu0 %v324
  %346 = vmatprep.subr.bf16.mxu0 0
  %347 = vmatpush1.bf16.msra.mxu0 %v325
  %348 = vmatprep.subr.bf16.mxu0 0
  %349 = vmatpush1.bf16.msra.mxu0 %v326
  %350 = vmatprep.subr.bf16.mxu0 0
  %351 = vmatpush1.bf16.msra.mxu0 %v327
  %352 = vmatprep.subr.bf16.mxu0 0
  %353 = vmatpush1.bf16.msra.mxu0 0
  %354 = vmatprep.subr.bf16.mxu0 0
  %355 = vmatpush1.bf16.msra.mxu0 0
  %356 = vmatprep.subr.bf16.mxu0 0
  %357 = vmatpush1.bf16.msra.mxu0 0
  %358 = vmatprep.subr.bf16.mxu0 0
  %359 = vmatpush1.bf16.msra.mxu0 0
  %360 = vmatprep.subr.bf16.mxu0 0
  %361 = vmatpush1.bf16.msra.mxu0 0
  %362 = vmatprep.subr.bf16.mxu0 0
  %363 = vmatpush1.bf16.msra.mxu0 0
  %364 = vmatprep.subr.bf16.mxu0 0
  %365 = vmatpush1.bf16.msra.mxu0 0
  %366 = vmatprep.subr.bf16.mxu0 0
  %367 = vmatpush1.bf16.msra.mxu0 0
  %368 = vmatprep.mubr.bf16.mxu0 0
  %369 = vmatmul.mubr.bf16.gmra.mrb[0].mxu0 %v264
  %v370 = vpop.f32.mrb[0].mxu0
  %v371 = vadd.f32 %v286, %v370
  %v372 = vpop.f32.mrb[0].mxu0
  %v373 = vpop.f32.mrb[0].mxu0
  %v374 = vadd.f32 %v286, %v373
  %v375 = vpop.f32.mrb[0].mxu0
  %376 = vdwg.mxu0
  %v377 = vpack.c.bf16 %v374, %v371
  %v379 = vunpack.c.l.b16 %v377
  %v380 = vunpack.c.h.b16 %v377
  %v381 = vpack.c.b16 %v379, %v379
  %v382 = vpack.c.b16 %v380, %v380
  %385 = vst [vmem:[%s7] sm:$0xf] %v381
  %386 = vst [vmem:[%s7 + $0x4] sm:$0xf] %v382
  // Predicated region
  $region30: #{mpgnn_forward.8} parent=0 // pred_check
    _
  $region31: #{mpgnn_forward.8} parent=0 // pred_check_branch
    %388 = sbr.rel (0) target = $region33
  $region32: #{mpgnn_forward.8} parent=0 // pred_region
    _
  $region33: #{mpgnn_forward.8} parent=0 // pred_fallthru
    _
  // Predicated region
  $region34: #{mpgnn_forward.8} parent=0 // pred_check
    _
  $region35: #{mpgnn_forward.8} parent=0 // pred_check_branch
    %390 = sbr.rel (0) target = $region37
  $region36: #{mpgnn_forward.8} parent=0 // pred_region
    _
  $region37: #{mpgnn_forward.8} parent=0 // pred_fallthru
    _

// kernel: mpgnn_forward.6
$region0: #{mpgnn_forward.6}
  #allocation0 [shape = 'u32[]', space=smem, size = 0x4, offset = 0x4, fixed_abs, tag = 'smem constant byte address 0x4 - core index']
  #allocation1 [shape = 'u32[144,128]{1,0:T(1,128)}', space=vmem, size = 0x12000, scoped, tag = 'internal scratch']
  %s0 = inlined_call_operand.vmem [shape: bf16[128,128], index: 0, kind: input, shape index: {}]
  %s1 = inlined_call_operand.vmem [shape: bf16[128,128], index: 1, kind: input, shape index: {}]
  %s2 = inlined_call_operand.vmem [shape: bf16[128,128], index: 2, kind: input, shape index: {}]
  %s3 = inlined_call_operand.vmem [shape: bf16[128,128], index: 3, kind: input, shape index: {}]
  %s4 = inlined_call_operand.vmem [shape: bf16[128,128], index: 4, kind: input, shape index: {}]
  %s5 = inlined_call_operand.vmem [shape: bf16[128,128], index: 5, kind: input, shape index: {}]
  %s6 = inlined_call_operand.vmem [shape: f32[1,128], index: 6, kind: input, shape index: {}]
  %s7 = inlined_call_operand.vmem [shape: bf16[128,128], index: 7, kind: input, shape index: {}]
  %s8 = inlined_call_operand.vmem [shape: f32[1,128], index: 8, kind: input, shape index: {}]
  %s9 = inlined_call_operand.vmem [shape: bf16[128,128], index: 9, kind: output, shape index: {}]
  %s10 = sld [smem:[#allocation0]]
  $region46: #{mpgnn_forward.6} parent=0
    _
  %s12 = ssub.s32 1, %s10
  %s13 = scalar_select 0, %s12, %s10
  // Predicated region
  $region2: #{mpgnn_forward.6} parent=0 // pred_check
    _
  $region3: #{mpgnn_forward.6} parent=0 // pred_check_branch
    %15 = sbr.rel (0) target = $region5
  $region4: #{mpgnn_forward.6} parent=0 // pred_region
    _
  $region5: #{mpgnn_forward.6} parent=0 // pred_fallthru
    _
  // Predicated region
  $region6: #{mpgnn_forward.6} parent=0 // pred_check
    _
  $region7: #{mpgnn_forward.6} parent=0 // pred_check_branch
    %17 = sbr.rel (0) target = $region9
  $region8: #{mpgnn_forward.6} parent=0 // pred_region
    _
  $region9: #{mpgnn_forward.6} parent=0 // pred_fallthru
    _
  // Predicated region
  $region10: #{mpgnn_forward.6} parent=0 // pred_check
    _
  $region11: #{mpgnn_forward.6} parent=0 // pred_check_branch
    %19 = sbr.rel (0) target = $region13
  $region12: #{mpgnn_forward.6} parent=0 // pred_region
    _
  $region13: #{mpgnn_forward.6} parent=0 // pred_fallthru
    _
  // Predicated region
  $region14: #{mpgnn_forward.6} parent=0 // pred_check
    _
  $region15: #{mpgnn_forward.6} parent=0 // pred_check_branch
    %21 = sbr.rel (0) target = $region17
  $region16: #{mpgnn_forward.6} parent=0 // pred_region
    _
  $region17: #{mpgnn_forward.6} parent=0 // pred_fallthru
    _
  // Predicated region
  $region18: #{mpgnn_forward.6} parent=0 // pred_check
    _
  $region19: #{mpgnn_forward.6} parent=0 // pred_check_branch
    %23 = sbr.rel (0) target = $region21
  $region20: #{mpgnn_forward.6} parent=0 // pred_region
    _
  $region21: #{mpgnn_forward.6} parent=0 // pred_fallthru
    _
  // Predicated region
  $region22: #{mpgnn_forward.6} parent=0 // pred_check
    _
  $region23: #{mpgnn_forward.6} parent=0 // pred_check_branch
    %25 = sbr.rel (0) target = $region25
  $region24: #{mpgnn_forward.6} parent=0 // pred_region
    _
  $region25: #{mpgnn_forward.6} parent=0 // pred_fallthru
    _
  // Predicated region
  $region26: #{mpgnn_forward.6} parent=0 // pred_check
    _
  $region27: #{mpgnn_forward.6} parent=0 // pred_check_branch
    %27 = sbr.rel (0) target = $region29
  $region28: #{mpgnn_forward.6} parent=0 // pred_region
    _
  $region29: #{mpgnn_forward.6} parent=0 // pred_fallthru
    _
  // Predicated region
  $region30: #{mpgnn_forward.6} parent=0 // pred_check
    _
  $region31: #{mpgnn_forward.6} parent=0 // pred_check_branch
    %29 = sbr.rel (0) target = $region33
  $region32: #{mpgnn_forward.6} parent=0 // pred_region
    _
  $region33: #{mpgnn_forward.6} parent=0 // pred_fallthru
    _
  // Predicated region
  $region34: #{mpgnn_forward.6} parent=0 // pred_check
    _
  $region35: #{mpgnn_forward.6} parent=0 // pred_check_branch
    %31 = sbr.rel (0) target = $region37
  $region36: #{mpgnn_forward.6} parent=0 // pred_region
    _
  $region37: #{mpgnn_forward.6} parent=0 // pred_fallthru
    _
  %v33 = vld [vmem:[%s0] sm:$0xf]
  %v34 = vld [vmem:[%s0 + $0x4] sm:$0xf]
  %v35 = vld [vmem:[%s0 + $0x8] sm:$0xf]
  %v36 = vld [vmem:[%s0 + $0xc] sm:$0xf]
  %v37 = vld [vmem:[%s0 + $0x10] sm:$0xf]
  %v38 = vld [vmem:[%s0 + $0x14] sm:$0xf]
  %v39 = vld [vmem:[%s0 + $0x18] sm:$0xf]
  %v40 = vld [vmem:[%s0 + $0x1c] sm:$0xf]
  %v41 = vld [vmem:[%s0 + $0x20] sm:$0xf]
  %v42 = vld [vmem:[%s0 + $0x24] sm:$0xf]
  %v43 = vld [vmem:[%s0 + $0x28] sm:$0xf]
  %v44 = vld [vmem:[%s0 + $0x2c] sm:$0xf]
  %v45 = vld [vmem:[%s0 + $0x30] sm:$0xf]
  %v46 = vld [vmem:[%s0 + $0x34] sm:$0xf]
  %v47 = vld [vmem:[%s0 + $0x38] sm:$0xf]
  %v48 = vld [vmem:[%s0 + $0x3c] sm:$0xf]
  %v49 = vld [vmem:[%s3] sm:$0xf]
  %v50 = vld [vmem:[%s3 + $0x4] sm:$0xf]
  %v51 = vld [vmem:[%s3 + $0x8] sm:$0xf]
  %v52 = vld [vmem:[%s3 + $0xc] sm:$0xf]
  %v53 = vld [vmem:[%s3 + $0x10] sm:$0xf]
  %v54 = vld [vmem:[%s3 + $0x14] sm:$0xf]
  %v55 = vld [vmem:[%s3 + $0x18] sm:$0xf]
  %v56 = vld [vmem:[%s3 + $0x1c] sm:$0xf]
  %v57 = vld [vmem:[%s3 + $0x20] sm:$0xf]
  %v58 = vld [vmem:[%s3 + $0x24] sm:$0xf]
  %v59 = vld [vmem:[%s3 + $0x28] sm:$0xf]
  %v60 = vld [vmem:[%s3 + $0x2c] sm:$0xf]
  %v61 = vld [vmem:[%s3 + $0x30] sm:$0xf]
  %v62 = vld [vmem:[%s3 + $0x34] sm:$0xf]
  %v63 = vld [vmem:[%s3 + $0x38] sm:$0xf]
  %v64 = vld [vmem:[%s3 + $0x3c] sm:$0xf]
  %v65 = vld [vmem:[%s1] sm:$0xf]
  %v66 = vld [vmem:[%s1 + $0x4] sm:$0xf]
  %v67 = vld [vmem:[%s1 + $0x8] sm:$0xf]
  %v68 = vld [vmem:[%s1 + $0xc] sm:$0xf]
  %v69 = vld [vmem:[%s1 + $0x10] sm:$0xf]
  %v70 = vld [vmem:[%s1 + $0x14] sm:$0xf]
  %v71 = vld [vmem:[%s1 + $0x18] sm:$0xf]
  %v72 = vld [vmem:[%s1 + $0x1c] sm:$0xf]
  %v73 = vld [vmem:[%s1 + $0x20] sm:$0xf]
  %v74 = vld [vmem:[%s1 + $0x24] sm:$0xf]
  %v75 = vld [vmem:[%s1 + $0x28] sm:$0xf]
  %v76 = vld [vmem:[%s1 + $0x2c] sm:$0xf]
  %v77 = vld [vmem:[%s1 + $0x30] sm:$0xf]
  %v78 = vld [vmem:[%s1 + $0x34] sm:$0xf]
  %v79 = vld [vmem:[%s1 + $0x38] sm:$0xf]
  %v80 = vld [vmem:[%s1 + $0x3c] sm:$0xf]
  %v81 = vld [vmem:[%s4] sm:$0xf]
  %v82 = vld [vmem:[%s4 + $0x4] sm:$0xf]
  %v83 = vld [vmem:[%s4 + $0x8] sm:$0xf]
  %v84 = vld [vmem:[%s4 + $0xc] sm:$0xf]
  %v85 = vld [vmem:[%s4 + $0x10] sm:$0xf]
  %v86 = vld [vmem:[%s4 + $0x14] sm:$0xf]
  %v87 = vld [vmem:[%s4 + $0x18] sm:$0xf]
  %v88 = vld [vmem:[%s4 + $0x1c] sm:$0xf]
  %v89 = vld [vmem:[%s4 + $0x20] sm:$0xf]
  %v90 = vld [vmem:[%s4 + $0x24] sm:$0xf]
  %v91 = vld [vmem:[%s4 + $0x28] sm:$0xf]
  %v92 = vld [vmem:[%s4 + $0x2c] sm:$0xf]
  %v93 = vld [vmem:[%s4 + $0x30] sm:$0xf]
  %v94 = vld [vmem:[%s4 + $0x34] sm:$0xf]
  %v95 = vld [vmem:[%s4 + $0x38] sm:$0xf]
  %v96 = vld [vmem:[%s4 + $0x3c] sm:$0xf]
  %v113 = vunpack.c.l.b16 %v65
  %v114 = vunpack.c.l.b16 %v66
  %v115 = vunpack.c.l.b16 %v67
  %v116 = vunpack.c.l.b16 %v68
  %v117 = vunpack.c.l.b16 %v69
  %v118 = vunpack.c.l.b16 %v70
  %v119 = vunpack.c.l.b16 %v71
  %v120 = vunpack.c.l.b16 %v72
  %v121 = vunpack.c.l.b16 %v73
  %v122 = vunpack.c.l.b16 %v74
  %v123 = vunpack.c.l.b16 %v75
  %v124 = vunpack.c.l.b16 %v76
  %v125 = vunpack.c.l.b16 %v77
  %v126 = vunpack.c.l.b16 %v78
  %v127 = vunpack.c.l.b16 %v79
  %v128 = vunpack.c.l.b16 %v80
  %v129 = vpack.c.b16 %v114, %v113
  %v130 = vpack.c.b16 %v116, %v115
  %v131 = vpack.c.b16 %v118, %v117
  %v132 = vpack.c.b16 %v120, %v119
  %v133 = vpack.c.b16 %v122, %v121
  %v134 = vpack.c.b16 %v124, %v123
  %v135 = vpack.c.b16 %v126, %v125
  %v136 = vpack.c.b16 %v128, %v127
  %v161 = vunpack.c.l.b16 %v81
  %v162 = vunpack.c.l.b16 %v82
  %v163 = vunpack.c.l.b16 %v83
  %v164 = vunpack.c.l.b16 %v84
  %v165 = vunpack.c.l.b16 %v85
  %v166 = vunpack.c.l.b16 %v86
  %v167 = vunpack.c.l.b16 %v87
  %v168 = vunpack.c.l.b16 %v88
  %v169 = vunpack.c.l.b16 %v89
  %v170 = vunpack.c.l.b16 %v90
  %v171 = vunpack.c.l.b16 %v91
  %v172 = vunpack.c.l.b16 %v92
  %v173 = vunpack.c.l.b16 %v93
  %v174 = vunpack.c.l.b16 %v94
  %v175 = vunpack.c.l.b16 %v95
  %v176 = vunpack.c.l.b16 %v96
  %v177 = vpack.c.b16 %v162, %v161
  %v178 = vpack.c.b16 %v164, %v163
  %v179 = vpack.c.b16 %v166, %v165
  %v180 = vpack.c.b16 %v168, %v167
  %v181 = vpack.c.b16 %v170, %v169
  %v182 = vpack.c.b16 %v172, %v171
  %v183 = vpack.c.b16 %v174, %v173
  %v184 = vpack.c.b16 %v176, %v175
  %193 = vmatprep.subr.bf16.mxu0 0
  %194 = vmatpush1.bf16.msra.mxu0 %v177
  %195 = vmatprep.subr.bf16.mxu0 0
  %196 = vmatpush1.bf16.msra.mxu0 %v178
  %197 = vmatprep.subr.bf16.mxu0 0
  %198 = vmatpush1.bf16.msra.mxu0 %v179
  %199 = vmatprep.subr.bf16.mxu0 0
  %200 = vmatpush1.bf16.msra.mxu0 %v180
  %201 = vmatprep.subr.bf16.mxu0 0
  %202 = vmatpush1.bf16.msra.mxu0 %v181
  %203 = vmatprep.subr.bf16.mxu0 0
  %204 = vmatpush1.bf16.msra.mxu0 %v182
  %205 = vmatprep.subr.bf16.mxu0 0
  %206 = vmatpush1.bf16.msra.mxu0 %v183
  %207 = vmatprep.subr.bf16.mxu0 0
  %208 = vmatpush1.bf16.msra.mxu0 %v184
  %209 = vmatprep.subr.bf16.mxu0 0
  %210 = vmatpush1.bf16.msra.mxu0 0
  %211 = vmatprep.subr.bf16.mxu0 0
  %212 = vmatpush1.bf16.msra.mxu0 0
  %213 = vmatprep.subr.bf16.mxu0 0
  %214 = vmatpush1.bf16.msra.mxu0 0
  %215 = vmatprep.subr.bf16.mxu0 0
  %216 = vmatpush1.bf16.msra.mxu0 0
  %217 = vmatprep.subr.bf16.mxu0 0
  %218 = vmatpush1.bf16.msra.mxu0 0
  %219 = vmatprep.subr.bf16.mxu0 0
  %220 = vmatpush1.bf16.msra.mxu0 0
  %221 = vmatprep.subr.bf16.mxu0 0
  %222 = vmatpush1.bf16.msra.mxu0 0
  %223 = vmatprep.subr.bf16.mxu0 0
  %224 = vmatpush1.bf16.msra.mxu0 0
  %225 = vmatprep.mubr.bf16.mxu0 0
  %226 = vmatmul.mubr.bf16.gmra.mrb[0].mxu0 %v129
  %v227 = vpop.f32.mrb[0].mxu0
  %v228 = vadd.f32 0.0, %v227
  %v229 = vpop.f32.mrb[0].mxu0
  %v230 = vpop.f32.mrb[0].mxu0
  %v231 = vadd.f32 0.0, %v230
  %v232 = vpop.f32.mrb[0].mxu0
  %233 = vmatprep.mubr.bf16.mxu0 0
  %234 = vmatmul.mubr.bf16.gmra.mrb[0].mxu0 %v130
  %v235 = vpop.f32.mrb[0].mxu0
  %v236 = vadd.f32 0.0, %v235
  %v237 = vpop.f32.mrb[0].mxu0
  %v238 = vpop.f32.mrb[0].mxu0
  %v239 = vadd.f32 0.0, %v238
  %v240 = vpop.f32.mrb[0].mxu0
  %241 = vmatprep.mubr.bf16.mxu0 0
  %242 = vmatmul.mubr.bf16.gmra.mrb[0].mxu0 %v131
  %v243 = vpop.f32.mrb[0].mxu0
  %v244 = vadd.f32 0.0, %v243
  %v245 = vpop.f32.mrb[0].mxu0
  %v246 = vpop.f32.mrb[0].mxu0
  %v247 = vadd.f32 0.0, %v246
  %v248 = vpop.f32.mrb[0].mxu0
  %249 = vmatprep.mubr.bf16.mxu0 0
  %250 = vmatmul.mubr.bf16.gmra.mrb[0].mxu0 %v132
  %v251 = vpop.f32.mrb[0].mxu0
  %v252 = vadd.f32 0.0, %v251
  %v253 = vpop.f32.mrb[0].mxu0
  %v254 = vpop.f32.mrb[0].mxu0
  %v255 = vadd.f32 0.0, %v254
  %v256 = vpop.f32.mrb[0].mxu0
  %257 = vmatprep.mubr.bf16.mxu0 0
  %258 = vmatmul.mubr.bf16.gmra.mrb[0].mxu0 %v133
  %v259 = vpop.f32.mrb[0].mxu0
  %v260 = vadd.f32 0.0, %v259
  %v261 = vpop.f32.mrb[0].mxu0
  %v262 = vpop.f32.mrb[0].mxu0
  %v263 = vadd.f32 0.0, %v262
  %v264 = vpop.f32.mrb[0].mxu0
  %265 = vmatprep.mubr.bf16.mxu0 0
  %266 = vmatmul.mubr.bf16.gmra.mrb[0].mxu0 %v134
  %v267 = vpop.f32.mrb[0].mxu0
  %v268 = vadd.f32 0.0, %v267
  %v269 = vpop.f32.mrb[0].mxu0
  %v270 = vpop.f32.mrb[0].mxu0
  %v271 = vadd.f32 0.0, %v270
  %v272 = vpop.f32.mrb[0].mxu0
  %273 = vmatprep.mubr.bf16.mxu0 0
  %274 = vmatmul.mubr.bf16.gmra.mrb[0].mxu0 %v135
  %v275 = vpop.f32.mrb[0].mxu0
  %v276 = vadd.f32 0.0, %v275
  %v277 = vpop.f32.mrb[0].mxu0
  %v278 = vpop.f32.mrb[0].mxu0
  %v279 = vadd.f32 0.0, %v278
  %v280 = vpop.f32.mrb[0].mxu0
  %281 = vmatprep.mubr.bf16.mxu0 0
  %282 = vmatmul.mubr.bf16.gmra.mrb[0].mxu0 %v136
  %v283 = vpop.f32.mrb[0].mxu0
  %v284 = vadd.f32 0.0, %v283
  %v285 = vpop.f32.mrb[0].mxu0
  %v286 = vpop.f32.mrb[0].mxu0
  %v287 = vadd.f32 0.0, %v286
  %v288 = vpop.f32.mrb[0].mxu0
  %289 = vdwg.mxu0
  %v306 = vunpack.c.l.b16 %v33
  %v307 = vunpack.c.l.b16 %v34
  %v308 = vunpack.c.l.b16 %v35
  %v309 = vunpack.c.l.b16 %v36
  %v310 = vunpack.c.l.b16 %v37
  %v311 = vunpack.c.l.b16 %v38
  %v312 = vunpack.c.l.b16 %v39
  %v313 = vunpack.c.l.b16 %v40
  %v314 = vunpack.c.l.b16 %v41
  %v315 = vunpack.c.l.b16 %v42
  %v316 = vunpack.c.l.b16 %v43
  %v317 = vunpack.c.l.b16 %v44
  %v318 = vunpack.c.l.b16 %v45
  %v319 = vunpack.c.l.b16 %v46
  %v320 = vunpack.c.l.b16 %v47
  %v321 = vunpack.c.l.b16 %v48
  %v322 = vpack.c.b16 %v307, %v306
  %v323 = vpack.c.b16 %v309, %v308
  %v324 = vpack.c.b16 %v311, %v310
  %v325 = vpack.c.b16 %v313, %v312
  %v326 = vpack.c.b16 %v315, %v314
  %v327 = vpack.c.b16 %v317, %v316
  %v328 = vpack.c.b16 %v319, %v318
  %v329 = vpack.c.b16 %v321, %v320
  %v354 = vunpack.c.l.b16 %v49
  %v355 = vunpack.c.l.b16 %v50
  %v356 = vunpack.c.l.b16 %v51
  %v357 = vunpack.c.l.b16 %v52
  %v358 = vunpack.c.l.b16 %v53
  %v359 = vunpack.c.l.b16 %v54
  %v360 = vunpack.c.l.b16 %v55
  %v361 = vunpack.c.l.b16 %v56
  %v362 = vunpack.c.l.b16 %v57
  %v363 = vunpack.c.l.b16 %v58
  %v364 = vunpack.c.l.b16 %v59
  %v365 = vunpack.c.l.b16 %v60
  %v366 = vunpack.c.l.b16 %v61
  %v367 = vunpack.c.l.b16 %v62
  %v368 = vunpack.c.l.b16 %v63
  %v369 = vunpack.c.l.b16 %v64
  %v370 = vpack.c.b16 %v355, %v354
  %v371 = vpack.c.b16 %v357, %v356
  %v372 = vpack.c.b16 %v359, %v358
  %v373 = vpack.c.b16 %v361, %v360
  %v374 = vpack.c.b16 %v363, %v362
  %v375 = vpack.c.b16 %v365, %v364
  %v376 = vpack.c.b16 %v367, %v366
  %v377 = vpack.c.b16 %v369, %v368
  %386 = vmatprep.subr.bf16.mxu0 0
  %387 = vmatpush1.bf16.msra.mxu0 %v370
  %388 = vmatprep.subr.bf16.mxu0 0
  %389 = vmatpush1.bf16.msra.mxu0 %v371
  %390 = vmatprep.subr.bf16.mxu0 0
  %391 = vmatpush1.bf16.msra.mxu0 %v372
  %392 = vmatprep.subr.bf16.mxu0 0
  %393 = vmatpush1.bf16.msra.mxu0 %v373
  %394 = vmatprep.subr.bf16.mxu0 0
  %395 = vmatpush1.bf16.msra.mxu0 %v374
  %396 = vmatprep.subr.bf16.mxu0 0
  %397 = vmatpush1.bf16.msra.mxu0 %v375
  %398 = vmatprep.subr.bf16.mxu0 0
  %399 = vmatpush1.bf16.msra.mxu0 %v376
  %400 = vmatprep.subr.bf16.mxu0 0
  %401 = vmatpush1.bf16.msra.mxu0 %v377
  %402 = vmatprep.subr.bf16.mxu0 0
  %403 = vmatpush1.bf16.msra.mxu0 0
  %404 = vmatprep.subr.bf16.mxu0 0
  %405 = vmatpush1.bf16.msra.mxu0 0
  %406 = vmatprep.subr.bf16.mxu0 0
  %407 = vmatpush1.bf16.msra.mxu0 0
  %408 = vmatprep.subr.bf16.mxu0 0
  %409 = vmatpush1.bf16.msra.mxu0 0
  %410 = vmatprep.subr.bf16.mxu0 0
  %411 = vmatpush1.bf16.msra.mxu0 0
  %412 = vmatprep.subr.bf16.mxu0 0
  %413 = vmatpush1.bf16.msra.mxu0 0
  %414 = vmatprep.subr.bf16.mxu0 0
  %415 = vmatpush1.bf16.msra.mxu0 0
  %416 = vmatprep.subr.bf16.mxu0 0
  %417 = vmatpush1.bf16.msra.mxu0 0
  %418 = vmatprep.mubr.bf16.mxu0 0
  %419 = vmatmul.mubr.bf16.gmra.mrb[0].mxu0 %v322
  %v420 = vpop.f32.mrb[0].mxu0
  %v421 = vadd.f32 %v228, %v420
  %v422 = vpop.f32.mrb[0].mxu0
  %v423 = vpop.f32.mrb[0].mxu0
  %v424 = vadd.f32 %v231, %v423
  %v425 = vpop.f32.mrb[0].mxu0
  %426 = vmatprep.mubr.bf16.mxu0 0
  %427 = vmatmul.mubr.bf16.gmra.mrb[0].mxu0 %v323
  %v428 = vpop.f32.mrb[0].mxu0
  %v429 = vadd.f32 %v236, %v428
  %v430 = vpop.f32.mrb[0].mxu0
  %v431 = vpop.f32.mrb[0].mxu0
  %v432 = vadd.f32 %v239, %v431
  %v433 = vpop.f32.mrb[0].mxu0
  %434 = vmatprep.mubr.bf16.mxu0 0
  %435 = vmatmul.mubr.bf16.gmra.mrb[0].mxu0 %v324
  %v436 = vpop.f32.mrb[0].mxu0
  %v437 = vadd.f32 %v244, %v436
  %v438 = vpop.f32.mrb[0].mxu0
  %v439 = vpop.f32.mrb[0].mxu0
  %v440 = vadd.f32 %v247, %v439
  %v441 = vpop.f32.mrb[0].mxu0
  %442 = vmatprep.mubr.bf16.mxu0 0
  %443 = vmatmul.mubr.bf16.gmra.mrb[0].mxu0 %v325
  %v444 = vpop.f32.mrb[0].mxu0
  %v445 = vadd.f32 %v252, %v444
  %v446 = vpop.f32.mrb[0].mxu0
  %v447 = vpop.f32.mrb[0].mxu0
  %v448 = vadd.f32 %v255, %v447
  %v449 = vpop.f32.mrb[0].mxu0
  %450 = vmatprep.mubr.bf16.mxu0 0
  %451 = vmatmul.mubr.bf16.gmra.mrb[0].mxu0 %v326
  %v452 = vpop.f32.mrb[0].mxu0
  %v453 = vadd.f32 %v260, %v452
  %v454 = vpop.f32.mrb[0].mxu0
  %v455 = vpop.f32.mrb[0].mxu0
  %v456 = vadd.f32 %v263, %v455
  %v457 = vpop.f32.mrb[0].mxu0
  %458 = vmatprep.mubr.bf16.mxu0 0
  %459 = vmatmul.mubr.bf16.gmra.mrb[0].mxu0 %v327
  %v460 = vpop.f32.mrb[0].mxu0
  %v461 = vadd.f32 %v268, %v460
  %v462 = vpop.f32.mrb[0].mxu0
  %v463 = vpop.f32.mrb[0].mxu0
  %v464 = vadd.f32 %v271, %v463
  %v465 = vpop.f32.mrb[0].mxu0
  %466 = vmatprep.mubr.bf16.mxu0 0
  %467 = vmatmul.mubr.bf16.gmra.mrb[0].mxu0 %v328
  %v468 = vpop.f32.mrb[0].mxu0
  %v469 = vadd.f32 %v276, %v468
  %v470 = vpop.f32.mrb[0].mxu0
  %v471 = vpop.f32.mrb[0].mxu0
  %v472 = vadd.f32 %v279, %v471
  %v473 = vpop.f32.mrb[0].mxu0
  %474 = vmatprep.mubr.bf16.mxu0 0
  %475 = vmatmul.mubr.bf16.gmra.mrb[0].mxu0 %v329
  %v476 = vpop.f32.mrb[0].mxu0
  %v477 = vadd.f32 %v284, %v476
  %v478 = vpop.f32.mrb[0].mxu0
  %v479 = vpop.f32.mrb[0].mxu0
  %v480 = vadd.f32 %v287, %v479
  %v481 = vpop.f32.mrb[0].mxu0
  %482 = vdwg.mxu0
  %v483 = vld [vmem:[%s2] sm:$0xf]
  %v484 = vld [vmem:[%s2 + $0x4] sm:$0xf]
  %v485 = vld [vmem:[%s2 + $0x8] sm:$0xf]
  %v486 = vld [vmem:[%s2 + $0xc] sm:$0xf]
  %v487 = vld [vmem:[%s2 + $0x10] sm:$0xf]
  %v488 = vld [vmem:[%s2 + $0x14] sm:$0xf]
  %v489 = vld [vmem:[%s2 + $0x18] sm:$0xf]
  %v490 = vld [vmem:[%s2 + $0x1c] sm:$0xf]
  %v491 = vld [vmem:[%s2 + $0x20] sm:$0xf]
  %v492 = vld [vmem:[%s2 + $0x24] sm:$0xf]
  %v493 = vld [vmem:[%s2 + $0x28] sm:$0xf]
  %v494 = vld [vmem:[%s2 + $0x2c] sm:$0xf]
  %v495 = vld [vmem:[%s2 + $0x30] sm:$0xf]
  %v496 = vld [vmem:[%s2 + $0x34] sm:$0xf]
  %v497 = vld [vmem:[%s2 + $0x38] sm:$0xf]
  %v498 = vld [vmem:[%s2 + $0x3c] sm:$0xf]
  %v499 = vld [vmem:[%s5] sm:$0xf]
  %v500 = vld [vmem:[%s5 + $0x4] sm:$0xf]
  %v501 = vld [vmem:[%s5 + $0x8] sm:$0xf]
  %v502 = vld [vmem:[%s5 + $0xc] sm:$0xf]
  %v503 = vld [vmem:[%s5 + $0x10] sm:$0xf]
  %v504 = vld [vmem:[%s5 + $0x14] sm:$0xf]
  %v505 = vld [vmem:[%s5 + $0x18] sm:$0xf]
  %v506 = vld [vmem:[%s5 + $0x1c] sm:$0xf]
  %v507 = vld [vmem:[%s5 + $0x20] sm:$0xf]
  %v508 = vld [vmem:[%s5 + $0x24] sm:$0xf]
  %v509 = vld [vmem:[%s5 + $0x28] sm:$0xf]
  %v510 = vld [vmem:[%s5 + $0x2c] sm:$0xf]
  %v511 = vld [vmem:[%s5 + $0x30] sm:$0xf]
  %v512 = vld [vmem:[%s5 + $0x34] sm:$0xf]
  %v513 = vld [vmem:[%s5 + $0x38] sm:$0xf]
  %v514 = vld [vmem:[%s5 + $0x3c] sm:$0xf]
  %v531 = vunpack.c.l.b16 %v483
  %v532 = vunpack.c.l.b16 %v484
  %v533 = vunpack.c.l.b16 %v485
  %v534 = vunpack.c.l.b16 %v486
  %v535 = vunpack.c.l.b16 %v487
  %v536 = vunpack.c.l.b16 %v488
  %v537 = vunpack.c.l.b16 %v489
  %v538 = vunpack.c.l.b16 %v490
  %v539 = vunpack.c.l.b16 %v491
  %v540 = vunpack.c.l.b16 %v492
  %v541 = vunpack.c.l.b16 %v493
  %v542 = vunpack.c.l.b16 %v494
  %v543 = vunpack.c.l.b16 %v495
  %v544 = vunpack.c.l.b16 %v496
  %v545 = vunpack.c.l.b16 %v497
  %v546 = vunpack.c.l.b16 %v498
  %v547 = vpack.c.b16 %v532, %v531
  %v548 = vpack.c.b16 %v534, %v533
  %v549 = vpack.c.b16 %v536, %v535
  %v550 = vpack.c.b16 %v538, %v537
  %v551 = vpack.c.b16 %v540, %v539
  %v552 = vpack.c.b16 %v542, %v541
  %v553 = vpack.c.b16 %v544, %v543
  %v554 = vpack.c.b16 %v546, %v545
  %v579 = vunpack.c.l.b16 %v499
  %v580 = vunpack.c.l.b16 %v500
  %v581 = vunpack.c.l.b16 %v501
  %v582 = vunpack.c.l.b16 %v502
  %v583 = vunpack.c.l.b16 %v503
  %v584 = vunpack.c.l.b16 %v504
  %v585 = vunpack.c.l.b16 %v505
  %v586 = vunpack.c.l.b16 %v506
  %v587 = vunpack.c.l.b16 %v507
  %v588 = vunpack.c.l.b16 %v508
  %v589 = vunpack.c.l.b16 %v509
  %v590 = vunpack.c.l.b16 %v510
  %v591 = vunpack.c.l.b16 %v511
  %v592 = vunpack.c.l.b16 %v512
  %v593 = vunpack.c.l.b16 %v513
  %v594 = vunpack.c.l.b16 %v514
  %v595 = vpack.c.b16 %v580, %v579
  %v596 = vpack.c.b16 %v582, %v581
  %v597 = vpack.c.b16 %v584, %v583
  %v598 = vpack.c.b16 %v586, %v585
  %v599 = vpack.c.b16 %v588, %v587
  %v600 = vpack.c.b16 %v590, %v589
  %v601 = vpack.c.b16 %v592, %v591
  %v602 = vpack.c.b16 %v594, %v593
  %611 = vmatprep.subr.bf16.mxu0 0
  %612 = vmatpush1.bf16.msra.mxu0 %v595
  %613 = vmatprep.subr.bf16.mxu0 0
  %614 = vmatpush1.bf16.msra.mxu0 %v596
  %615 = vmatprep.subr.bf16.mxu0 0
  %616 = vmatpush1.bf16.msra.mxu0 %v597
  %617 = vmatprep.subr.bf16.mxu0 0
  %618 = vmatpush1.bf16.msra.mxu0 %v598
  %619 = vmatprep.subr.bf16.mxu0 0
  %620 = vmatpush1.bf16.msra.mxu0 %v599
  %621 = vmatprep.subr.bf16.mxu0 0
  %622 = vmatpush1.bf16.msra.mxu0 %v600
  %623 = vmatprep.subr.bf16.mxu0 0
  %624 = vmatpush1.bf16.msra.mxu0 %v601
  %625 = vmatprep.subr.bf16.mxu0 0
  %626 = vmatpush1.bf16.msra.mxu0 %v602
  %627 = vmatprep.subr.bf16.mxu0 0
  %628 = vmatpush1.bf16.msra.mxu0 0
  %629 = vmatprep.subr.bf16.mxu0 0
  %630 = vmatpush1.bf16.msra.mxu0 0
  %631 = vmatprep.subr.bf16.mxu0 0
  %632 = vmatpush1.bf16.msra.mxu0 0
  %633 = vmatprep.subr.bf16.mxu0 0
  %634 = vmatpush1.bf16.msra.mxu0 0
  %635 = vmatprep.subr.bf16.mxu0 0
  %636 = vmatpush1.bf16.msra.mxu0 0
  %637 = vmatprep.subr.bf16.mxu0 0
  %638 = vmatpush1.bf16.msra.mxu0 0
  %639 = vmatprep.subr.bf16.mxu0 0
  %640 = vmatpush1.bf16.msra.mxu0 0
  %641 = vmatprep.subr.bf16.mxu0 0
  %642 = vmatpush1.bf16.msra.mxu0 0
  %643 = vmatprep.mubr.bf16.mxu0 0
  %644 = vmatmul.mubr.bf16.gmra.mrb[0].mxu0 %v547
  %v645 = vpop.f32.mrb[0].mxu0
  %v646 = vadd.f32 0.0, %v645
  %v647 = vpop.f32.mrb[0].mxu0
  %v648 = vpop.f32.mrb[0].mxu0
  %v649 = vadd.f32 0.0, %v648
  %v650 = vpop.f32.mrb[0].mxu0
  %651 = vmatprep.mubr.bf16.mxu0 0
  %652 = vmatmul.mubr.bf16.gmra.mrb[0].mxu0 %v548
  %v653 = vpop.f32.mrb[0].mxu0
  %v654 = vadd.f32 0.0, %v653
  %v655 = vpop.f32.mrb[0].mxu0
  %v656 = vpop.f32.mrb[0].mxu0
  %v657 = vadd.f32 0.0, %v656
  %v658 = vpop.f32.mrb[0].mxu0
  %659 = vmatprep.mubr.bf16.mxu0 0
  %660 = vmatmul.mubr.bf16.gmra.mrb[0].mxu0 %v549
  %v661 = vpop.f32.mrb[0].mxu0
  %v662 = vadd.f32 0.0, %v661
  %v663 = vpop.f32.mrb[0].mxu0
  %v664 = vpop.f32.mrb[0].mxu0
  %v665 = vadd.f32 0.0, %v664
  %v666 = vpop.f32.mrb[0].mxu0
  %667 = vmatprep.mubr.bf16.mxu0 0
  %668 = vmatmul.mubr.bf16.gmra.mrb[0].mxu0 %v550
  %v669 = vpop.f32.mrb[0].mxu0
  %v670 = vadd.f32 0.0, %v669
  %v671 = vpop.f32.mrb[0].mxu0
  %v672 = vpop.f32.mrb[0].mxu0
  %v673 = vadd.f32 0.0, %v672
  %v674 = vpop.f32.mrb[0].mxu0
  %675 = vmatprep.mubr.bf16.mxu0 0
  %676 = vmatmul.mubr.bf16.gmra.mrb[0].mxu0 %v551
  %v677 = vpop.f32.mrb[0].mxu0
  %v678 = vadd.f32 0.0, %v677
  %v679 = vpop.f32.mrb[0].mxu0
  %v680 = vpop.f32.mrb[0].mxu0
  %v681 = vadd.f32 0.0, %v680
  %v682 = vpop.f32.mrb[0].mxu0
  %683 = vmatprep.mubr.bf16.mxu0 0
  %684 = vmatmul.mubr.bf16.gmra.mrb[0].mxu0 %v552
  %v685 = vpop.f32.mrb[0].mxu0
  %v686 = vadd.f32 0.0, %v685
  %v687 = vpop.f32.mrb[0].mxu0
  %v688 = vpop.f32.mrb[0].mxu0
  %v689 = vadd.f32 0.0, %v688
  %v690 = vpop.f32.mrb[0].mxu0
  %691 = vmatprep.mubr.bf16.mxu0 0
  %692 = vmatmul.mubr.bf16.gmra.mrb[0].mxu0 %v553
  %v693 = vpop.f32.mrb[0].mxu0
  %v694 = vadd.f32 0.0, %v693
  %v695 = vpop.f32.mrb[0].mxu0
  %v696 = vpop.f32.mrb[0].mxu0
  %v697 = vadd.f32 0.0, %v696
  %v698 = vpop.f32.mrb[0].mxu0
  %699 = vmatprep.mubr.bf16.mxu0 0
  %700 = vmatmul.mubr.bf16.gmra.mrb[0].mxu0 %v554
  %v701 = vpop.f32.mrb[0].mxu0
  %v702 = vadd.f32 0.0, %v701
  %v703 = vpop.f32.mrb[0].mxu0
  %v704 = vpop.f32.mrb[0].mxu0
  %v705 = vadd.f32 0.0, %v704
  %v706 = vpop.f32.mrb[0].mxu0
  %707 = vdwg.mxu0
  %v708 = vadd.f32 %v421, %v646
  %v709 = vadd.f32 %v424, %v649
  %v710 = vadd.f32 %v429, %v654
  %v711 = vadd.f32 %v432, %v657
  %v712 = vadd.f32 %v437, %v662
  %v713 = vadd.f32 %v440, %v665
  %v714 = vadd.f32 %v445, %v670
  %v715 = vadd.f32 %v448, %v673
  %v716 = vadd.f32 %v453, %v678
  %v717 = vadd.f32 %v456, %v681
  %v718 = vadd.f32 %v461, %v686
  %v719 = vadd.f32 %v464, %v689
  %v720 = vadd.f32 %v469, %v694
  %v721 = vadd.f32 %v472, %v697
  %v722 = vadd.f32 %v477, %v702
  %v723 = vadd.f32 %v480, %v705
  %v724 = vld [vmem:[%s6] sm:$0x1]
  %v726 = vlaneseq
  %v727 = vshrl.u32 %v726, 7
  %v728 = vsub.s32 0, %v727
  %v729 = vrot.slane %v724, %v728
  %v731 = vadd.f32 %v708, %v729
  %v732 = vadd.f32 %v709, %v729
  %v733 = vadd.f32 %v710, %v729
  %v734 = vadd.f32 %v711, %v729
  %v735 = vadd.f32 %v712, %v729
  %v736 = vadd.f32 %v713, %v729
  %v737 = vadd.f32 %v714, %v729
  %v738 = vadd.f32 %v715, %v729
  %v739 = vadd.f32 %v716, %v729
  %v740 = vadd.f32 %v717, %v729
  %v741 = vadd.f32 %v718, %v729
  %v742 = vadd.f32 %v719, %v729
  %v743 = vadd.f32 %v720, %v729
  %v744 = vadd.f32 %v721, %v729
  %v745 = vadd.f32 %v722, %v729
  %v746 = vadd.f32 %v723, %v729
  %v747 = vmax.f32 %v731, 0.0
  %v748 = vmax.f32 %v732, 0.0
  %v749 = vmax.f32 %v733, 0.0
  %v750 = vmax.f32 %v734, 0.0
  %v751 = vmax.f32 %v735, 0.0
  %v752 = vmax.f32 %v736, 0.0
  %v753 = vmax.f32 %v737, 0.0
  %v754 = vmax.f32 %v738, 0.0
  %v755 = vmax.f32 %v739, 0.0
  %v756 = vmax.f32 %v740, 0.0
  %v757 = vmax.f32 %v741, 0.0
  %v758 = vmax.f32 %v742, 0.0
  %v759 = vmax.f32 %v743, 0.0
  %v760 = vmax.f32 %v744, 0.0
  %v761 = vmax.f32 %v745, 0.0
  %v762 = vmax.f32 %v746, 0.0
  %v763 = vpack.c.bf16 %v748, %v747
  %v764 = vpack.c.bf16 %v750, %v749
  %v765 = vpack.c.bf16 %v752, %v751
  %v766 = vpack.c.bf16 %v754, %v753
  %v767 = vpack.c.bf16 %v756, %v755
  %v768 = vpack.c.bf16 %v758, %v757
  %v769 = vpack.c.bf16 %v760, %v759
  %v770 = vpack.c.bf16 %v762, %v761
  %v771 = vld [vmem:[%s7] sm:$0xf]
  %v772 = vld [vmem:[%s7 + $0x4] sm:$0xf]
  %v773 = vld [vmem:[%s7 + $0x8] sm:$0xf]
  %v774 = vld [vmem:[%s7 + $0xc] sm:$0xf]
  %v775 = vld [vmem:[%s7 + $0x10] sm:$0xf]
  %v776 = vld [vmem:[%s7 + $0x14] sm:$0xf]
  %v777 = vld [vmem:[%s7 + $0x18] sm:$0xf]
  %v778 = vld [vmem:[%s7 + $0x1c] sm:$0xf]
  %v779 = vld [vmem:[%s7 + $0x20] sm:$0xf]
  %v780 = vld [vmem:[%s7 + $0x24] sm:$0xf]
  %v781 = vld [vmem:[%s7 + $0x28] sm:$0xf]
  %v782 = vld [vmem:[%s7 + $0x2c] sm:$0xf]
  %v783 = vld [vmem:[%s7 + $0x30] sm:$0xf]
  %v784 = vld [vmem:[%s7 + $0x34] sm:$0xf]
  %v785 = vld [vmem:[%s7 + $0x38] sm:$0xf]
  %v786 = vld [vmem:[%s7 + $0x3c] sm:$0xf]
  %v787 = vld [vmem:[%s8] sm:$0x1]
  %v789 = vlaneseq
  %v790 = vshrl.u32 %v789, 7
  %v791 = vsub.s32 0, %v790
  %v792 = vrot.slane %v787, %v791
  %v810 = vunpack.c.l.b16 %v771
  %v811 = vunpack.c.l.b16 %v772
  %v812 = vunpack.c.l.b16 %v773
  %v813 = vunpack.c.l.b16 %v774
  %v814 = vunpack.c.l.b16 %v775
  %v815 = vunpack.c.l.b16 %v776
  %v816 = vunpack.c.l.b16 %v777
  %v817 = vunpack.c.l.b16 %v778
  %v818 = vunpack.c.l.b16 %v779
  %v819 = vunpack.c.l.b16 %v780
  %v820 = vunpack.c.l.b16 %v781
  %v821 = vunpack.c.l.b16 %v782
  %v822 = vunpack.c.l.b16 %v783
  %v823 = vunpack.c.l.b16 %v784
  %v824 = vunpack.c.l.b16 %v785
  %v825 = vunpack.c.l.b16 %v786
  %v826 = vpack.c.b16 %v811, %v810
  %v827 = vpack.c.b16 %v813, %v812
  %v828 = vpack.c.b16 %v815, %v814
  %v829 = vpack.c.b16 %v817, %v816
  %v830 = vpack.c.b16 %v819, %v818
  %v831 = vpack.c.b16 %v821, %v820
  %v832 = vpack.c.b16 %v823, %v822
  %v833 = vpack.c.b16 %v825, %v824
  %842 = vmatprep.subr.bf16.mxu0 0
  %843 = vmatpush1.bf16.msra.mxu0 %v826
  %844 = vmatprep.subr.bf16.mxu0 0
  %845 = vmatpush1.bf16.msra.mxu0 %v827
  %846 = vmatprep.subr.bf16.mxu0 0
  %847 = vmatpush1.bf16.msra.mxu0 %v828
  %848 = vmatprep.subr.bf16.mxu0 0
  %849 = vmatpush1.bf16.msra.mxu0 %v829
  %850 = vmatprep.subr.bf16.mxu0 0
  %851 = vmatpush1.bf16.msra.mxu0 %v830
  %852 = vmatprep.subr.bf16.mxu0 0
  %853 = vmatpush1.bf16.msra.mxu0 %v831
  %854 = vmatprep.subr.bf16.mxu0 0
  %855 = vmatpush1.bf16.msra.mxu0 %v832
  %856 = vmatprep.subr.bf16.mxu0 0
  %857 = vmatpush1.bf16.msra.mxu0 %v833
  %858 = vmatprep.subr.bf16.mxu0 0
  %859 = vmatpush1.bf16.msra.mxu0 0
  %860 = vmatprep.subr.bf16.mxu0 0
  %861 = vmatpush1.bf16.msra.mxu0 0
  %862 = vmatprep.subr.bf16.mxu0 0
  %863 = vmatpush1.bf16.msra.mxu0 0
  %864 = vmatprep.subr.bf16.mxu0 0
  %865 = vmatpush1.bf16.msra.mxu0 0
  %866 = vmatprep.subr.bf16.mxu0 0
  %867 = vmatpush1.bf16.msra.mxu0 0
  %868 = vmatprep.subr.bf16.mxu0 0
  %869 = vmatpush1.bf16.msra.mxu0 0
  %870 = vmatprep.subr.bf16.mxu0 0
  %871 = vmatpush1.bf16.msra.mxu0 0
  %872 = vmatprep.subr.bf16.mxu0 0
  %873 = vmatpush1.bf16.msra.mxu0 0
  %874 = vmatprep.mubr.bf16.mxu0 0
  %875 = vmatmul.mubr.bf16.gmra.mrb[0].mxu0 %v763
  %v876 = vpop.f32.mrb[0].mxu0
  %v877 = vadd.f32 %v792, %v876
  %v878 = vpop.f32.mrb[0].mxu0
  %v879 = vpop.f32.mrb[0].mxu0
  %v880 = vadd.f32 %v792, %v879
  %v881 = vpop.f32.mrb[0].mxu0
  %882 = vmatprep.mubr.bf16.mxu0 0
  %883 = vmatmul.mubr.bf16.gmra.mrb[0].mxu0 %v764
  %v884 = vpop.f32.mrb[0].mxu0
  %v885 = vadd.f32 %v792, %v884
  %v886 = vpop.f32.mrb[0].mxu0
  %v887 = vpop.f32.mrb[0].mxu0
  %v888 = vadd.f32 %v792, %v887
  %v889 = vpop.f32.mrb[0].mxu0
  %890 = vmatprep.mubr.bf16.mxu0 0
  %891 = vmatmul.mubr.bf16.gmra.mrb[0].mxu0 %v765
  %v892 = vpop.f32.mrb[0].mxu0
  %v893 = vadd.f32 %v792, %v892
  %v894 = vpop.f32.mrb[0].mxu0
  %v895 = vpop.f32.mrb[0].mxu0
  %v896 = vadd.f32 %v792, %v895
  %v897 = vpop.f32.mrb[0].mxu0
  %898 = vmatprep.mubr.bf16.mxu0 0
  %899 = vmatmul.mubr.bf16.gmra.mrb[0].mxu0 %v766
  %v900 = vpop.f32.mrb[0].mxu0
  %v901 = vadd.f32 %v792, %v900
  %v902 = vpop.f32.mrb[0].mxu0
  %v903 = vpop.f32.mrb[0].mxu0
  %v904 = vadd.f32 %v792, %v903
  %v905 = vpop.f32.mrb[0].mxu0
  %906 = vmatprep.mubr.bf16.mxu0 0
  %907 = vmatmul.mubr.bf16.gmra.mrb[0].mxu0 %v767
  %v908 = vpop.f32.mrb[0].mxu0
  %v909 = vadd.f32 %v792, %v908
  %v910 = vpop.f32.mrb[0].mxu0
  %v911 = vpop.f32.mrb[0].mxu0
  %v912 = vadd.f32 %v792, %v911
  %v913 = vpop.f32.mrb[0].mxu0
  %914 = vmatprep.mubr.bf16.mxu0 0
  %915 = vmatmul.mubr.bf16.gmra.mrb[0].mxu0 %v768
  %v916 = vpop.f32.mrb[0].mxu0
  %v917 = vadd.f32 %v792, %v916
  %v918 = vpop.f32.mrb[0].mxu0
  %v919 = vpop.f32.mrb[0].mxu0
  %v920 = vadd.f32 %v792, %v919
  %v921 = vpop.f32.mrb[0].mxu0
  %922 = vmatprep.mubr.bf16.mxu0 0
  %923 = vmatmul.mubr.bf16.gmra.mrb[0].mxu0 %v769
  %v924 = vpop.f32.mrb[0].mxu0
  %v925 = vadd.f32 %v792, %v924
  %v926 = vpop.f32.mrb[0].mxu0
  %v927 = vpop.f32.mrb[0].mxu0
  %v928 = vadd.f32 %v792, %v927
  %v929 = vpop.f32.mrb[0].mxu0
  %930 = vmatprep.mubr.bf16.mxu0 0
  %931 = vmatmul.mubr.bf16.gmra.mrb[0].mxu0 %v770
  %v932 = vpop.f32.mrb[0].mxu0
  %v933 = vadd.f32 %v792, %v932
  %v934 = vpop.f32.mrb[0].mxu0
  %v935 = vpop.f32.mrb[0].mxu0
  %v936 = vadd.f32 %v792, %v935
  %v937 = vpop.f32.mrb[0].mxu0
  %938 = vdwg.mxu0
  %v939 = vpack.c.bf16 %v880, %v877
  %v940 = vpack.c.bf16 %v888, %v885
  %v941 = vpack.c.bf16 %v896, %v893
  %v942 = vpack.c.bf16 %v904, %v901
  %v943 = vpack.c.bf16 %v912, %v909
  %v944 = vpack.c.bf16 %v920, %v917
  %v945 = vpack.c.bf16 %v928, %v925
  %v946 = vpack.c.bf16 %v936, %v933
  %v955 = vunpack.c.l.b16 %v939
  %v956 = vunpack.c.h.b16 %v939
  %v957 = vunpack.c.l.b16 %v940
  %v958 = vunpack.c.h.b16 %v940
  %v959 = vunpack.c.l.b16 %v941
  %v960 = vunpack.c.h.b16 %v941
  %v961 = vunpack.c.l.b16 %v942
  %v962 = vunpack.c.h.b16 %v942
  %v963 = vunpack.c.l.b16 %v943
  %v964 = vunpack.c.h.b16 %v943
  %v965 = vunpack.c.l.b16 %v944
  %v966 = vunpack.c.h.b16 %v944
  %v967 = vunpack.c.l.b16 %v945
  %v968 = vunpack.c.h.b16 %v945
  %v969 = vunpack.c.l.b16 %v946
  %v970 = vunpack.c.h.b16 %v946
  %v971 = vpack.c.b16 %v955, %v955
  %v972 = vpack.c.b16 %v956, %v956
  %v973 = vpack.c.b16 %v957, %v957
  %v974 = vpack.c.b16 %v958, %v958
  %v975 = vpack.c.b16 %v959, %v959
  %v976 = vpack.c.b16 %v960, %v960
  %v977 = vpack.c.b16 %v961, %v961
  %v978 = vpack.c.b16 %v962, %v962
  %v979 = vpack.c.b16 %v963, %v963
  %v980 = vpack.c.b16 %v964, %v964
  %v981 = vpack.c.b16 %v965, %v965
  %v982 = vpack.c.b16 %v966, %v966
  %v983 = vpack.c.b16 %v967, %v967
  %v984 = vpack.c.b16 %v968, %v968
  %v985 = vpack.c.b16 %v969, %v969
  %v986 = vpack.c.b16 %v970, %v970
  %1003 = vst [vmem:[%s9] sm:$0xf] %v971
  %1004 = vst [vmem:[%s9 + $0x4] sm:$0xf] %v972
  %1005 = vst [vmem:[%s9 + $0x8] sm:$0xf] %v973
  %1006 = vst [vmem:[%s9 + $0xc] sm:$0xf] %v974
  %1007 = vst [vmem:[%s9 + $0x10] sm:$0xf] %v975
  %1008 = vst [vmem:[%s9 + $0x14] sm:$0xf] %v976
  %1009 = vst [vmem:[%s9 + $0x18] sm:$0xf] %v977
  %1010 = vst [vmem:[%s9 + $0x1c] sm:$0xf] %v978
  %1011 = vst [vmem:[%s9 + $0x20] sm:$0xf] %v979
  %1012 = vst [vmem:[%s9 + $0x24] sm:$0xf] %v980
  %1013 = vst [vmem:[%s9 + $0x28] sm:$0xf] %v981
  %1014 = vst [vmem:[%s9 + $0x2c] sm:$0xf] %v982
  %1015 = vst [vmem:[%s9 + $0x30] sm:$0xf] %v983
  %1016 = vst [vmem:[%s9 + $0x34] sm:$0xf] %v984
  %1017 = vst [vmem:[%s9 + $0x38] sm:$0xf] %v985
  %1018 = vst [vmem:[%s9 + $0x3c] sm:$0xf] %v986
  // Predicated region
  $region38: #{mpgnn_forward.6} parent=0 // pred_check
    _
  $region39: #{mpgnn_forward.6} parent=0 // pred_check_branch
    %1020 = sbr.rel (0) target = $region41
  $region40: #{mpgnn_forward.6} parent=0 // pred_region
    _
  $region41: #{mpgnn_forward.6} parent=0 // pred_fallthru
    _
  // Predicated region
  $region42: #{mpgnn_forward.6} parent=0 // pred_check
    _
  $region43: #{mpgnn_forward.6} parent=0 // pred_check_branch
    %1022 = sbr.rel (0) target = $region45
  $region44: #{mpgnn_forward.6} parent=0 // pred_region
    _
  $region45: #{mpgnn_forward.6} parent=0 // pred_fallthru
    _

// kernel: mpgnn_forward.11
$region0: #{mpgnn_forward.11}
  #allocation0 [shape = 'u32[]', space=smem, size = 0x4, offset = 0x4, fixed_abs, tag = 'smem constant byte address 0x4 - core index']
  #allocation1 [shape = 'u32[144,128]{1,0:T(1,128)}', space=vmem, size = 0x12000, scoped, tag = 'internal scratch']
  %s0 = inlined_call_operand.vmem [shape: bf16[16,128], index: 0, kind: input, shape index: {}]
  %s1 = inlined_call_operand.vmem [shape: bf16[16,128], index: 1, kind: input, shape index: {}]
  %s2 = inlined_call_operand.vmem [shape: bf16[16,128], index: 2, kind: input, shape index: {}]
  %s3 = inlined_call_operand.vmem [shape: bf16[128,128], index: 3, kind: input, shape index: {}]
  %s4 = inlined_call_operand.vmem [shape: bf16[128,128], index: 4, kind: input, shape index: {}]
  %s5 = inlined_call_operand.vmem [shape: bf16[128,128], index: 5, kind: input, shape index: {}]
  %s6 = inlined_call_operand.vmem [shape: f32[1,128], index: 6, kind: input, shape index: {}]
  %s7 = inlined_call_operand.vmem [shape: bf16[128,128], index: 7, kind: input, shape index: {}]
  %s8 = inlined_call_operand.vmem [shape: f32[1,128], index: 8, kind: input, shape index: {}]
  %s9 = inlined_call_operand.vmem [shape: f32[16,128], index: 9, kind: output, shape index: {}]
  %s10 = sld [smem:[#allocation0]]
  $region46: #{mpgnn_forward.11} parent=0
    _
  %s12 = ssub.s32 1, %s10
  %s13 = scalar_select 0, %s12, %s10
  // Predicated region
  $region2: #{mpgnn_forward.11} parent=0 // pred_check
    _
  $region3: #{mpgnn_forward.11} parent=0 // pred_check_branch
    %15 = sbr.rel (0) target = $region5
  $region4: #{mpgnn_forward.11} parent=0 // pred_region
    _
  $region5: #{mpgnn_forward.11} parent=0 // pred_fallthru
    _
  // Predicated region
  $region6: #{mpgnn_forward.11} parent=0 // pred_check
    _
  $region7: #{mpgnn_forward.11} parent=0 // pred_check_branch
    %17 = sbr.rel (0) target = $region9
  $region8: #{mpgnn_forward.11} parent=0 // pred_region
    _
  $region9: #{mpgnn_forward.11} parent=0 // pred_fallthru
    _
  // Predicated region
  $region10: #{mpgnn_forward.11} parent=0 // pred_check
    _
  $region11: #{mpgnn_forward.11} parent=0 // pred_check_branch
    %19 = sbr.rel (0) target = $region13
  $region12: #{mpgnn_forward.11} parent=0 // pred_region
    _
  $region13: #{mpgnn_forward.11} parent=0 // pred_fallthru
    _
  // Predicated region
  $region14: #{mpgnn_forward.11} parent=0 // pred_check
    _
  $region15: #{mpgnn_forward.11} parent=0 // pred_check_branch
    %21 = sbr.rel (0) target = $region17
  $region16: #{mpgnn_forward.11} parent=0 // pred_region
    _
  $region17: #{mpgnn_forward.11} parent=0 // pred_fallthru
    _
  // Predicated region
  $region18: #{mpgnn_forward.11} parent=0 // pred_check
    _
  $region19: #{mpgnn_forward.11} parent=0 // pred_check_branch
    %23 = sbr.rel (0) target = $region21
  $region20: #{mpgnn_forward.11} parent=0 // pred_region
    _
  $region21: #{mpgnn_forward.11} parent=0 // pred_fallthru
    _
  // Predicated region
  $region22: #{mpgnn_forward.11} parent=0 // pred_check
    _
  $region23: #{mpgnn_forward.11} parent=0 // pred_check_branch
    %25 = sbr.rel (0) target = $region25
  $region24: #{mpgnn_forward.11} parent=0 // pred_region
    _
  $region25: #{mpgnn_forward.11} parent=0 // pred_fallthru
    _
  // Predicated region
  $region26: #{mpgnn_forward.11} parent=0 // pred_check
    _
  $region27: #{mpgnn_forward.11} parent=0 // pred_check_branch
    %27 = sbr.rel (0) target = $region29
  $region28: #{mpgnn_forward.11} parent=0 // pred_region
    _
  $region29: #{mpgnn_forward.11} parent=0 // pred_fallthru
    _
  // Predicated region
  $region30: #{mpgnn_forward.11} parent=0 // pred_check
    _
  $region31: #{mpgnn_forward.11} parent=0 // pred_check_branch
    %29 = sbr.rel (0) target = $region33
  $region32: #{mpgnn_forward.11} parent=0 // pred_region
    _
  $region33: #{mpgnn_forward.11} parent=0 // pred_fallthru
    _
  // Predicated region
  $region34: #{mpgnn_forward.11} parent=0 // pred_check
    _
  $region35: #{mpgnn_forward.11} parent=0 // pred_check_branch
    %31 = sbr.rel (0) target = $region37
  $region36: #{mpgnn_forward.11} parent=0 // pred_region
    _
  $region37: #{mpgnn_forward.11} parent=0 // pred_fallthru
    _
  %v33 = vld [vmem:[%s0] sm:$0xf]
  %v34 = vld [vmem:[%s0 + $0x4] sm:$0xf]
  %v35 = vld [vmem:[%s3] sm:$0xf]
  %v36 = vld [vmem:[%s3 + $0x4] sm:$0xf]
  %v37 = vld [vmem:[%s3 + $0x8] sm:$0xf]
  %v38 = vld [vmem:[%s3 + $0xc] sm:$0xf]
  %v39 = vld [vmem:[%s3 + $0x10] sm:$0xf]
  %v40 = vld [vmem:[%s3 + $0x14] sm:$0xf]
  %v41 = vld [vmem:[%s3 + $0x18] sm:$0xf]
  %v42 = vld [vmem:[%s3 + $0x1c] sm:$0xf]
  %v43 = vld [vmem:[%s3 + $0x20] sm:$0xf]
  %v44 = vld [vmem:[%s3 + $0x24] sm:$0xf]
  %v45 = vld [vmem:[%s3 + $0x28] sm:$0xf]
  %v46 = vld [vmem:[%s3 + $0x2c] sm:$0xf]
  %v47 = vld [vmem:[%s3 + $0x30] sm:$0xf]
  %v48 = vld [vmem:[%s3 + $0x34] sm:$0xf]
  %v49 = vld [vmem:[%s3 + $0x38] sm:$0xf]
  %v50 = vld [vmem:[%s3 + $0x3c] sm:$0xf]
  %v51 = vld [vmem:[%s1] sm:$0xf]
  %v52 = vld [vmem:[%s1 + $0x4] sm:$0xf]
  %v53 = vld [vmem:[%s4] sm:$0xf]
  %v54 = vld [vmem:[%s4 + $0x4] sm:$0xf]
  %v55 = vld [vmem:[%s4 + $0x8] sm:$0xf]
  %v56 = vld [vmem:[%s4 + $0xc] sm:$0xf]
  %v57 = vld [vmem:[%s4 + $0x10] sm:$0xf]
  %v58 = vld [vmem:[%s4 + $0x14] sm:$0xf]
  %v59 = vld [vmem:[%s4 + $0x18] sm:$0xf]
  %v60 = vld [vmem:[%s4 + $0x1c] sm:$0xf]
  %v61 = vld [vmem:[%s4 + $0x20] sm:$0xf]
  %v62 = vld [vmem:[%s4 + $0x24] sm:$0xf]
  %v63 = vld [vmem:[%s4 + $0x28] sm:$0xf]
  %v64 = vld [vmem:[%s4 + $0x2c] sm:$0xf]
  %v65 = vld [vmem:[%s4 + $0x30] sm:$0xf]
  %v66 = vld [vmem:[%s4 + $0x34] sm:$0xf]
  %v67 = vld [vmem:[%s4 + $0x38] sm:$0xf]
  %v68 = vld [vmem:[%s4 + $0x3c] sm:$0xf]
  %v71 = vunpack.c.l.b16 %v51
  %v72 = vunpack.c.l.b16 %v52
  %v73 = vpack.c.b16 %v72, %v71
  %v91 = vunpack.c.l.b16 %v53
  %v92 = vunpack.c.l.b16 %v54
  %v93 = vunpack.c.l.b16 %v55
  %v94 = vunpack.c.l.b16 %v56
  %v95 = vunpack.c.l.b16 %v57
  %v96 = vunpack.c.l.b16 %v58
  %v97 = vunpack.c.l.b16 %v59
  %v98 = vunpack.c.l.b16 %v60
  %v99 = vunpack.c.l.b16 %v61
  %v100 = vunpack.c.l.b16 %v62
  %v101 = vunpack.c.l.b16 %v63
  %v102 = vunpack.c.l.b16 %v64
  %v103 = vunpack.c.l.b16 %v65
  %v104 = vunpack.c.l.b16 %v66
  %v105 = vunpack.c.l.b16 %v67
  %v106 = vunpack.c.l.b16 %v68
  %v107 = vpack.c.b16 %v92, %v91
  %v108 = vpack.c.b16 %v94, %v93
  %v109 = vpack.c.b16 %v96, %v95
  %v110 = vpack.c.b16 %v98, %v97
  %v111 = vpack.c.b16 %v100, %v99
  %v112 = vpack.c.b16 %v102, %v101
  %v113 = vpack.c.b16 %v104, %v103
  %v114 = vpack.c.b16 %v106, %v105
  %123 = vmatprep.subr.bf16.mxu0 0
  %124 = vmatpush1.bf16.msra.mxu0 %v107
  %125 = vmatprep.subr.bf16.mxu0 0
  %126 = vmatpush1.bf16.msra.mxu0 %v108
  %127 = vmatprep.subr.bf16.mxu0 0
  %128 = vmatpush1.bf16.msra.mxu0 %v109
  %129 = vmatprep.subr.bf16.mxu0 0
  %130 = vmatpush1.bf16.msra.mxu0 %v110
  %131 = vmatprep.subr.bf16.mxu0 0
  %132 = vmatpush1.bf16.msra.mxu0 %v111
  %133 = vmatprep.subr.bf16.mxu0 0
  %134 = vmatpush1.bf16.msra.mxu0 %v112
  %135 = vmatprep.subr.bf16.mxu0 0
  %136 = vmatpush1.bf16.msra.mxu0 %v113
  %137 = vmatprep.subr.bf16.mxu0 0
  %138 = vmatpush1.bf16.msra.mxu0 %v114
  %139 = vmatprep.subr.bf16.mxu0 0
  %140 = vmatpush1.bf16.msra.mxu0 0
  %141 = vmatprep.subr.bf16.mxu0 0
  %142 = vmatpush1.bf16.msra.mxu0 0
  %143 = vmatprep.subr.bf16.mxu0 0
  %144 = vmatpush1.bf16.msra.mxu0 0
  %145 = vmatprep.subr.bf16.mxu0 0
  %146 = vmatpush1.bf16.msra.mxu0 0
  %147 = vmatprep.subr.bf16.mxu0 0
  %148 = vmatpush1.bf16.msra.mxu0 0
  %149 = vmatprep.subr.bf16.mxu0 0
  %150 = vmatpush1.bf16.msra.mxu0 0
  %151 = vmatprep.subr.bf16.mxu0 0
  %152 = vmatpush1.bf16.msra.mxu0 0
  %153 = vmatprep.subr.bf16.mxu0 0
  %154 = vmatpush1.bf16.msra.mxu0 0
  %155 = vmatprep.mubr.bf16.mxu0 0
  %156 = vmatmul.mubr.bf16.gmra.mrb[0].mxu0 %v73
  %v157 = vpop.f32.mrb[0].mxu0
  %v158 = vadd.f32 0.0, %v157
  %v159 = vpop.f32.mrb[0].mxu0
  %v160 = vpop.f32.mrb[0].mxu0
  %v161 = vadd.f32 0.0, %v160
  %v162 = vpop.f32.mrb[0].mxu0
  %163 = vdwg.mxu0
  %v166 = vunpack.c.l.b16 %v33
  %v167 = vunpack.c.l.b16 %v34
  %v168 = vpack.c.b16 %v167, %v166
  %v186 = vunpack.c.l.b16 %v35
  %v187 = vunpack.c.l.b16 %v36
  %v188 = vunpack.c.l.b16 %v37
  %v189 = vunpack.c.l.b16 %v38
  %v190 = vunpack.c.l.b16 %v39
  %v191 = vunpack.c.l.b16 %v40
  %v192 = vunpack.c.l.b16 %v41
  %v193 = vunpack.c.l.b16 %v42
  %v194 = vunpack.c.l.b16 %v43
  %v195 = vunpack.c.l.b16 %v44
  %v196 = vunpack.c.l.b16 %v45
  %v197 = vunpack.c.l.b16 %v46
  %v198 = vunpack.c.l.b16 %v47
  %v199 = vunpack.c.l.b16 %v48
  %v200 = vunpack.c.l.b16 %v49
  %v201 = vunpack.c.l.b16 %v50
  %v202 = vpack.c.b16 %v187, %v186
  %v203 = vpack.c.b16 %v189, %v188
  %v204 = vpack.c.b16 %v191, %v190
  %v205 = vpack.c.b16 %v193, %v192
  %v206 = vpack.c.b16 %v195, %v194
  %v207 = vpack.c.b16 %v197, %v196
  %v208 = vpack.c.b16 %v199, %v198
  %v209 = vpack.c.b16 %v201, %v200
  %218 = vmatprep.subr.bf16.mxu0 0
  %219 = vmatpush1.bf16.msra.mxu0 %v202
  %220 = vmatprep.subr.bf16.mxu0 0
  %221 = vmatpush1.bf16.msra.mxu0 %v203
  %222 = vmatprep.subr.bf16.mxu0 0
  %223 = vmatpush1.bf16.msra.mxu0 %v204
  %224 = vmatprep.subr.bf16.mxu0 0
  %225 = vmatpush1.bf16.msra.mxu0 %v205
  %226 = vmatprep.subr.bf16.mxu0 0
  %227 = vmatpush1.bf16.msra.mxu0 %v206
  %228 = vmatprep.subr.bf16.mxu0 0
  %229 = vmatpush1.bf16.msra.mxu0 %v207
  %230 = vmatprep.subr.bf16.mxu0 0
  %231 = vmatpush1.bf16.msra.mxu0 %v208
  %232 = vmatprep.subr.bf16.mxu0 0
  %233 = vmatpush1.bf16.msra.mxu0 %v209
  %234 = vmatprep.subr.bf16.mxu0 0
  %235 = vmatpush1.bf16.msra.mxu0 0
  %236 = vmatprep.subr.bf16.mxu0 0
  %237 = vmatpush1.bf16.msra.mxu0 0
  %238 = vmatprep.subr.bf16.mxu0 0
  %239 = vmatpush1.bf16.msra.mxu0 0
  %240 = vmatprep.subr.bf16.mxu0 0
  %241 = vmatpush1.bf16.msra.mxu0 0
  %242 = vmatprep.subr.bf16.mxu0 0
  %243 = vmatpush1.bf16.msra.mxu0 0
  %244 = vmatprep.subr.bf16.mxu0 0
  %245 = vmatpush1.bf16.msra.mxu0 0
  %246 = vmatprep.subr.bf16.mxu0 0
  %247 = vmatpush1.bf16.msra.mxu0 0
  %248 = vmatprep.subr.bf16.mxu0 0
  %249 = vmatpush1.bf16.msra.mxu0 0
  %250 = vmatprep.mubr.bf16.mxu0 0
  %251 = vmatmul.mubr.bf16.gmra.mrb[0].mxu0 %v168
  %v252 = vpop.f32.mrb[0].mxu0
  %v253 = vadd.f32 %v158, %v252
  %v254 = vpop.f32.mrb[0].mxu0
  %v255 = vpop.f32.mrb[0].mxu0
  %v256 = vadd.f32 %v161, %v255
  %v257 = vpop.f32.mrb[0].mxu0
  %258 = vdwg.mxu0
  %v259 = vld [vmem:[%s2] sm:$0xf]
  %v260 = vld [vmem:[%s2 + $0x4] sm:$0xf]
  %v261 = vld [vmem:[%s5] sm:$0xf]
  %v262 = vld [vmem:[%s5 + $0x4] sm:$0xf]
  %v263 = vld [vmem:[%s5 + $0x8] sm:$0xf]
  %v264 = vld [vmem:[%s5 + $0xc] sm:$0xf]
  %v265 = vld [vmem:[%s5 + $0x10] sm:$0xf]
  %v266 = vld [vmem:[%s5 + $0x14] sm:$0xf]
  %v267 = vld [vmem:[%s5 + $0x18] sm:$0xf]
  %v268 = vld [vmem:[%s5 + $0x1c] sm:$0xf]
  %v269 = vld [vmem:[%s5 + $0x20] sm:$0xf]
  %v270 = vld [vmem:[%s5 + $0x24] sm:$0xf]
  %v271 = vld [vmem:[%s5 + $0x28] sm:$0xf]
  %v272 = vld [vmem:[%s5 + $0x2c] sm:$0xf]
  %v273 = vld [vmem:[%s5 + $0x30] sm:$0xf]
  %v274 = vld [vmem:[%s5 + $0x34] sm:$0xf]
  %v275 = vld [vmem:[%s5 + $0x38] sm:$0xf]
  %v276 = vld [vmem:[%s5 + $0x3c] sm:$0xf]
  %v279 = vunpack.c.l.b16 %v259
  %v280 = vunpack.c.l.b16 %v260
  %v281 = vpack.c.b16 %v280, %v279
  %v299 = vunpack.c.l.b16 %v261
  %v300 = vunpack.c.l.b16 %v262
  %v301 = vunpack.c.l.b16 %v263
  %v302 = vunpack.c.l.b16 %v264
  %v303 = vunpack.c.l.b16 %v265
  %v304 = vunpack.c.l.b16 %v266
  %v305 = vunpack.c.l.b16 %v267
  %v306 = vunpack.c.l.b16 %v268
  %v307 = vunpack.c.l.b16 %v269
  %v308 = vunpack.c.l.b16 %v270
  %v309 = vunpack.c.l.b16 %v271
  %v310 = vunpack.c.l.b16 %v272
  %v311 = vunpack.c.l.b16 %v273
  %v312 = vunpack.c.l.b16 %v274
  %v313 = vunpack.c.l.b16 %v275
  %v314 = vunpack.c.l.b16 %v276
  %v315 = vpack.c.b16 %v300, %v299
  %v316 = vpack.c.b16 %v302, %v301
  %v317 = vpack.c.b16 %v304, %v303
  %v318 = vpack.c.b16 %v306, %v305
  %v319 = vpack.c.b16 %v308, %v307
  %v320 = vpack.c.b16 %v310, %v309
  %v321 = vpack.c.b16 %v312, %v311
  %v322 = vpack.c.b16 %v314, %v313
  %331 = vmatprep.subr.bf16.mxu0 0
  %332 = vmatpush1.bf16.msra.mxu0 %v315
  %333 = vmatprep.subr.bf16.mxu0 0
  %334 = vmatpush1.bf16.msra.mxu0 %v316
  %335 = vmatprep.subr.bf16.mxu0 0
  %336 = vmatpush1.bf16.msra.mxu0 %v317
  %337 = vmatprep.subr.bf16.mxu0 0
  %338 = vmatpush1.bf16.msra.mxu0 %v318
  %339 = vmatprep.subr.bf16.mxu0 0
  %340 = vmatpush1.bf16.msra.mxu0 %v319
  %341 = vmatprep.subr.bf16.mxu0 0
  %342 = vmatpush1.bf16.msra.mxu0 %v320
  %343 = vmatprep.subr.bf16.mxu0 0
  %344 = vmatpush1.bf16.msra.mxu0 %v321
  %345 = vmatprep.subr.bf16.mxu0 0
  %346 = vmatpush1.bf16.msra.mxu0 %v322
  %347 = vmatprep.subr.bf16.mxu0 0
  %348 = vmatpush1.bf16.msra.mxu0 0
  %349 = vmatprep.subr.bf16.mxu0 0
  %350 = vmatpush1.bf16.msra.mxu0 0
  %351 = vmatprep.subr.bf16.mxu0 0
  %352 = vmatpush1.bf16.msra.mxu0 0
  %353 = vmatprep.subr.bf16.mxu0 0
  %354 = vmatpush1.bf16.msra.mxu0 0
  %355 = vmatprep.subr.bf16.mxu0 0
  %356 = vmatpush1.bf16.msra.mxu0 0
  %357 = vmatprep.subr.bf16.mxu0 0
  %358 = vmatpush1.bf16.msra.mxu0 0
  %359 = vmatprep.subr.bf16.mxu0 0
  %360 = vmatpush1.bf16.msra.mxu0 0
  %361 = vmatprep.subr.bf16.mxu0 0
  %362 = vmatpush1.bf16.msra.mxu0 0
  %363 = vmatprep.mubr.bf16.mxu0 0
  %364 = vmatmul.mubr.bf16.gmra.mrb[0].mxu0 %v281
  %v365 = vpop.f32.mrb[0].mxu0
  %v366 = vadd.f32 0.0, %v365
  %v367 = vpop.f32.mrb[0].mxu0
  %v368 = vpop.f32.mrb[0].mxu0
  %v369 = vadd.f32 0.0, %v368
  %v370 = vpop.f32.mrb[0].mxu0
  %371 = vdwg.mxu0
  %v372 = vadd.f32 %v253, %v366
  %v373 = vadd.f32 %v256, %v369
  %v374 = vld [vmem:[%s6] sm:$0x1]
  %v376 = vlaneseq
  %v377 = vshrl.u32 %v376, 7
  %v378 = vsub.s32 0, %v377
  %v379 = vrot.slane %v374, %v378
  %v381 = vadd.f32 %v372, %v379
  %v382 = vadd.f32 %v373, %v379
  %v383 = vmax.f32 %v381, 0.0
  %v384 = vmax.f32 %v382, 0.0
  %v385 = vpack.c.bf16 %v384, %v383
  %v386 = vld [vmem:[%s7] sm:$0xf]
  %v387 = vld [vmem:[%s7 + $0x4] sm:$0xf]
  %v388 = vld [vmem:[%s7 + $0x8] sm:$0xf]
  %v389 = vld [vmem:[%s7 + $0xc] sm:$0xf]
  %v390 = vld [vmem:[%s7 + $0x10] sm:$0xf]
  %v391 = vld [vmem:[%s7 + $0x14] sm:$0xf]
  %v392 = vld [vmem:[%s7 + $0x18] sm:$0xf]
  %v393 = vld [vmem:[%s7 + $0x1c] sm:$0xf]
  %v394 = vld [vmem:[%s7 + $0x20] sm:$0xf]
  %v395 = vld [vmem:[%s7 + $0x24] sm:$0xf]
  %v396 = vld [vmem:[%s7 + $0x28] sm:$0xf]
  %v397 = vld [vmem:[%s7 + $0x2c] sm:$0xf]
  %v398 = vld [vmem:[%s7 + $0x30] sm:$0xf]
  %v399 = vld [vmem:[%s7 + $0x34] sm:$0xf]
  %v400 = vld [vmem:[%s7 + $0x38] sm:$0xf]
  %v401 = vld [vmem:[%s7 + $0x3c] sm:$0xf]
  %v402 = vld [vmem:[%s8] sm:$0x1]
  %v404 = vlaneseq
  %v405 = vshrl.u32 %v404, 7
  %v406 = vsub.s32 0, %v405
  %v407 = vrot.slane %v402, %v406
  %v425 = vunpack.c.l.b16 %v386
  %v426 = vunpack.c.l.b16 %v387
  %v427 = vunpack.c.l.b16 %v388
  %v428 = vunpack.c.l.b16 %v389
  %v429 = vunpack.c.l.b16 %v390
  %v430 = vunpack.c.l.b16 %v391
  %v431 = vunpack.c.l.b16 %v392
  %v432 = vunpack.c.l.b16 %v393
  %v433 = vunpack.c.l.b16 %v394
  %v434 = vunpack.c.l.b16 %v395
  %v435 = vunpack.c.l.b16 %v396
  %v436 = vunpack.c.l.b16 %v397
  %v437 = vunpack.c.l.b16 %v398
  %v438 = vunpack.c.l.b16 %v399
  %v439 = vunpack.c.l.b16 %v400
  %v440 = vunpack.c.l.b16 %v401
  %v441 = vpack.c.b16 %v426, %v425
  %v442 = vpack.c.b16 %v428, %v427
  %v443 = vpack.c.b16 %v430, %v429
  %v444 = vpack.c.b16 %v432, %v431
  %v445 = vpack.c.b16 %v434, %v433
  %v446 = vpack.c.b16 %v436, %v435
  %v447 = vpack.c.b16 %v438, %v437
  %v448 = vpack.c.b16 %v440, %v439
  %457 = vmatprep.subr.bf16.mxu0 0
  %458 = vmatpush1.bf16.msra.mxu0 %v441
  %459 = vmatprep.subr.bf16.mxu0 0
  %460 = vmatpush1.bf16.msra.mxu0 %v442
  %461 = vmatprep.subr.bf16.mxu0 0
  %462 = vmatpush1.bf16.msra.mxu0 %v443
  %463 = vmatprep.subr.bf16.mxu0 0
  %464 = vmatpush1.bf16.msra.mxu0 %v444
  %465 = vmatprep.subr.bf16.mxu0 0
  %466 = vmatpush1.bf16.msra.mxu0 %v445
  %467 = vmatprep.subr.bf16.mxu0 0
  %468 = vmatpush1.bf16.msra.mxu0 %v446
  %469 = vmatprep.subr.bf16.mxu0 0
  %470 = vmatpush1.bf16.msra.mxu0 %v447
  %471 = vmatprep.subr.bf16.mxu0 0
  %472 = vmatpush1.bf16.msra.mxu0 %v448
  %473 = vmatprep.subr.bf16.mxu0 0
  %474 = vmatpush1.bf16.msra.mxu0 0
  %475 = vmatprep.subr.bf16.mxu0 0
  %476 = vmatpush1.bf16.msra.mxu0 0
  %477 = vmatprep.subr.bf16.mxu0 0
  %478 = vmatpush1.bf16.msra.mxu0 0
  %479 = vmatprep.subr.bf16.mxu0 0
  %480 = vmatpush1.bf16.msra.mxu0 0
  %481 = vmatprep.subr.bf16.mxu0 0
  %482 = vmatpush1.bf16.msra.mxu0 0
  %483 = vmatprep.subr.bf16.mxu0 0
  %484 = vmatpush1.bf16.msra.mxu0 0
  %485 = vmatprep.subr.bf16.mxu0 0
  %486 = vmatpush1.bf16.msra.mxu0 0
  %487 = vmatprep.subr.bf16.mxu0 0
  %488 = vmatpush1.bf16.msra.mxu0 0
  %489 = vmatprep.mubr.bf16.mxu0 0
  %490 = vmatmul.mubr.bf16.gmra.mrb[0].mxu0 %v385
  %v491 = vpop.f32.mrb[0].mxu0
  %v492 = vadd.f32 %v407, %v491
  %v493 = vpop.f32.mrb[0].mxu0
  %v494 = vpop.f32.mrb[0].mxu0
  %v495 = vadd.f32 %v407, %v494
  %v496 = vpop.f32.mrb[0].mxu0
  %497 = vdwg.mxu0
  %498 = vst [vmem:[%s9] sm:$0xff] %v492
  %499 = vst [vmem:[%s9 + $0x8] sm:$0xff] %v495
  // Predicated region
  $region38: #{mpgnn_forward.11} parent=0 // pred_check
    _
  $region39: #{mpgnn_forward.11} parent=0 // pred_check_branch
    %501 = sbr.rel (0) target = $region41
  $region40: #{mpgnn_forward.11} parent=0 // pred_region
    _
  $region41: #{mpgnn_forward.11} parent=0 // pred_fallthru
    _
  // Predicated region
  $region42: #{mpgnn_forward.11} parent=0 // pred_check
    _
  $region43: #{mpgnn_forward.11} parent=0 // pred_check_branch
    %503 = sbr.rel (0) target = $region45
  $region44: #{mpgnn_forward.11} parent=0 // pred_region
    _
  $region45: #{mpgnn_forward.11} parent=0 // pred_fallthru
    _

// kernel: mpgnn_forward.9
$region0: #{mpgnn_forward.9}
  #allocation0 [shape = 'u32[]', space=smem, size = 0x4, offset = 0x4, fixed_abs, tag = 'smem constant byte address 0x4 - core index']
  #allocation1 [shape = 'u32[144,128]{1,0:T(1,128)}', space=vmem, size = 0x12000, scoped, tag = 'internal scratch']
  %s0 = inlined_call_operand.vmem [shape: bf16[128,128], index: 0, kind: input, shape index: {}]
  %s1 = inlined_call_operand.vmem [shape: bf16[128,128], index: 1, kind: input, shape index: {}]
  %s2 = inlined_call_operand.vmem [shape: bf16[128,128], index: 2, kind: input, shape index: {}]
  %s3 = inlined_call_operand.vmem [shape: bf16[128,128], index: 3, kind: input, shape index: {}]
  %s4 = inlined_call_operand.vmem [shape: bf16[128,128], index: 4, kind: input, shape index: {}]
  %s5 = inlined_call_operand.vmem [shape: bf16[128,128], index: 5, kind: input, shape index: {}]
  %s6 = inlined_call_operand.vmem [shape: bf16[128,128], index: 6, kind: input, shape index: {}]
  %s7 = inlined_call_operand.vmem [shape: bf16[128,128], index: 7, kind: input, shape index: {}]
  %s8 = inlined_call_operand.vmem [shape: bf16[128,128], index: 8, kind: input, shape index: {}]
  %s9 = inlined_call_operand.vmem [shape: bf16[128,128], index: 9, kind: input, shape index: {}]
  %s10 = inlined_call_operand.vmem [shape: bf16[128,128], index: 10, kind: input, shape index: {}]
  %s11 = inlined_call_operand.vmem [shape: bf16[128,128], index: 11, kind: input, shape index: {}]
  %s12 = inlined_call_operand.vmem [shape: f32[1,128], index: 12, kind: input, shape index: {}]
  %s13 = inlined_call_operand.vmem [shape: bf16[128,128], index: 13, kind: input, shape index: {}]
  %s14 = inlined_call_operand.vmem [shape: f32[1,128], index: 14, kind: input, shape index: {}]
  %s15 = inlined_call_operand.vmem [shape: bf16[128,128], index: 15, kind: output, shape index: {}]
  %s16 = sld [smem:[#allocation0]]
  $region70: #{mpgnn_forward.9} parent=0
    _
  %s18 = ssub.s32 1, %s16
  %s19 = scalar_select 0, %s18, %s16
  // Predicated region
  $region2: #{mpgnn_forward.9} parent=0 // pred_check
    _
  $region3: #{mpgnn_forward.9} parent=0 // pred_check_branch
    %21 = sbr.rel (0) target = $region5
  $region4: #{mpgnn_forward.9} parent=0 // pred_region
    _
  $region5: #{mpgnn_forward.9} parent=0 // pred_fallthru
    _
  // Predicated region
  $region6: #{mpgnn_forward.9} parent=0 // pred_check
    _
  $region7: #{mpgnn_forward.9} parent=0 // pred_check_branch
    %23 = sbr.rel (0) target = $region9
  $region8: #{mpgnn_forward.9} parent=0 // pred_region
    _
  $region9: #{mpgnn_forward.9} parent=0 // pred_fallthru
    _
  // Predicated region
  $region10: #{mpgnn_forward.9} parent=0 // pred_check
    _
  $region11: #{mpgnn_forward.9} parent=0 // pred_check_branch
    %25 = sbr.rel (0) target = $region13
  $region12: #{mpgnn_forward.9} parent=0 // pred_region
    _
  $region13: #{mpgnn_forward.9} parent=0 // pred_fallthru
    _
  // Predicated region
  $region14: #{mpgnn_forward.9} parent=0 // pred_check
    _
  $region15: #{mpgnn_forward.9} parent=0 // pred_check_branch
    %27 = sbr.rel (0) target = $region17
  $region16: #{mpgnn_forward.9} parent=0 // pred_region
    _
  $region17: #{mpgnn_forward.9} parent=0 // pred_fallthru
    _
  // Predicated region
  $region18: #{mpgnn_forward.9} parent=0 // pred_check
    _
  $region19: #{mpgnn_forward.9} parent=0 // pred_check_branch
    %29 = sbr.rel (0) target = $region21
  $region20: #{mpgnn_forward.9} parent=0 // pred_region
    _
  $region21: #{mpgnn_forward.9} parent=0 // pred_fallthru
    _
  // Predicated region
  $region22: #{mpgnn_forward.9} parent=0 // pred_check
    _
  $region23: #{mpgnn_forward.9} parent=0 // pred_check_branch
    %31 = sbr.rel (0) target = $region25
  $region24: #{mpgnn_forward.9} parent=0 // pred_region
    _
  $region25: #{mpgnn_forward.9} parent=0 // pred_fallthru
    _
  // Predicated region
  $region26: #{mpgnn_forward.9} parent=0 // pred_check
    _
  $region27: #{mpgnn_forward.9} parent=0 // pred_check_branch
    %33 = sbr.rel (0) target = $region29
  $region28: #{mpgnn_forward.9} parent=0 // pred_region
    _
  $region29: #{mpgnn_forward.9} parent=0 // pred_fallthru
    _
  // Predicated region
  $region30: #{mpgnn_forward.9} parent=0 // pred_check
    _
  $region31: #{mpgnn_forward.9} parent=0 // pred_check_branch
    %35 = sbr.rel (0) target = $region33
  $region32: #{mpgnn_forward.9} parent=0 // pred_region
    _
  $region33: #{mpgnn_forward.9} parent=0 // pred_fallthru
    _
  // Predicated region
  $region34: #{mpgnn_forward.9} parent=0 // pred_check
    _
  $region35: #{mpgnn_forward.9} parent=0 // pred_check_branch
    %37 = sbr.rel (0) target = $region37
  $region36: #{mpgnn_forward.9} parent=0 // pred_region
    _
  $region37: #{mpgnn_forward.9} parent=0 // pred_fallthru
    _
  // Predicated region
  $region38: #{mpgnn_forward.9} parent=0 // pred_check
    _
  $region39: #{mpgnn_forward.9} parent=0 // pred_check_branch
    %39 = sbr.rel (0) target = $region41
  $region40: #{mpgnn_forward.9} parent=0 // pred_region
    _
  $region41: #{mpgnn_forward.9} parent=0 // pred_fallthru
    _
  // Predicated region
  $region42: #{mpgnn_forward.9} parent=0 // pred_check
    _
  $region43: #{mpgnn_forward.9} parent=0 // pred_check_branch
    %41 = sbr.rel (0) target = $region45
  $region44: #{mpgnn_forward.9} parent=0 // pred_region
    _
  $region45: #{mpgnn_forward.9} parent=0 // pred_fallthru
    _
  // Predicated region
  $region46: #{mpgnn_forward.9} parent=0 // pred_check
    _
  $region47: #{mpgnn_forward.9} parent=0 // pred_check_branch
    %43 = sbr.rel (0) target = $region49
  $region48: #{mpgnn_forward.9} parent=0 // pred_region
    _
  $region49: #{mpgnn_forward.9} parent=0 // pred_fallthru
    _
  // Predicated region
  $region50: #{mpgnn_forward.9} parent=0 // pred_check
    _
  $region51: #{mpgnn_forward.9} parent=0 // pred_check_branch
    %45 = sbr.rel (0) target = $region53
  $region52: #{mpgnn_forward.9} parent=0 // pred_region
    _
  $region53: #{mpgnn_forward.9} parent=0 // pred_fallthru
    _
  // Predicated region
  $region54: #{mpgnn_forward.9} parent=0 // pred_check
    _
  $region55: #{mpgnn_forward.9} parent=0 // pred_check_branch
    %47 = sbr.rel (0) target = $region57
  $region56: #{mpgnn_forward.9} parent=0 // pred_region
    _
  $region57: #{mpgnn_forward.9} parent=0 // pred_fallthru
    _
  // Predicated region
  $region58: #{mpgnn_forward.9} parent=0 // pred_check
    _
  $region59: #{mpgnn_forward.9} parent=0 // pred_check_branch
    %49 = sbr.rel (0) target = $region61
  $region60: #{mpgnn_forward.9} parent=0 // pred_region
    _
  $region61: #{mpgnn_forward.9} parent=0 // pred_fallthru
    _
  %v51 = vld [vmem:[%s0] sm:$0xf]
  %v52 = vld [vmem:[%s0 + $0x4] sm:$0xf]
  %v53 = vld [vmem:[%s0 + $0x8] sm:$0xf]
  %v54 = vld [vmem:[%s0 + $0xc] sm:$0xf]
  %v55 = vld [vmem:[%s0 + $0x10] sm:$0xf]
  %v56 = vld [vmem:[%s0 + $0x14] sm:$0xf]
  %v57 = vld [vmem:[%s0 + $0x18] sm:$0xf]
  %v58 = vld [vmem:[%s0 + $0x1c] sm:$0xf]
  %v59 = vld [vmem:[%s0 + $0x20] sm:$0xf]
  %v60 = vld [vmem:[%s0 + $0x24] sm:$0xf]
  %v61 = vld [vmem:[%s0 + $0x28] sm:$0xf]
  %v62 = vld [vmem:[%s0 + $0x2c] sm:$0xf]
  %v63 = vld [vmem:[%s0 + $0x30] sm:$0xf]
  %v64 = vld [vmem:[%s0 + $0x34] sm:$0xf]
  %v65 = vld [vmem:[%s0 + $0x38] sm:$0xf]
  %v66 = vld [vmem:[%s0 + $0x3c] sm:$0xf]
  %v67 = vld [vmem:[%s6] sm:$0xf]
  %v68 = vld [vmem:[%s6 + $0x4] sm:$0xf]
  %v69 = vld [vmem:[%s6 + $0x8] sm:$0xf]
  %v70 = vld [vmem:[%s6 + $0xc] sm:$0xf]
  %v71 = vld [vmem:[%s6 + $0x10] sm:$0xf]
  %v72 = vld [vmem:[%s6 + $0x14] sm:$0xf]
  %v73 = vld [vmem:[%s6 + $0x18] sm:$0xf]
  %v74 = vld [vmem:[%s6 + $0x1c] sm:$0xf]
  %v75 = vld [vmem:[%s6 + $0x20] sm:$0xf]
  %v76 = vld [vmem:[%s6 + $0x24] sm:$0xf]
  %v77 = vld [vmem:[%s6 + $0x28] sm:$0xf]
  %v78 = vld [vmem:[%s6 + $0x2c] sm:$0xf]
  %v79 = vld [vmem:[%s6 + $0x30] sm:$0xf]
  %v80 = vld [vmem:[%s6 + $0x34] sm:$0xf]
  %v81 = vld [vmem:[%s6 + $0x38] sm:$0xf]
  %v82 = vld [vmem:[%s6 + $0x3c] sm:$0xf]
  %v83 = vld [vmem:[%s1] sm:$0xf]
  %v84 = vld [vmem:[%s1 + $0x4] sm:$0xf]
  %v85 = vld [vmem:[%s1 + $0x8] sm:$0xf]
  %v86 = vld [vmem:[%s1 + $0xc] sm:$0xf]
  %v87 = vld [vmem:[%s1 + $0x10] sm:$0xf]
  %v88 = vld [vmem:[%s1 + $0x14] sm:$0xf]
  %v89 = vld [vmem:[%s1 + $0x18] sm:$0xf]
  %v90 = vld [vmem:[%s1 + $0x1c] sm:$0xf]
  %v91 = vld [vmem:[%s1 + $0x20] sm:$0xf]
  %v92 = vld [vmem:[%s1 + $0x24] sm:$0xf]
  %v93 = vld [vmem:[%s1 + $0x28] sm:$0xf]
  %v94 = vld [vmem:[%s1 + $0x2c] sm:$0xf]
  %v95 = vld [vmem:[%s1 + $0x30] sm:$0xf]
  %v96 = vld [vmem:[%s1 + $0x34] sm:$0xf]
  %v97 = vld [vmem:[%s1 + $0x38] sm:$0xf]
  %v98 = vld [vmem:[%s1 + $0x3c] sm:$0xf]
  %v99 = vld [vmem:[%s7] sm:$0xf]
  %v100 = vld [vmem:[%s7 + $0x4] sm:$0xf]
  %v101 = vld [vmem:[%s7 + $0x8] sm:$0xf]
  %v102 = vld [vmem:[%s7 + $0xc] sm:$0xf]
  %v103 = vld [vmem:[%s7 + $0x10] sm:$0xf]
  %v104 = vld [vmem:[%s7 + $0x14] sm:$0xf]
  %v105 = vld [vmem:[%s7 + $0x18] sm:$0xf]
  %v106 = vld [vmem:[%s7 + $0x1c] sm:$0xf]
  %v107 = vld [vmem:[%s7 + $0x20] sm:$0xf]
  %v108 = vld [vmem:[%s7 + $0x24] sm:$0xf]
  %v109 = vld [vmem:[%s7 + $0x28] sm:$0xf]
  %v110 = vld [vmem:[%s7 + $0x2c] sm:$0xf]
  %v111 = vld [vmem:[%s7 + $0x30] sm:$0xf]
  %v112 = vld [vmem:[%s7 + $0x34] sm:$0xf]
  %v113 = vld [vmem:[%s7 + $0x38] sm:$0xf]
  %v114 = vld [vmem:[%s7 + $0x3c] sm:$0xf]
  %v131 = vunpack.c.l.b16 %v83
  %v132 = vunpack.c.l.b16 %v84
  %v133 = vunpack.c.l.b16 %v85
  %v134 = vunpack.c.l.b16 %v86
  %v135 = vunpack.c.l.b16 %v87
  %v136 = vunpack.c.l.b16 %v88
  %v137 = vunpack.c.l.b16 %v89
  %v138 = vunpack.c.l.b16 %v90
  %v139 = vunpack.c.l.b16 %v91
  %v140 = vunpack.c.l.b16 %v92
  %v141 = vunpack.c.l.b16 %v93
  %v142 = vunpack.c.l.b16 %v94
  %v143 = vunpack.c.l.b16 %v95
  %v144 = vunpack.c.l.b16 %v96
  %v145 = vunpack.c.l.b16 %v97
  %v146 = vunpack.c.l.b16 %v98
  %v147 = vpack.c.b16 %v132, %v131
  %v148 = vpack.c.b16 %v134, %v133
  %v149 = vpack.c.b16 %v136, %v135
  %v150 = vpack.c.b16 %v138, %v137
  %v151 = vpack.c.b16 %v140, %v139
  %v152 = vpack.c.b16 %v142, %v141
  %v153 = vpack.c.b16 %v144, %v143
  %v154 = vpack.c.b16 %v146, %v145
  %v179 = vunpack.c.l.b16 %v99
  %v180 = vunpack.c.l.b16 %v100
  %v181 = vunpack.c.l.b16 %v101
  %v182 = vunpack.c.l.b16 %v102
  %v183 = vunpack.c.l.b16 %v103
  %v184 = vunpack.c.l.b16 %v104
  %v185 = vunpack.c.l.b16 %v105
  %v186 = vunpack.c.l.b16 %v106
  %v187 = vunpack.c.l.b16 %v107
  %v188 = vunpack.c.l.b16 %v108
  %v189 = vunpack.c.l.b16 %v109
  %v190 = vunpack.c.l.b16 %v110
  %v191 = vunpack.c.l.b16 %v111
  %v192 = vunpack.c.l.b16 %v112
  %v193 = vunpack.c.l.b16 %v113
  %v194 = vunpack.c.l.b16 %v114
  %v195 = vpack.c.b16 %v180, %v179
  %v196 = vpack.c.b16 %v182, %v181
  %v197 = vpack.c.b16 %v184, %v183
  %v198 = vpack.c.b16 %v186, %v185
  %v199 = vpack.c.b16 %v188, %v187
  %v200 = vpack.c.b16 %v190, %v189
  %v201 = vpack.c.b16 %v192, %v191
  %v202 = vpack.c.b16 %v194, %v193
  %211 = vmatprep.subr.bf16.mxu0 0
  %212 = vmatpush1.bf16.msra.mxu0 %v195
  %213 = vmatprep.subr.bf16.mxu0 0
  %214 = vmatpush1.bf16.msra.mxu0 %v196
  %215 = vmatprep.subr.bf16.mxu0 0
  %216 = vmatpush1.bf16.msra.mxu0 %v197
  %217 = vmatprep.subr.bf16.mxu0 0
  %218 = vmatpush1.bf16.msra.mxu0 %v198
  %219 = vmatprep.subr.bf16.mxu0 0
  %220 = vmatpush1.bf16.msra.mxu0 %v199
  %221 = vmatprep.subr.bf16.mxu0 0
  %222 = vmatpush1.bf16.msra.mxu0 %v200
  %223 = vmatprep.subr.bf16.mxu0 0
  %224 = vmatpush1.bf16.msra.mxu0 %v201
  %225 = vmatprep.subr.bf16.mxu0 0
  %226 = vmatpush1.bf16.msra.mxu0 %v202
  %227 = vmatprep.subr.bf16.mxu0 0
  %228 = vmatpush1.bf16.msra.mxu0 0
  %229 = vmatprep.subr.bf16.mxu0 0
  %230 = vmatpush1.bf16.msra.mxu0 0
  %231 = vmatprep.subr.bf16.mxu0 0
  %232 = vmatpush1.bf16.msra.mxu0 0
  %233 = vmatprep.subr.bf16.mxu0 0
  %234 = vmatpush1.bf16.msra.mxu0 0
  %235 = vmatprep.subr.bf16.mxu0 0
  %236 = vmatpush1.bf16.msra.mxu0 0
  %237 = vmatprep.subr.bf16.mxu0 0
  %238 = vmatpush1.bf16.msra.mxu0 0
  %239 = vmatprep.subr.bf16.mxu0 0
  %240 = vmatpush1.bf16.msra.mxu0 0
  %241 = vmatprep.subr.bf16.mxu0 0
  %242 = vmatpush1.bf16.msra.mxu0 0
  %243 = vmatprep.mubr.bf16.mxu0 0
  %244 = vmatmul.mubr.bf16.gmra.mrb[0].mxu0 %v147
  %v245 = vpop.f32.mrb[0].mxu0
  %v246 = vadd.f32 0.0, %v245
  %v247 = vpop.f32.mrb[0].mxu0
  %v248 = vpop.f32.mrb[0].mxu0
  %v249 = vadd.f32 0.0, %v248
  %v250 = vpop.f32.mrb[0].mxu0
  %251 = vmatprep.mubr.bf16.mxu0 0
  %252 = vmatmul.mubr.bf16.gmra.mrb[0].mxu0 %v148
  %v253 = vpop.f32.mrb[0].mxu0
  %v254 = vadd.f32 0.0, %v253
  %v255 = vpop.f32.mrb[0].mxu0
  %v256 = vpop.f32.mrb[0].mxu0
  %v257 = vadd.f32 0.0, %v256
  %v258 = vpop.f32.mrb[0].mxu0
  %259 = vmatprep.mubr.bf16.mxu0 0
  %260 = vmatmul.mubr.bf16.gmra.mrb[0].mxu0 %v149
  %v261 = vpop.f32.mrb[0].mxu0
  %v262 = vadd.f32 0.0, %v261
  %v263 = vpop.f32.mrb[0].mxu0
  %v264 = vpop.f32.mrb[0].mxu0
  %v265 = vadd.f32 0.0, %v264
  %v266 = vpop.f32.mrb[0].mxu0
  %267 = vmatprep.mubr.bf16.mxu0 0
  %268 = vmatmul.mubr.bf16.gmra.mrb[0].mxu0 %v150
  %v269 = vpop.f32.mrb[0].mxu0
  %v270 = vadd.f32 0.0, %v269
  %v271 = vpop.f32.mrb[0].mxu0
  %v272 = vpop.f32.mrb[0].mxu0
  %v273 = vadd.f32 0.0, %v272
  %v274 = vpop.f32.mrb[0].mxu0
  %275 = vmatprep.mubr.bf16.mxu0 0
  %276 = vmatmul.mubr.bf16.gmra.mrb[0].mxu0 %v151
  %v277 = vpop.f32.mrb[0].mxu0
  %v278 = vadd.f32 0.0, %v277
  %v279 = vpop.f32.mrb[0].mxu0
  %v280 = vpop.f32.mrb[0].mxu0
  %v281 = vadd.f32 0.0, %v280
  %v282 = vpop.f32.mrb[0].mxu0
  %283 = vmatprep.mubr.bf16.mxu0 0
  %284 = vmatmul.mubr.bf16.gmra.mrb[0].mxu0 %v152
  %v285 = vpop.f32.mrb[0].mxu0
  %v286 = vadd.f32 0.0, %v285
  %v287 = vpop.f32.mrb[0].mxu0
  %v288 = vpop.f32.mrb[0].mxu0
  %v289 = vadd.f32 0.0, %v288
  %v290 = vpop.f32.mrb[0].mxu0
  %291 = vmatprep.mubr.bf16.mxu0 0
  %292 = vmatmul.mubr.bf16.gmra.mrb[0].mxu0 %v153
  %v293 = vpop.f32.mrb[0].mxu0
  %v294 = vadd.f32 0.0, %v293
  %v295 = vpop.f32.mrb[0].mxu0
  %v296 = vpop.f32.mrb[0].mxu0
  %v297 = vadd.f32 0.0, %v296
  %v298 = vpop.f32.mrb[0].mxu0
  %299 = vmatprep.mubr.bf16.mxu0 0
  %300 = vmatmul.mubr.bf16.gmra.mrb[0].mxu0 %v154
  %v301 = vpop.f32.mrb[0].mxu0
  %v302 = vadd.f32 0.0, %v301
  %v303 = vpop.f32.mrb[0].mxu0
  %v304 = vpop.f32.mrb[0].mxu0
  %v305 = vadd.f32 0.0, %v304
  %v306 = vpop.f32.mrb[0].mxu0
  %307 = vdwg.mxu0
  %v324 = vunpack.c.l.b16 %v51
  %v325 = vunpack.c.l.b16 %v52
  %v326 = vunpack.c.l.b16 %v53
  %v327 = vunpack.c.l.b16 %v54
  %v328 = vunpack.c.l.b16 %v55
  %v329 = vunpack.c.l.b16 %v56
  %v330 = vunpack.c.l.b16 %v57
  %v331 = vunpack.c.l.b16 %v58
  %v332 = vunpack.c.l.b16 %v59
  %v333 = vunpack.c.l.b16 %v60
  %v334 = vunpack.c.l.b16 %v61
  %v335 = vunpack.c.l.b16 %v62
  %v336 = vunpack.c.l.b16 %v63
  %v337 = vunpack.c.l.b16 %v64
  %v338 = vunpack.c.l.b16 %v65
  %v339 = vunpack.c.l.b16 %v66
  %v340 = vpack.c.b16 %v325, %v324
  %v341 = vpack.c.b16 %v327, %v326
  %v342 = vpack.c.b16 %v329, %v328
  %v343 = vpack.c.b16 %v331, %v330
  %v344 = vpack.c.b16 %v333, %v332
  %v345 = vpack.c.b16 %v335, %v334
  %v346 = vpack.c.b16 %v337, %v336
  %v347 = vpack.c.b16 %v339, %v338
  %v372 = vunpack.c.l.b16 %v67
  %v373 = vunpack.c.l.b16 %v68
  %v374 = vunpack.c.l.b16 %v69
  %v375 = vunpack.c.l.b16 %v70
  %v376 = vunpack.c.l.b16 %v71
  %v377 = vunpack.c.l.b16 %v72
  %v378 = vunpack.c.l.b16 %v73
  %v379 = vunpack.c.l.b16 %v74
  %v380 = vunpack.c.l.b16 %v75
  %v381 = vunpack.c.l.b16 %v76
  %v382 = vunpack.c.l.b16 %v77
  %v383 = vunpack.c.l.b16 %v78
  %v384 = vunpack.c.l.b16 %v79
  %v385 = vunpack.c.l.b16 %v80
  %v386 = vunpack.c.l.b16 %v81
  %v387 = vunpack.c.l.b16 %v82
  %v388 = vpack.c.b16 %v373, %v372
  %v389 = vpack.c.b16 %v375, %v374
  %v390 = vpack.c.b16 %v377, %v376
  %v391 = vpack.c.b16 %v379, %v378
  %v392 = vpack.c.b16 %v381, %v380
  %v393 = vpack.c.b16 %v383, %v382
  %v394 = vpack.c.b16 %v385, %v384
  %v395 = vpack.c.b16 %v387, %v386
  %404 = vmatprep.subr.bf16.mxu0 0
  %405 = vmatpush1.bf16.msra.mxu0 %v388
  %406 = vmatprep.subr.bf16.mxu0 0
  %407 = vmatpush1.bf16.msra.mxu0 %v389
  %408 = vmatprep.subr.bf16.mxu0 0
  %409 = vmatpush1.bf16.msra.mxu0 %v390
  %410 = vmatprep.subr.bf16.mxu0 0
  %411 = vmatpush1.bf16.msra.mxu0 %v391
  %412 = vmatprep.subr.bf16.mxu0 0
  %413 = vmatpush1.bf16.msra.mxu0 %v392
  %414 = vmatprep.subr.bf16.mxu0 0
  %415 = vmatpush1.bf16.msra.mxu0 %v393
  %416 = vmatprep.subr.bf16.mxu0 0
  %417 = vmatpush1.bf16.msra.mxu0 %v394
  %418 = vmatprep.subr.bf16.mxu0 0
  %419 = vmatpush1.bf16.msra.mxu0 %v395
  %420 = vmatprep.subr.bf16.mxu0 0
  %421 = vmatpush1.bf16.msra.mxu0 0
  %422 = vmatprep.subr.bf16.mxu0 0
  %423 = vmatpush1.bf16.msra.mxu0 0
  %424 = vmatprep.subr.bf16.mxu0 0
  %425 = vmatpush1.bf16.msra.mxu0 0
  %426 = vmatprep.subr.bf16.mxu0 0
  %427 = vmatpush1.bf16.msra.mxu0 0
  %428 = vmatprep.subr.bf16.mxu0 0
  %429 = vmatpush1.bf16.msra.mxu0 0
  %430 = vmatprep.subr.bf16.mxu0 0
  %431 = vmatpush1.bf16.msra.mxu0 0
  %432 = vmatprep.subr.bf16.mxu0 0
  %433 = vmatpush1.bf16.msra.mxu0 0
  %434 = vmatprep.subr.bf16.mxu0 0
  %435 = vmatpush1.bf16.msra.mxu0 0
  %436 = vmatprep.mubr.bf16.mxu0 0
  %437 = vmatmul.mubr.bf16.gmra.mrb[0].mxu0 %v340
  %v438 = vpop.f32.mrb[0].mxu0
  %v439 = vadd.f32 %v246, %v438
  %v440 = vpop.f32.mrb[0].mxu0
  %v441 = vpop.f32.mrb[0].mxu0
  %v442 = vadd.f32 %v249, %v441
  %v443 = vpop.f32.mrb[0].mxu0
  %444 = vmatprep.mubr.bf16.mxu0 0
  %445 = vmatmul.mubr.bf16.gmra.mrb[0].mxu0 %v341
  %v446 = vpop.f32.mrb[0].mxu0
  %v447 = vadd.f32 %v254, %v446
  %v448 = vpop.f32.mrb[0].mxu0
  %v449 = vpop.f32.mrb[0].mxu0
  %v450 = vadd.f32 %v257, %v449
  %v451 = vpop.f32.mrb[0].mxu0
  %452 = vmatprep.mubr.bf16.mxu0 0
  %453 = vmatmul.mubr.bf16.gmra.mrb[0].mxu0 %v342
  %v454 = vpop.f32.mrb[0].mxu0
  %v455 = vadd.f32 %v262, %v454
  %v456 = vpop.f32.mrb[0].mxu0
  %v457 = vpop.f32.mrb[0].mxu0
  %v458 = vadd.f32 %v265, %v457
  %v459 = vpop.f32.mrb[0].mxu0
  %460 = vmatprep.mubr.bf16.mxu0 0
  %461 = vmatmul.mubr.bf16.gmra.mrb[0].mxu0 %v343
  %v462 = vpop.f32.mrb[0].mxu0
  %v463 = vadd.f32 %v270, %v462
  %v464 = vpop.f32.mrb[0].mxu0
  %v465 = vpop.f32.mrb[0].mxu0
  %v466 = vadd.f32 %v273, %v465
  %v467 = vpop.f32.mrb[0].mxu0
  %468 = vmatprep.mubr.bf16.mxu0 0
  %469 = vmatmul.mubr.bf16.gmra.mrb[0].mxu0 %v344
  %v470 = vpop.f32.mrb[0].mxu0
  %v471 = vadd.f32 %v278, %v470
  %v472 = vpop.f32.mrb[0].mxu0
  %v473 = vpop.f32.mrb[0].mxu0
  %v474 = vadd.f32 %v281, %v473
  %v475 = vpop.f32.mrb[0].mxu0
  %476 = vmatprep.mubr.bf16.mxu0 0
  %477 = vmatmul.mubr.bf16.gmra.mrb[0].mxu0 %v345
  %v478 = vpop.f32.mrb[0].mxu0
  %v479 = vadd.f32 %v286, %v478
  %v480 = vpop.f32.mrb[0].mxu0
  %v481 = vpop.f32.mrb[0].mxu0
  %v482 = vadd.f32 %v289, %v481
  %v483 = vpop.f32.mrb[0].mxu0
  %484 = vmatprep.mubr.bf16.mxu0 0
  %485 = vmatmul.mubr.bf16.gmra.mrb[0].mxu0 %v346
  %v486 = vpop.f32.mrb[0].mxu0
  %v487 = vadd.f32 %v294, %v486
  %v488 = vpop.f32.mrb[0].mxu0
  %v489 = vpop.f32.mrb[0].mxu0
  %v490 = vadd.f32 %v297, %v489
  %v491 = vpop.f32.mrb[0].mxu0
  %492 = vmatprep.mubr.bf16.mxu0 0
  %493 = vmatmul.mubr.bf16.gmra.mrb[0].mxu0 %v347
  %v494 = vpop.f32.mrb[0].mxu0
  %v495 = vadd.f32 %v302, %v494
  %v496 = vpop.f32.mrb[0].mxu0
  %v497 = vpop.f32.mrb[0].mxu0
  %v498 = vadd.f32 %v305, %v497
  %v499 = vpop.f32.mrb[0].mxu0
  %500 = vdwg.mxu0
  %v501 = vld [vmem:[%s2] sm:$0xf]
  %v502 = vld [vmem:[%s2 + $0x4] sm:$0xf]
  %v503 = vld [vmem:[%s2 + $0x8] sm:$0xf]
  %v504 = vld [vmem:[%s2 + $0xc] sm:$0xf]
  %v505 = vld [vmem:[%s2 + $0x10] sm:$0xf]
  %v506 = vld [vmem:[%s2 + $0x14] sm:$0xf]
  %v507 = vld [vmem:[%s2 + $0x18] sm:$0xf]
  %v508 = vld [vmem:[%s2 + $0x1c] sm:$0xf]
  %v509 = vld [vmem:[%s2 + $0x20] sm:$0xf]
  %v510 = vld [vmem:[%s2 + $0x24] sm:$0xf]
  %v511 = vld [vmem:[%s2 + $0x28] sm:$0xf]
  %v512 = vld [vmem:[%s2 + $0x2c] sm:$0xf]
  %v513 = vld [vmem:[%s2 + $0x30] sm:$0xf]
  %v514 = vld [vmem:[%s2 + $0x34] sm:$0xf]
  %v515 = vld [vmem:[%s2 + $0x38] sm:$0xf]
  %v516 = vld [vmem:[%s2 + $0x3c] sm:$0xf]
  %v517 = vld [vmem:[%s8] sm:$0xf]
  %v518 = vld [vmem:[%s8 + $0x4] sm:$0xf]
  %v519 = vld [vmem:[%s8 + $0x8] sm:$0xf]
  %v520 = vld [vmem:[%s8 + $0xc] sm:$0xf]
  %v521 = vld [vmem:[%s8 + $0x10] sm:$0xf]
  %v522 = vld [vmem:[%s8 + $0x14] sm:$0xf]
  %v523 = vld [vmem:[%s8 + $0x18] sm:$0xf]
  %v524 = vld [vmem:[%s8 + $0x1c] sm:$0xf]
  %v525 = vld [vmem:[%s8 + $0x20] sm:$0xf]
  %v526 = vld [vmem:[%s8 + $0x24] sm:$0xf]
  %v527 = vld [vmem:[%s8 + $0x28] sm:$0xf]
  %v528 = vld [vmem:[%s8 + $0x2c] sm:$0xf]
  %v529 = vld [vmem:[%s8 + $0x30] sm:$0xf]
  %v530 = vld [vmem:[%s8 + $0x34] sm:$0xf]
  %v531 = vld [vmem:[%s8 + $0x38] sm:$0xf]
  %v532 = vld [vmem:[%s8 + $0x3c] sm:$0xf]
  %v549 = vunpack.c.l.b16 %v501
  %v550 = vunpack.c.l.b16 %v502
  %v551 = vunpack.c.l.b16 %v503
  %v552 = vunpack.c.l.b16 %v504
  %v553 = vunpack.c.l.b16 %v505
  %v554 = vunpack.c.l.b16 %v506
  %v555 = vunpack.c.l.b16 %v507
  %v556 = vunpack.c.l.b16 %v508
  %v557 = vunpack.c.l.b16 %v509
  %v558 = vunpack.c.l.b16 %v510
  %v559 = vunpack.c.l.b16 %v511
  %v560 = vunpack.c.l.b16 %v512
  %v561 = vunpack.c.l.b16 %v513
  %v562 = vunpack.c.l.b16 %v514
  %v563 = vunpack.c.l.b16 %v515
  %v564 = vunpack.c.l.b16 %v516
  %v565 = vpack.c.b16 %v550, %v549
  %v566 = vpack.c.b16 %v552, %v551
  %v567 = vpack.c.b16 %v554, %v553
  %v568 = vpack.c.b16 %v556, %v555
  %v569 = vpack.c.b16 %v558, %v557
  %v570 = vpack.c.b16 %v560, %v559
  %v571 = vpack.c.b16 %v562, %v561
  %v572 = vpack.c.b16 %v564, %v563
  %v597 = vunpack.c.l.b16 %v517
  %v598 = vunpack.c.l.b16 %v518
  %v599 = vunpack.c.l.b16 %v519
  %v600 = vunpack.c.l.b16 %v520
  %v601 = vunpack.c.l.b16 %v521
  %v602 = vunpack.c.l.b16 %v522
  %v603 = vunpack.c.l.b16 %v523
  %v604 = vunpack.c.l.b16 %v524
  %v605 = vunpack.c.l.b16 %v525
  %v606 = vunpack.c.l.b16 %v526
  %v607 = vunpack.c.l.b16 %v527
  %v608 = vunpack.c.l.b16 %v528
  %v609 = vunpack.c.l.b16 %v529
  %v610 = vunpack.c.l.b16 %v530
  %v611 = vunpack.c.l.b16 %v531
  %v612 = vunpack.c.l.b16 %v532
  %v613 = vpack.c.b16 %v598, %v597
  %v614 = vpack.c.b16 %v600, %v599
  %v615 = vpack.c.b16 %v602, %v601
  %v616 = vpack.c.b16 %v604, %v603
  %v617 = vpack.c.b16 %v606, %v605
  %v618 = vpack.c.b16 %v608, %v607
  %v619 = vpack.c.b16 %v610, %v609
  %v620 = vpack.c.b16 %v612, %v611
  %629 = vmatprep.subr.bf16.mxu0 0
  %630 = vmatpush1.bf16.msra.mxu0 %v613
  %631 = vmatprep.subr.bf16.mxu0 0
  %632 = vmatpush1.bf16.msra.mxu0 %v614
  %633 = vmatprep.subr.bf16.mxu0 0
  %634 = vmatpush1.bf16.msra.mxu0 %v615
  %635 = vmatprep.subr.bf16.mxu0 0
  %636 = vmatpush1.bf16.msra.mxu0 %v616
  %637 = vmatprep.subr.bf16.mxu0 0
  %638 = vmatpush1.bf16.msra.mxu0 %v617
  %639 = vmatprep.subr.bf16.mxu0 0
  %640 = vmatpush1.bf16.msra.mxu0 %v618
  %641 = vmatprep.subr.bf16.mxu0 0
  %642 = vmatpush1.bf16.msra.mxu0 %v619
  %643 = vmatprep.subr.bf16.mxu0 0
  %644 = vmatpush1.bf16.msra.mxu0 %v620
  %645 = vmatprep.subr.bf16.mxu0 0
  %646 = vmatpush1.bf16.msra.mxu0 0
  %647 = vmatprep.subr.bf16.mxu0 0
  %648 = vmatpush1.bf16.msra.mxu0 0
  %649 = vmatprep.subr.bf16.mxu0 0
  %650 = vmatpush1.bf16.msra.mxu0 0
  %651 = vmatprep.subr.bf16.mxu0 0
  %652 = vmatpush1.bf16.msra.mxu0 0
  %653 = vmatprep.subr.bf16.mxu0 0
  %654 = vmatpush1.bf16.msra.mxu0 0
  %655 = vmatprep.subr.bf16.mxu0 0
  %656 = vmatpush1.bf16.msra.mxu0 0
  %657 = vmatprep.subr.bf16.mxu0 0
  %658 = vmatpush1.bf16.msra.mxu0 0
  %659 = vmatprep.subr.bf16.mxu0 0
  %660 = vmatpush1.bf16.msra.mxu0 0
  %661 = vmatprep.mubr.bf16.mxu0 0
  %662 = vmatmul.mubr.bf16.gmra.mrb[0].mxu0 %v565
  %v663 = vpop.f32.mrb[0].mxu0
  %v664 = vadd.f32 0.0, %v663
  %v665 = vpop.f32.mrb[0].mxu0
  %v666 = vpop.f32.mrb[0].mxu0
  %v667 = vadd.f32 0.0, %v666
  %v668 = vpop.f32.mrb[0].mxu0
  %669 = vmatprep.mubr.bf16.mxu0 0
  %670 = vmatmul.mubr.bf16.gmra.mrb[0].mxu0 %v566
  %v671 = vpop.f32.mrb[0].mxu0
  %v672 = vadd.f32 0.0, %v671
  %v673 = vpop.f32.mrb[0].mxu0
  %v674 = vpop.f32.mrb[0].mxu0
  %v675 = vadd.f32 0.0, %v674
  %v676 = vpop.f32.mrb[0].mxu0
  %677 = vmatprep.mubr.bf16.mxu0 0
  %678 = vmatmul.mubr.bf16.gmra.mrb[0].mxu0 %v567
  %v679 = vpop.f32.mrb[0].mxu0
  %v680 = vadd.f32 0.0, %v679
  %v681 = vpop.f32.mrb[0].mxu0
  %v682 = vpop.f32.mrb[0].mxu0
  %v683 = vadd.f32 0.0, %v682
  %v684 = vpop.f32.mrb[0].mxu0
  %685 = vmatprep.mubr.bf16.mxu0 0
  %686 = vmatmul.mubr.bf16.gmra.mrb[0].mxu0 %v568
  %v687 = vpop.f32.mrb[0].mxu0
  %v688 = vadd.f32 0.0, %v687
  %v689 = vpop.f32.mrb[0].mxu0
  %v690 = vpop.f32.mrb[0].mxu0
  %v691 = vadd.f32 0.0, %v690
  %v692 = vpop.f32.mrb[0].mxu0
  %693 = vmatprep.mubr.bf16.mxu0 0
  %694 = vmatmul.mubr.bf16.gmra.mrb[0].mxu0 %v569
  %v695 = vpop.f32.mrb[0].mxu0
  %v696 = vadd.f32 0.0, %v695
  %v697 = vpop.f32.mrb[0].mxu0
  %v698 = vpop.f32.mrb[0].mxu0
  %v699 = vadd.f32 0.0, %v698
  %v700 = vpop.f32.mrb[0].mxu0
  %701 = vmatprep.mubr.bf16.mxu0 0
  %702 = vmatmul.mubr.bf16.gmra.mrb[0].mxu0 %v570
  %v703 = vpop.f32.mrb[0].mxu0
  %v704 = vadd.f32 0.0, %v703
  %v705 = vpop.f32.mrb[0].mxu0
  %v706 = vpop.f32.mrb[0].mxu0
  %v707 = vadd.f32 0.0, %v706
  %v708 = vpop.f32.mrb[0].mxu0
  %709 = vmatprep.mubr.bf16.mxu0 0
  %710 = vmatmul.mubr.bf16.gmra.mrb[0].mxu0 %v571
  %v711 = vpop.f32.mrb[0].mxu0
  %v712 = vadd.f32 0.0, %v711
  %v713 = vpop.f32.mrb[0].mxu0
  %v714 = vpop.f32.mrb[0].mxu0
  %v715 = vadd.f32 0.0, %v714
  %v716 = vpop.f32.mrb[0].mxu0
  %717 = vmatprep.mubr.bf16.mxu0 0
  %718 = vmatmul.mubr.bf16.gmra.mrb[0].mxu0 %v572
  %v719 = vpop.f32.mrb[0].mxu0
  %v720 = vadd.f32 0.0, %v719
  %v721 = vpop.f32.mrb[0].mxu0
  %v722 = vpop.f32.mrb[0].mxu0
  %v723 = vadd.f32 0.0, %v722
  %v724 = vpop.f32.mrb[0].mxu0
  %725 = vdwg.mxu0
  %v726 = vadd.f32 %v439, %v664
  %v727 = vadd.f32 %v442, %v667
  %v728 = vadd.f32 %v447, %v672
  %v729 = vadd.f32 %v450, %v675
  %v730 = vadd.f32 %v455, %v680
  %v731 = vadd.f32 %v458, %v683
  %v732 = vadd.f32 %v463, %v688
  %v733 = vadd.f32 %v466, %v691
  %v734 = vadd.f32 %v471, %v696
  %v735 = vadd.f32 %v474, %v699
  %v736 = vadd.f32 %v479, %v704
  %v737 = vadd.f32 %v482, %v707
  %v738 = vadd.f32 %v487, %v712
  %v739 = vadd.f32 %v490, %v715
  %v740 = vadd.f32 %v495, %v720
  %v741 = vadd.f32 %v498, %v723
  %v742 = vld [vmem:[%s3] sm:$0xf]
  %v743 = vld [vmem:[%s3 + $0x4] sm:$0xf]
  %v744 = vld [vmem:[%s3 + $0x8] sm:$0xf]
  %v745 = vld [vmem:[%s3 + $0xc] sm:$0xf]
  %v746 = vld [vmem:[%s3 + $0x10] sm:$0xf]
  %v747 = vld [vmem:[%s3 + $0x14] sm:$0xf]
  %v748 = vld [vmem:[%s3 + $0x18] sm:$0xf]
  %v749 = vld [vmem:[%s3 + $0x1c] sm:$0xf]
  %v750 = vld [vmem:[%s3 + $0x20] sm:$0xf]
  %v751 = vld [vmem:[%s3 + $0x24] sm:$0xf]
  %v752 = vld [vmem:[%s3 + $0x28] sm:$0xf]
  %v753 = vld [vmem:[%s3 + $0x2c] sm:$0xf]
  %v754 = vld [vmem:[%s3 + $0x30] sm:$0xf]
  %v755 = vld [vmem:[%s3 + $0x34] sm:$0xf]
  %v756 = vld [vmem:[%s3 + $0x38] sm:$0xf]
  %v757 = vld [vmem:[%s3 + $0x3c] sm:$0xf]
  %v758 = vld [vmem:[%s9] sm:$0xf]
  %v759 = vld [vmem:[%s9 + $0x4] sm:$0xf]
  %v760 = vld [vmem:[%s9 + $0x8] sm:$0xf]
  %v761 = vld [vmem:[%s9 + $0xc] sm:$0xf]
  %v762 = vld [vmem:[%s9 + $0x10] sm:$0xf]
  %v763 = vld [vmem:[%s9 + $0x14] sm:$0xf]
  %v764 = vld [vmem:[%s9 + $0x18] sm:$0xf]
  %v765 = vld [vmem:[%s9 + $0x1c] sm:$0xf]
  %v766 = vld [vmem:[%s9 + $0x20] sm:$0xf]
  %v767 = vld [vmem:[%s9 + $0x24] sm:$0xf]
  %v768 = vld [vmem:[%s9 + $0x28] sm:$0xf]
  %v769 = vld [vmem:[%s9 + $0x2c] sm:$0xf]
  %v770 = vld [vmem:[%s9 + $0x30] sm:$0xf]
  %v771 = vld [vmem:[%s9 + $0x34] sm:$0xf]
  %v772 = vld [vmem:[%s9 + $0x38] sm:$0xf]
  %v773 = vld [vmem:[%s9 + $0x3c] sm:$0xf]
  %v790 = vunpack.c.l.b16 %v742
  %v791 = vunpack.c.l.b16 %v743
  %v792 = vunpack.c.l.b16 %v744
  %v793 = vunpack.c.l.b16 %v745
  %v794 = vunpack.c.l.b16 %v746
  %v795 = vunpack.c.l.b16 %v747
  %v796 = vunpack.c.l.b16 %v748
  %v797 = vunpack.c.l.b16 %v749
  %v798 = vunpack.c.l.b16 %v750
  %v799 = vunpack.c.l.b16 %v751
  %v800 = vunpack.c.l.b16 %v752
  %v801 = vunpack.c.l.b16 %v753
  %v802 = vunpack.c.l.b16 %v754
  %v803 = vunpack.c.l.b16 %v755
  %v804 = vunpack.c.l.b16 %v756
  %v805 = vunpack.c.l.b16 %v757
  %v806 = vpack.c.b16 %v791, %v790
  %v807 = vpack.c.b16 %v793, %v792
  %v808 = vpack.c.b16 %v795, %v794
  %v809 = vpack.c.b16 %v797, %v796
  %v810 = vpack.c.b16 %v799, %v798
  %v811 = vpack.c.b16 %v801, %v800
  %v812 = vpack.c.b16 %v803, %v802
  %v813 = vpack.c.b16 %v805, %v804
  %v838 = vunpack.c.l.b16 %v758
  %v839 = vunpack.c.l.b16 %v759
  %v840 = vunpack.c.l.b16 %v760
  %v841 = vunpack.c.l.b16 %v761
  %v842 = vunpack.c.l.b16 %v762
  %v843 = vunpack.c.l.b16 %v763
  %v844 = vunpack.c.l.b16 %v764
  %v845 = vunpack.c.l.b16 %v765
  %v846 = vunpack.c.l.b16 %v766
  %v847 = vunpack.c.l.b16 %v767
  %v848 = vunpack.c.l.b16 %v768
  %v849 = vunpack.c.l.b16 %v769
  %v850 = vunpack.c.l.b16 %v770
  %v851 = vunpack.c.l.b16 %v771
  %v852 = vunpack.c.l.b16 %v772
  %v853 = vunpack.c.l.b16 %v773
  %v854 = vpack.c.b16 %v839, %v838
  %v855 = vpack.c.b16 %v841, %v840
  %v856 = vpack.c.b16 %v843, %v842
  %v857 = vpack.c.b16 %v845, %v844
  %v858 = vpack.c.b16 %v847, %v846
  %v859 = vpack.c.b16 %v849, %v848
  %v860 = vpack.c.b16 %v851, %v850
  %v861 = vpack.c.b16 %v853, %v852
  %870 = vmatprep.subr.bf16.mxu0 0
  %871 = vmatpush1.bf16.msra.mxu0 %v854
  %872 = vmatprep.subr.bf16.mxu0 0
  %873 = vmatpush1.bf16.msra.mxu0 %v855
  %874 = vmatprep.subr.bf16.mxu0 0
  %875 = vmatpush1.bf16.msra.mxu0 %v856
  %876 = vmatprep.subr.bf16.mxu0 0
  %877 = vmatpush1.bf16.msra.mxu0 %v857
  %878 = vmatprep.subr.bf16.mxu0 0
  %879 = vmatpush1.bf16.msra.mxu0 %v858
  %880 = vmatprep.subr.bf16.mxu0 0
  %881 = vmatpush1.bf16.msra.mxu0 %v859
  %882 = vmatprep.subr.bf16.mxu0 0
  %883 = vmatpush1.bf16.msra.mxu0 %v860
  %884 = vmatprep.subr.bf16.mxu0 0
  %885 = vmatpush1.bf16.msra.mxu0 %v861
  %886 = vmatprep.subr.bf16.mxu0 0
  %887 = vmatpush1.bf16.msra.mxu0 0
  %888 = vmatprep.subr.bf16.mxu0 0
  %889 = vmatpush1.bf16.msra.mxu0 0
  %890 = vmatprep.subr.bf16.mxu0 0
  %891 = vmatpush1.bf16.msra.mxu0 0
  %892 = vmatprep.subr.bf16.mxu0 0
  %893 = vmatpush1.bf16.msra.mxu0 0
  %894 = vmatprep.subr.bf16.mxu0 0
  %895 = vmatpush1.bf16.msra.mxu0 0
  %896 = vmatprep.subr.bf16.mxu0 0
  %897 = vmatpush1.bf16.msra.mxu0 0
  %898 = vmatprep.subr.bf16.mxu0 0
  %899 = vmatpush1.bf16.msra.mxu0 0
  %900 = vmatprep.subr.bf16.mxu0 0
  %901 = vmatpush1.bf16.msra.mxu0 0
  %902 = vmatprep.mubr.bf16.mxu0 0
  %903 = vmatmul.mubr.bf16.gmra.mrb[0].mxu0 %v806
  %v904 = vpop.f32.mrb[0].mxu0
  %v905 = vadd.f32 0.0, %v904
  %v906 = vpop.f32.mrb[0].mxu0
  %v907 = vpop.f32.mrb[0].mxu0
  %v908 = vadd.f32 0.0, %v907
  %v909 = vpop.f32.mrb[0].mxu0
  %910 = vmatprep.mubr.bf16.mxu0 0
  %911 = vmatmul.mubr.bf16.gmra.mrb[0].mxu0 %v807
  %v912 = vpop.f32.mrb[0].mxu0
  %v913 = vadd.f32 0.0, %v912
  %v914 = vpop.f32.mrb[0].mxu0
  %v915 = vpop.f32.mrb[0].mxu0
  %v916 = vadd.f32 0.0, %v915
  %v917 = vpop.f32.mrb[0].mxu0
  %918 = vmatprep.mubr.bf16.mxu0 0
  %919 = vmatmul.mubr.bf16.gmra.mrb[0].mxu0 %v808
  %v920 = vpop.f32.mrb[0].mxu0
  %v921 = vadd.f32 0.0, %v920
  %v922 = vpop.f32.mrb[0].mxu0
  %v923 = vpop.f32.mrb[0].mxu0
  %v924 = vadd.f32 0.0, %v923
  %v925 = vpop.f32.mrb[0].mxu0
  %926 = vmatprep.mubr.bf16.mxu0 0
  %927 = vmatmul.mubr.bf16.gmra.mrb[0].mxu0 %v809
  %v928 = vpop.f32.mrb[0].mxu0
  %v929 = vadd.f32 0.0, %v928
  %v930 = vpop.f32.mrb[0].mxu0
  %v931 = vpop.f32.mrb[0].mxu0
  %v932 = vadd.f32 0.0, %v931
  %v933 = vpop.f32.mrb[0].mxu0
  %934 = vmatprep.mubr.bf16.mxu0 0
  %935 = vmatmul.mubr.bf16.gmra.mrb[0].mxu0 %v810
  %v936 = vpop.f32.mrb[0].mxu0
  %v937 = vadd.f32 0.0, %v936
  %v938 = vpop.f32.mrb[0].mxu0
  %v939 = vpop.f32.mrb[0].mxu0
  %v940 = vadd.f32 0.0, %v939
  %v941 = vpop.f32.mrb[0].mxu0
  %942 = vmatprep.mubr.bf16.mxu0 0
  %943 = vmatmul.mubr.bf16.gmra.mrb[0].mxu0 %v811
  %v944 = vpop.f32.mrb[0].mxu0
  %v945 = vadd.f32 0.0, %v944
  %v946 = vpop.f32.mrb[0].mxu0
  %v947 = vpop.f32.mrb[0].mxu0
  %v948 = vadd.f32 0.0, %v947
  %v949 = vpop.f32.mrb[0].mxu0
  %950 = vmatprep.mubr.bf16.mxu0 0
  %951 = vmatmul.mubr.bf16.gmra.mrb[0].mxu0 %v812
  %v952 = vpop.f32.mrb[0].mxu0
  %v953 = vadd.f32 0.0, %v952
  %v954 = vpop.f32.mrb[0].mxu0
  %v955 = vpop.f32.mrb[0].mxu0
  %v956 = vadd.f32 0.0, %v955
  %v957 = vpop.f32.mrb[0].mxu0
  %958 = vmatprep.mubr.bf16.mxu0 0
  %959 = vmatmul.mubr.bf16.gmra.mrb[0].mxu0 %v813
  %v960 = vpop.f32.mrb[0].mxu0
  %v961 = vadd.f32 0.0, %v960
  %v962 = vpop.f32.mrb[0].mxu0
  %v963 = vpop.f32.mrb[0].mxu0
  %v964 = vadd.f32 0.0, %v963
  %v965 = vpop.f32.mrb[0].mxu0
  %966 = vdwg.mxu0
  %v967 = vadd.f32 %v726, %v905
  %v968 = vadd.f32 %v727, %v908
  %v969 = vadd.f32 %v728, %v913
  %v970 = vadd.f32 %v729, %v916
  %v971 = vadd.f32 %v730, %v921
  %v972 = vadd.f32 %v731, %v924
  %v973 = vadd.f32 %v732, %v929
  %v974 = vadd.f32 %v733, %v932
  %v975 = vadd.f32 %v734, %v937
  %v976 = vadd.f32 %v735, %v940
  %v977 = vadd.f32 %v736, %v945
  %v978 = vadd.f32 %v737, %v948
  %v979 = vadd.f32 %v738, %v953
  %v980 = vadd.f32 %v739, %v956
  %v981 = vadd.f32 %v740, %v961
  %v982 = vadd.f32 %v741, %v964
  %v983 = vld [vmem:[%s4] sm:$0xf]
  %v984 = vld [vmem:[%s4 + $0x4] sm:$0xf]
  %v985 = vld [vmem:[%s4 + $0x8] sm:$0xf]
  %v986 = vld [vmem:[%s4 + $0xc] sm:$0xf]
  %v987 = vld [vmem:[%s4 + $0x10] sm:$0xf]
  %v988 = vld [vmem:[%s4 + $0x14] sm:$0xf]
  %v989 = vld [vmem:[%s4 + $0x18] sm:$0xf]
  %v990 = vld [vmem:[%s4 + $0x1c] sm:$0xf]
  %v991 = vld [vmem:[%s4 + $0x20] sm:$0xf]
  %v992 = vld [vmem:[%s4 + $0x24] sm:$0xf]
  %v993 = vld [vmem:[%s4 + $0x28] sm:$0xf]
  %v994 = vld [vmem:[%s4 + $0x2c] sm:$0xf]
  %v995 = vld [vmem:[%s4 + $0x30] sm:$0xf]
  %v996 = vld [vmem:[%s4 + $0x34] sm:$0xf]
  %v997 = vld [vmem:[%s4 + $0x38] sm:$0xf]
  %v998 = vld [vmem:[%s4 + $0x3c] sm:$0xf]
  %v999 = vld [vmem:[%s10] sm:$0xf]
  %v1000 = vld [vmem:[%s10 + $0x4] sm:$0xf]
  %v1001 = vld [vmem:[%s10 + $0x8] sm:$0xf]
  %v1002 = vld [vmem:[%s10 + $0xc] sm:$0xf]
  %v1003 = vld [vmem:[%s10 + $0x10] sm:$0xf]
  %v1004 = vld [vmem:[%s10 + $0x14] sm:$0xf]
  %v1005 = vld [vmem:[%s10 + $0x18] sm:$0xf]
  %v1006 = vld [vmem:[%s10 + $0x1c] sm:$0xf]
  %v1007 = vld [vmem:[%s10 + $0x20] sm:$0xf]
  %v1008 = vld [vmem:[%s10 + $0x24] sm:$0xf]
  %v1009 = vld [vmem:[%s10 + $0x28] sm:$0xf]
  %v1010 = vld [vmem:[%s10 + $0x2c] sm:$0xf]
  %v1011 = vld [vmem:[%s10 + $0x30] sm:$0xf]
  %v1012 = vld [vmem:[%s10 + $0x34] sm:$0xf]
  %v1013 = vld [vmem:[%s10 + $0x38] sm:$0xf]
  %v1014 = vld [vmem:[%s10 + $0x3c] sm:$0xf]
  %v1031 = vunpack.c.l.b16 %v983
  %v1032 = vunpack.c.l.b16 %v984
  %v1033 = vunpack.c.l.b16 %v985
  %v1034 = vunpack.c.l.b16 %v986
  %v1035 = vunpack.c.l.b16 %v987
  %v1036 = vunpack.c.l.b16 %v988
  %v1037 = vunpack.c.l.b16 %v989
  %v1038 = vunpack.c.l.b16 %v990
  %v1039 = vunpack.c.l.b16 %v991
  %v1040 = vunpack.c.l.b16 %v992
  %v1041 = vunpack.c.l.b16 %v993
  %v1042 = vunpack.c.l.b16 %v994
  %v1043 = vunpack.c.l.b16 %v995
  %v1044 = vunpack.c.l.b16 %v996
  %v1045 = vunpack.c.l.b16 %v997
  %v1046 = vunpack.c.l.b16 %v998
  %v1047 = vpack.c.b16 %v1032, %v1031
  %v1048 = vpack.c.b16 %v1034, %v1033
  %v1049 = vpack.c.b16 %v1036, %v1035
  %v1050 = vpack.c.b16 %v1038, %v1037
  %v1051 = vpack.c.b16 %v1040, %v1039
  %v1052 = vpack.c.b16 %v1042, %v1041
  %v1053 = vpack.c.b16 %v1044, %v1043
  %v1054 = vpack.c.b16 %v1046, %v1045
  %v1079 = vunpack.c.l.b16 %v999
  %v1080 = vunpack.c.l.b16 %v1000
  %v1081 = vunpack.c.l.b16 %v1001
  %v1082 = vunpack.c.l.b16 %v1002
  %v1083 = vunpack.c.l.b16 %v1003
  %v1084 = vunpack.c.l.b16 %v1004
  %v1085 = vunpack.c.l.b16 %v1005
  %v1086 = vunpack.c.l.b16 %v1006
  %v1087 = vunpack.c.l.b16 %v1007
  %v1088 = vunpack.c.l.b16 %v1008
  %v1089 = vunpack.c.l.b16 %v1009
  %v1090 = vunpack.c.l.b16 %v1010
  %v1091 = vunpack.c.l.b16 %v1011
  %v1092 = vunpack.c.l.b16 %v1012
  %v1093 = vunpack.c.l.b16 %v1013
  %v1094 = vunpack.c.l.b16 %v1014
  %v1095 = vpack.c.b16 %v1080, %v1079
  %v1096 = vpack.c.b16 %v1082, %v1081
  %v1097 = vpack.c.b16 %v1084, %v1083
  %v1098 = vpack.c.b16 %v1086, %v1085
  %v1099 = vpack.c.b16 %v1088, %v1087
  %v1100 = vpack.c.b16 %v1090, %v1089
  %v1101 = vpack.c.b16 %v1092, %v1091
  %v1102 = vpack.c.b16 %v1094, %v1093
  %1111 = vmatprep.subr.bf16.mxu0 0
  %1112 = vmatpush1.bf16.msra.mxu0 %v1095
  %1113 = vmatprep.subr.bf16.mxu0 0
  %1114 = vmatpush1.bf16.msra.mxu0 %v1096
  %1115 = vmatprep.subr.bf16.mxu0 0
  %1116 = vmatpush1.bf16.msra.mxu0 %v1097
  %1117 = vmatprep.subr.bf16.mxu0 0
  %1118 = vmatpush1.bf16.msra.mxu0 %v1098
  %1119 = vmatprep.subr.bf16.mxu0 0
  %1120 = vmatpush1.bf16.msra.mxu0 %v1099
  %1121 = vmatprep.subr.bf16.mxu0 0
  %1122 = vmatpush1.bf16.msra.mxu0 %v1100
  %1123 = vmatprep.subr.bf16.mxu0 0
  %1124 = vmatpush1.bf16.msra.mxu0 %v1101
  %1125 = vmatprep.subr.bf16.mxu0 0
  %1126 = vmatpush1.bf16.msra.mxu0 %v1102
  %1127 = vmatprep.subr.bf16.mxu0 0
  %1128 = vmatpush1.bf16.msra.mxu0 0
  %1129 = vmatprep.subr.bf16.mxu0 0
  %1130 = vmatpush1.bf16.msra.mxu0 0
  %1131 = vmatprep.subr.bf16.mxu0 0
  %1132 = vmatpush1.bf16.msra.mxu0 0
  %1133 = vmatprep.subr.bf16.mxu0 0
  %1134 = vmatpush1.bf16.msra.mxu0 0
  %1135 = vmatprep.subr.bf16.mxu0 0
  %1136 = vmatpush1.bf16.msra.mxu0 0
  %1137 = vmatprep.subr.bf16.mxu0 0
  %1138 = vmatpush1.bf16.msra.mxu0 0
  %1139 = vmatprep.subr.bf16.mxu0 0
  %1140 = vmatpush1.bf16.msra.mxu0 0
  %1141 = vmatprep.subr.bf16.mxu0 0
  %1142 = vmatpush1.bf16.msra.mxu0 0
  %1143 = vmatprep.mubr.bf16.mxu0 0
  %1144 = vmatmul.mubr.bf16.gmra.mrb[0].mxu0 %v1047
  %v1145 = vpop.f32.mrb[0].mxu0
  %v1146 = vadd.f32 0.0, %v1145
  %v1147 = vpop.f32.mrb[0].mxu0
  %v1148 = vpop.f32.mrb[0].mxu0
  %v1149 = vadd.f32 0.0, %v1148
  %v1150 = vpop.f32.mrb[0].mxu0
  %1151 = vmatprep.mubr.bf16.mxu0 0
  %1152 = vmatmul.mubr.bf16.gmra.mrb[0].mxu0 %v1048
  %v1153 = vpop.f32.mrb[0].mxu0
  %v1154 = vadd.f32 0.0, %v1153
  %v1155 = vpop.f32.mrb[0].mxu0
  %v1156 = vpop.f32.mrb[0].mxu0
  %v1157 = vadd.f32 0.0, %v1156
  %v1158 = vpop.f32.mrb[0].mxu0
  %1159 = vmatprep.mubr.bf16.mxu0 0
  %1160 = vmatmul.mubr.bf16.gmra.mrb[0].mxu0 %v1049
  %v1161 = vpop.f32.mrb[0].mxu0
  %v1162 = vadd.f32 0.0, %v1161
  %v1163 = vpop.f32.mrb[0].mxu0
  %v1164 = vpop.f32.mrb[0].mxu0
  %v1165 = vadd.f32 0.0, %v1164
  %v1166 = vpop.f32.mrb[0].mxu0
  %1167 = vmatprep.mubr.bf16.mxu0 0
  %1168 = vmatmul.mubr.bf16.gmra.mrb[0].mxu0 %v1050
  %v1169 = vpop.f32.mrb[0].mxu0
  %v1170 = vadd.f32 0.0, %v1169
  %v1171 = vpop.f32.mrb[0].mxu0
  %v1172 = vpop.f32.mrb[0].mxu0
  %v1173 = vadd.f32 0.0, %v1172
  %v1174 = vpop.f32.mrb[0].mxu0
  %1175 = vmatprep.mubr.bf16.mxu0 0
  %1176 = vmatmul.mubr.bf16.gmra.mrb[0].mxu0 %v1051
  %v1177 = vpop.f32.mrb[0].mxu0
  %v1178 = vadd.f32 0.0, %v1177
  %v1179 = vpop.f32.mrb[0].mxu0
  %v1180 = vpop.f32.mrb[0].mxu0
  %v1181 = vadd.f32 0.0, %v1180
  %v1182 = vpop.f32.mrb[0].mxu0
  %1183 = vmatprep.mubr.bf16.mxu0 0
  %1184 = vmatmul.mubr.bf16.gmra.mrb[0].mxu0 %v1052
  %v1185 = vpop.f32.mrb[0].mxu0
  %v1186 = vadd.f32 0.0, %v1185
  %v1187 = vpop.f32.mrb[0].mxu0
  %v1188 = vpop.f32.mrb[0].mxu0
  %v1189 = vadd.f32 0.0, %v1188
  %v1190 = vpop.f32.mrb[0].mxu0
  %1191 = vmatprep.mubr.bf16.mxu0 0
  %1192 = vmatmul.mubr.bf16.gmra.mrb[0].mxu0 %v1053
  %v1193 = vpop.f32.mrb[0].mxu0
  %v1194 = vadd.f32 0.0, %v1193
  %v1195 = vpop.f32.mrb[0].mxu0
  %v1196 = vpop.f32.mrb[0].mxu0
  %v1197 = vadd.f32 0.0, %v1196
  %v1198 = vpop.f32.mrb[0].mxu0
  %1199 = vmatprep.mubr.bf16.mxu0 0
  %1200 = vmatmul.mubr.bf16.gmra.mrb[0].mxu0 %v1054
  %v1201 = vpop.f32.mrb[0].mxu0
  %v1202 = vadd.f32 0.0, %v1201
  %v1203 = vpop.f32.mrb[0].mxu0
  %v1204 = vpop.f32.mrb[0].mxu0
  %v1205 = vadd.f32 0.0, %v1204
  %v1206 = vpop.f32.mrb[0].mxu0
  %1207 = vdwg.mxu0
  %v1208 = vadd.f32 %v967, %v1146
  %v1209 = vadd.f32 %v968, %v1149
  %v1210 = vadd.f32 %v969, %v1154
  %v1211 = vadd.f32 %v970, %v1157
  %v1212 = vadd.f32 %v971, %v1162
  %v1213 = vadd.f32 %v972, %v1165
  %v1214 = vadd.f32 %v973, %v1170
  %v1215 = vadd.f32 %v974, %v1173
  %v1216 = vadd.f32 %v975, %v1178
  %v1217 = vadd.f32 %v976, %v1181
  %v1218 = vadd.f32 %v977, %v1186
  %v1219 = vadd.f32 %v978, %v1189
  %v1220 = vadd.f32 %v979, %v1194
  %v1221 = vadd.f32 %v980, %v1197
  %v1222 = vadd.f32 %v981, %v1202
  %v1223 = vadd.f32 %v982, %v1205
  %v1224 = vld [vmem:[%s5] sm:$0xf]
  %v1225 = vld [vmem:[%s5 + $0x4] sm:$0xf]
  %v1226 = vld [vmem:[%s5 + $0x8] sm:$0xf]
  %v1227 = vld [vmem:[%s5 + $0xc] sm:$0xf]
  %v1228 = vld [vmem:[%s5 + $0x10] sm:$0xf]
  %v1229 = vld [vmem:[%s5 + $0x14] sm:$0xf]
  %v1230 = vld [vmem:[%s5 + $0x18] sm:$0xf]
  %v1231 = vld [vmem:[%s5 + $0x1c] sm:$0xf]
  %v1232 = vld [vmem:[%s5 + $0x20] sm:$0xf]
  %v1233 = vld [vmem:[%s5 + $0x24] sm:$0xf]
  %v1234 = vld [vmem:[%s5 + $0x28] sm:$0xf]
  %v1235 = vld [vmem:[%s5 + $0x2c] sm:$0xf]
  %v1236 = vld [vmem:[%s5 + $0x30] sm:$0xf]
  %v1237 = vld [vmem:[%s5 + $0x34] sm:$0xf]
  %v1238 = vld [vmem:[%s5 + $0x38] sm:$0xf]
  %v1239 = vld [vmem:[%s5 + $0x3c] sm:$0xf]
  %v1240 = vld [vmem:[%s11] sm:$0xf]
  %v1241 = vld [vmem:[%s11 + $0x4] sm:$0xf]
  %v1242 = vld [vmem:[%s11 + $0x8] sm:$0xf]
  %v1243 = vld [vmem:[%s11 + $0xc] sm:$0xf]
  %v1244 = vld [vmem:[%s11 + $0x10] sm:$0xf]
  %v1245 = vld [vmem:[%s11 + $0x14] sm:$0xf]
  %v1246 = vld [vmem:[%s11 + $0x18] sm:$0xf]
  %v1247 = vld [vmem:[%s11 + $0x1c] sm:$0xf]
  %v1248 = vld [vmem:[%s11 + $0x20] sm:$0xf]
  %v1249 = vld [vmem:[%s11 + $0x24] sm:$0xf]
  %v1250 = vld [vmem:[%s11 + $0x28] sm:$0xf]
  %v1251 = vld [vmem:[%s11 + $0x2c] sm:$0xf]
  %v1252 = vld [vmem:[%s11 + $0x30] sm:$0xf]
  %v1253 = vld [vmem:[%s11 + $0x34] sm:$0xf]
  %v1254 = vld [vmem:[%s11 + $0x38] sm:$0xf]
  %v1255 = vld [vmem:[%s11 + $0x3c] sm:$0xf]
  %v1272 = vunpack.c.l.b16 %v1224
  %v1273 = vunpack.c.l.b16 %v1225
  %v1274 = vunpack.c.l.b16 %v1226
  %v1275 = vunpack.c.l.b16 %v1227
  %v1276 = vunpack.c.l.b16 %v1228
  %v1277 = vunpack.c.l.b16 %v1229
  %v1278 = vunpack.c.l.b16 %v1230
  %v1279 = vunpack.c.l.b16 %v1231
  %v1280 = vunpack.c.l.b16 %v1232
  %v1281 = vunpack.c.l.b16 %v1233
  %v1282 = vunpack.c.l.b16 %v1234
  %v1283 = vunpack.c.l.b16 %v1235
  %v1284 = vunpack.c.l.b16 %v1236
  %v1285 = vunpack.c.l.b16 %v1237
  %v1286 = vunpack.c.l.b16 %v1238
  %v1287 = vunpack.c.l.b16 %v1239
  %v1288 = vpack.c.b16 %v1273, %v1272
  %v1289 = vpack.c.b16 %v1275, %v1274
  %v1290 = vpack.c.b16 %v1277, %v1276
  %v1291 = vpack.c.b16 %v1279, %v1278
  %v1292 = vpack.c.b16 %v1281, %v1280
  %v1293 = vpack.c.b16 %v1283, %v1282
  %v1294 = vpack.c.b16 %v1285, %v1284
  %v1295 = vpack.c.b16 %v1287, %v1286
  %v1320 = vunpack.c.l.b16 %v1240
  %v1321 = vunpack.c.l.b16 %v1241
  %v1322 = vunpack.c.l.b16 %v1242
  %v1323 = vunpack.c.l.b16 %v1243
  %v1324 = vunpack.c.l.b16 %v1244
  %v1325 = vunpack.c.l.b16 %v1245
  %v1326 = vunpack.c.l.b16 %v1246
  %v1327 = vunpack.c.l.b16 %v1247
  %v1328 = vunpack.c.l.b16 %v1248
  %v1329 = vunpack.c.l.b16 %v1249
  %v1330 = vunpack.c.l.b16 %v1250
  %v1331 = vunpack.c.l.b16 %v1251
  %v1332 = vunpack.c.l.b16 %v1252
  %v1333 = vunpack.c.l.b16 %v1253
  %v1334 = vunpack.c.l.b16 %v1254
  %v1335 = vunpack.c.l.b16 %v1255
  %v1336 = vpack.c.b16 %v1321, %v1320
  %v1337 = vpack.c.b16 %v1323, %v1322
  %v1338 = vpack.c.b16 %v1325, %v1324
  %v1339 = vpack.c.b16 %v1327, %v1326
  %v1340 = vpack.c.b16 %v1329, %v1328
  %v1341 = vpack.c.b16 %v1331, %v1330
  %v1342 = vpack.c.b16 %v1333, %v1332
  %v1343 = vpack.c.b16 %v1335, %v1334
  %1352 = vmatprep.subr.bf16.mxu0 0
  %1353 = vmatpush1.bf16.msra.mxu0 %v1336
  %1354 = vmatprep.subr.bf16.mxu0 0
  %1355 = vmatpush1.bf16.msra.mxu0 %v1337
  %1356 = vmatprep.subr.bf16.mxu0 0
  %1357 = vmatpush1.bf16.msra.mxu0 %v1338
  %1358 = vmatprep.subr.bf16.mxu0 0
  %1359 = vmatpush1.bf16.msra.mxu0 %v1339
  %1360 = vmatprep.subr.bf16.mxu0 0
  %1361 = vmatpush1.bf16.msra.mxu0 %v1340
  %1362 = vmatprep.subr.bf16.mxu0 0
  %1363 = vmatpush1.bf16.msra.mxu0 %v1341
  %1364 = vmatprep.subr.bf16.mxu0 0
  %1365 = vmatpush1.bf16.msra.mxu0 %v1342
  %1366 = vmatprep.subr.bf16.mxu0 0
  %1367 = vmatpush1.bf16.msra.mxu0 %v1343
  %1368 = vmatprep.subr.bf16.mxu0 0
  %1369 = vmatpush1.bf16.msra.mxu0 0
  %1370 = vmatprep.subr.bf16.mxu0 0
  %1371 = vmatpush1.bf16.msra.mxu0 0
  %1372 = vmatprep.subr.bf16.mxu0 0
  %1373 = vmatpush1.bf16.msra.mxu0 0
  %1374 = vmatprep.subr.bf16.mxu0 0
  %1375 = vmatpush1.bf16.msra.mxu0 0
  %1376 = vmatprep.subr.bf16.mxu0 0
  %1377 = vmatpush1.bf16.msra.mxu0 0
  %1378 = vmatprep.subr.bf16.mxu0 0
  %1379 = vmatpush1.bf16.msra.mxu0 0
  %1380 = vmatprep.subr.bf16.mxu0 0
  %1381 = vmatpush1.bf16.msra.mxu0 0
  %1382 = vmatprep.subr.bf16.mxu0 0
  %1383 = vmatpush1.bf16.msra.mxu0 0
  %1384 = vmatprep.mubr.bf16.mxu0 0
  %1385 = vmatmul.mubr.bf16.gmra.mrb[0].mxu0 %v1288
  %v1386 = vpop.f32.mrb[0].mxu0
  %v1387 = vadd.f32 0.0, %v1386
  %v1388 = vpop.f32.mrb[0].mxu0
  %v1389 = vpop.f32.mrb[0].mxu0
  %v1390 = vadd.f32 0.0, %v1389
  %v1391 = vpop.f32.mrb[0].mxu0
  %1392 = vmatprep.mubr.bf16.mxu0 0
  %1393 = vmatmul.mubr.bf16.gmra.mrb[0].mxu0 %v1289
  %v1394 = vpop.f32.mrb[0].mxu0
  %v1395 = vadd.f32 0.0, %v1394
  %v1396 = vpop.f32.mrb[0].mxu0
  %v1397 = vpop.f32.mrb[0].mxu0
  %v1398 = vadd.f32 0.0, %v1397
  %v1399 = vpop.f32.mrb[0].mxu0
  %1400 = vmatprep.mubr.bf16.mxu0 0
  %1401 = vmatmul.mubr.bf16.gmra.mrb[0].mxu0 %v1290
  %v1402 = vpop.f32.mrb[0].mxu0
  %v1403 = vadd.f32 0.0, %v1402
  %v1404 = vpop.f32.mrb[0].mxu0
  %v1405 = vpop.f32.mrb[0].mxu0
  %v1406 = vadd.f32 0.0, %v1405
  %v1407 = vpop.f32.mrb[0].mxu0
  %1408 = vmatprep.mubr.bf16.mxu0 0
  %1409 = vmatmul.mubr.bf16.gmra.mrb[0].mxu0 %v1291
  %v1410 = vpop.f32.mrb[0].mxu0
  %v1411 = vadd.f32 0.0, %v1410
  %v1412 = vpop.f32.mrb[0].mxu0
  %v1413 = vpop.f32.mrb[0].mxu0
  %v1414 = vadd.f32 0.0, %v1413
  %v1415 = vpop.f32.mrb[0].mxu0
  %1416 = vmatprep.mubr.bf16.mxu0 0
  %1417 = vmatmul.mubr.bf16.gmra.mrb[0].mxu0 %v1292
  %v1418 = vpop.f32.mrb[0].mxu0
  %v1419 = vadd.f32 0.0, %v1418
  %v1420 = vpop.f32.mrb[0].mxu0
  %v1421 = vpop.f32.mrb[0].mxu0
  %v1422 = vadd.f32 0.0, %v1421
  %v1423 = vpop.f32.mrb[0].mxu0
  %1424 = vmatprep.mubr.bf16.mxu0 0
  %1425 = vmatmul.mubr.bf16.gmra.mrb[0].mxu0 %v1293
  %v1426 = vpop.f32.mrb[0].mxu0
  %v1427 = vadd.f32 0.0, %v1426
  %v1428 = vpop.f32.mrb[0].mxu0
  %v1429 = vpop.f32.mrb[0].mxu0
  %v1430 = vadd.f32 0.0, %v1429
  %v1431 = vpop.f32.mrb[0].mxu0
  %1432 = vmatprep.mubr.bf16.mxu0 0
  %1433 = vmatmul.mubr.bf16.gmra.mrb[0].mxu0 %v1294
  %v1434 = vpop.f32.mrb[0].mxu0
  %v1435 = vadd.f32 0.0, %v1434
  %v1436 = vpop.f32.mrb[0].mxu0
  %v1437 = vpop.f32.mrb[0].mxu0
  %v1438 = vadd.f32 0.0, %v1437
  %v1439 = vpop.f32.mrb[0].mxu0
  %1440 = vmatprep.mubr.bf16.mxu0 0
  %1441 = vmatmul.mubr.bf16.gmra.mrb[0].mxu0 %v1295
  %v1442 = vpop.f32.mrb[0].mxu0
  %v1443 = vadd.f32 0.0, %v1442
  %v1444 = vpop.f32.mrb[0].mxu0
  %v1445 = vpop.f32.mrb[0].mxu0
  %v1446 = vadd.f32 0.0, %v1445
  %v1447 = vpop.f32.mrb[0].mxu0
  %1448 = vdwg.mxu0
  %v1449 = vadd.f32 %v1208, %v1387
  %v1450 = vadd.f32 %v1209, %v1390
  %v1451 = vadd.f32 %v1210, %v1395
  %v1452 = vadd.f32 %v1211, %v1398
  %v1453 = vadd.f32 %v1212, %v1403
  %v1454 = vadd.f32 %v1213, %v1406
  %v1455 = vadd.f32 %v1214, %v1411
  %v1456 = vadd.f32 %v1215, %v1414
  %v1457 = vadd.f32 %v1216, %v1419
  %v1458 = vadd.f32 %v1217, %v1422
  %v1459 = vadd.f32 %v1218, %v1427
  %v1460 = vadd.f32 %v1219, %v1430
  %v1461 = vadd.f32 %v1220, %v1435
  %v1462 = vadd.f32 %v1221, %v1438
  %v1463 = vadd.f32 %v1222, %v1443
  %v1464 = vadd.f32 %v1223, %v1446
  %v1465 = vld [vmem:[%s12] sm:$0x1]
  %v1467 = vlaneseq
  %v1468 = vshrl.u32 %v1467, 7
  %v1469 = vsub.s32 0, %v1468
  %v1470 = vrot.slane %v1465, %v1469
  %v1472 = vadd.f32 %v1449, %v1470
  %v1473 = vadd.f32 %v1450, %v1470
  %v1474 = vadd.f32 %v1451, %v1470
  %v1475 = vadd.f32 %v1452, %v1470
  %v1476 = vadd.f32 %v1453, %v1470
  %v1477 = vadd.f32 %v1454, %v1470
  %v1478 = vadd.f32 %v1455, %v1470
  %v1479 = vadd.f32 %v1456, %v1470
  %v1480 = vadd.f32 %v1457, %v1470
  %v1481 = vadd.f32 %v1458, %v1470
  %v1482 = vadd.f32 %v1459, %v1470
  %v1483 = vadd.f32 %v1460, %v1470
  %v1484 = vadd.f32 %v1461, %v1470
  %v1485 = vadd.f32 %v1462, %v1470
  %v1486 = vadd.f32 %v1463, %v1470
  %v1487 = vadd.f32 %v1464, %v1470
  %v1488 = vmax.f32 %v1472, 0.0
  %v1489 = vmax.f32 %v1473, 0.0
  %v1490 = vmax.f32 %v1474, 0.0
  %v1491 = vmax.f32 %v1475, 0.0
  %v1492 = vmax.f32 %v1476, 0.0
  %v1493 = vmax.f32 %v1477, 0.0
  %v1494 = vmax.f32 %v1478, 0.0
  %v1495 = vmax.f32 %v1479, 0.0
  %v1496 = vmax.f32 %v1480, 0.0
  %v1497 = vmax.f32 %v1481, 0.0
  %v1498 = vmax.f32 %v1482, 0.0
  %v1499 = vmax.f32 %v1483, 0.0
  %v1500 = vmax.f32 %v1484, 0.0
  %v1501 = vmax.f32 %v1485, 0.0
  %v1502 = vmax.f32 %v1486, 0.0
  %v1503 = vmax.f32 %v1487, 0.0
  %v1504 = vpack.c.bf16 %v1489, %v1488
  %v1505 = vpack.c.bf16 %v1491, %v1490
  %v1506 = vpack.c.bf16 %v1493, %v1492
  %v1507 = vpack.c.bf16 %v1495, %v1494
  %v1508 = vpack.c.bf16 %v1497, %v1496
  %v1509 = vpack.c.bf16 %v1499, %v1498
  %v1510 = vpack.c.bf16 %v1501, %v1500
  %v1511 = vpack.c.bf16 %v1503, %v1502
  %v1512 = vld [vmem:[%s13] sm:$0xf]
  %v1513 = vld [vmem:[%s13 + $0x4] sm:$0xf]
  %v1514 = vld [vmem:[%s13 + $0x8] sm:$0xf]
  %v1515 = vld [vmem:[%s13 + $0xc] sm:$0xf]
  %v1516 = vld [vmem:[%s13 + $0x10] sm:$0xf]
  %v1517 = vld [vmem:[%s13 + $0x14] sm:$0xf]
  %v1518 = vld [vmem:[%s13 + $0x18] sm:$0xf]
  %v1519 = vld [vmem:[%s13 + $0x1c] sm:$0xf]
  %v1520 = vld [vmem:[%s13 + $0x20] sm:$0xf]
  %v1521 = vld [vmem:[%s13 + $0x24] sm:$0xf]
  %v1522 = vld [vmem:[%s13 + $0x28] sm:$0xf]
  %v1523 = vld [vmem:[%s13 + $0x2c] sm:$0xf]
  %v1524 = vld [vmem:[%s13 + $0x30] sm:$0xf]
  %v1525 = vld [vmem:[%s13 + $0x34] sm:$0xf]
  %v1526 = vld [vmem:[%s13 + $0x38] sm:$0xf]
  %v1527 = vld [vmem:[%s13 + $0x3c] sm:$0xf]
  %v1528 = vld [vmem:[%s14] sm:$0x1]
  %v1530 = vlaneseq
  %v1531 = vshrl.u32 %v1530, 7
  %v1532 = vsub.s32 0, %v1531
  %v1533 = vrot.slane %v1528, %v1532
  %v1551 = vunpack.c.l.b16 %v1512
  %v1552 = vunpack.c.l.b16 %v1513
  %v1553 = vunpack.c.l.b16 %v1514
  %v1554 = vunpack.c.l.b16 %v1515
  %v1555 = vunpack.c.l.b16 %v1516
  %v1556 = vunpack.c.l.b16 %v1517
  %v1557 = vunpack.c.l.b16 %v1518
  %v1558 = vunpack.c.l.b16 %v1519
  %v1559 = vunpack.c.l.b16 %v1520
  %v1560 = vunpack.c.l.b16 %v1521
  %v1561 = vunpack.c.l.b16 %v1522
  %v1562 = vunpack.c.l.b16 %v1523
  %v1563 = vunpack.c.l.b16 %v1524
  %v1564 = vunpack.c.l.b16 %v1525
  %v1565 = vunpack.c.l.b16 %v1526
  %v1566 = vunpack.c.l.b16 %v1527
  %v1567 = vpack.c.b16 %v1552, %v1551
  %v1568 = vpack.c.b16 %v1554, %v1553
  %v1569 = vpack.c.b16 %v1556, %v1555
  %v1570 = vpack.c.b16 %v1558, %v1557
  %v1571 = vpack.c.b16 %v1560, %v1559
  %v1572 = vpack.c.b16 %v1562, %v1561
  %v1573 = vpack.c.b16 %v1564, %v1563
  %v1574 = vpack.c.b16 %v1566, %v1565
  %1583 = vmatprep.subr.bf16.mxu0 0
  %1584 = vmatpush1.bf16.msra.mxu0 %v1567
  %1585 = vmatprep.subr.bf16.mxu0 0
  %1586 = vmatpush1.bf16.msra.mxu0 %v1568
  %1587 = vmatprep.subr.bf16.mxu0 0
  %1588 = vmatpush1.bf16.msra.mxu0 %v1569
  %1589 = vmatprep.subr.bf16.mxu0 0
  %1590 = vmatpush1.bf16.msra.mxu0 %v1570
  %1591 = vmatprep.subr.bf16.mxu0 0
  %1592 = vmatpush1.bf16.msra.mxu0 %v1571
  %1593 = vmatprep.subr.bf16.mxu0 0
  %1594 = vmatpush1.bf16.msra.mxu0 %v1572
  %1595 = vmatprep.subr.bf16.mxu0 0
  %1596 = vmatpush1.bf16.msra.mxu0 %v1573
  %1597 = vmatprep.subr.bf16.mxu0 0
  %1598 = vmatpush1.bf16.msra.mxu0 %v1574
  %1599 = vmatprep.subr.bf16.mxu0 0
  %1600 = vmatpush1.bf16.msra.mxu0 0
  %1601 = vmatprep.subr.bf16.mxu0 0
  %1602 = vmatpush1.bf16.msra.mxu0 0
  %1603 = vmatprep.subr.bf16.mxu0 0
  %1604 = vmatpush1.bf16.msra.mxu0 0
  %1605 = vmatprep.subr.bf16.mxu0 0
  %1606 = vmatpush1.bf16.msra.mxu0 0
  %1607 = vmatprep.subr.bf16.mxu0 0
  %1608 = vmatpush1.bf16.msra.mxu0 0
  %1609 = vmatprep.subr.bf16.mxu0 0
  %1610 = vmatpush1.bf16.msra.mxu0 0
  %1611 = vmatprep.subr.bf16.mxu0 0
  %1612 = vmatpush1.bf16.msra.mxu0 0
  %1613 = vmatprep.subr.bf16.mxu0 0
  %1614 = vmatpush1.bf16.msra.mxu0 0
  %1615 = vmatprep.mubr.bf16.mxu0 0
  %1616 = vmatmul.mubr.bf16.gmra.mrb[0].mxu0 %v1504
  %v1617 = vpop.f32.mrb[0].mxu0
  %v1618 = vadd.f32 %v1533, %v1617
  %v1619 = vpop.f32.mrb[0].mxu0
  %v1620 = vpop.f32.mrb[0].mxu0
  %v1621 = vadd.f32 %v1533, %v1620
  %v1622 = vpop.f32.mrb[0].mxu0
  %1623 = vmatprep.mubr.bf16.mxu0 0
  %1624 = vmatmul.mubr.bf16.gmra.mrb[0].mxu0 %v1505
  %v1625 = vpop.f32.mrb[0].mxu0
  %v1626 = vadd.f32 %v1533, %v1625
  %v1627 = vpop.f32.mrb[0].mxu0
  %v1628 = vpop.f32.mrb[0].mxu0
  %v1629 = vadd.f32 %v1533, %v1628
  %v1630 = vpop.f32.mrb[0].mxu0
  %1631 = vmatprep.mubr.bf16.mxu0 0
  %1632 = vmatmul.mubr.bf16.gmra.mrb[0].mxu0 %v1506
  %v1633 = vpop.f32.mrb[0].mxu0
  %v1634 = vadd.f32 %v1533, %v1633
  %v1635 = vpop.f32.mrb[0].mxu0
  %v1636 = vpop.f32.mrb[0].mxu0
  %v1637 = vadd.f32 %v1533, %v1636
  %v1638 = vpop.f32.mrb[0].mxu0
  %1639 = vmatprep.mubr.bf16.mxu0 0
  %1640 = vmatmul.mubr.bf16.gmra.mrb[0].mxu0 %v1507
  %v1641 = vpop.f32.mrb[0].mxu0
  %v1642 = vadd.f32 %v1533, %v1641
  %v1643 = vpop.f32.mrb[0].mxu0
  %v1644 = vpop.f32.mrb[0].mxu0
  %v1645 = vadd.f32 %v1533, %v1644
  %v1646 = vpop.f32.mrb[0].mxu0
  %1647 = vmatprep.mubr.bf16.mxu0 0
  %1648 = vmatmul.mubr.bf16.gmra.mrb[0].mxu0 %v1508
  %v1649 = vpop.f32.mrb[0].mxu0
  %v1650 = vadd.f32 %v1533, %v1649
  %v1651 = vpop.f32.mrb[0].mxu0
  %v1652 = vpop.f32.mrb[0].mxu0
  %v1653 = vadd.f32 %v1533, %v1652
  %v1654 = vpop.f32.mrb[0].mxu0
  %1655 = vmatprep.mubr.bf16.mxu0 0
  %1656 = vmatmul.mubr.bf16.gmra.mrb[0].mxu0 %v1509
  %v1657 = vpop.f32.mrb[0].mxu0
  %v1658 = vadd.f32 %v1533, %v1657
  %v1659 = vpop.f32.mrb[0].mxu0
  %v1660 = vpop.f32.mrb[0].mxu0
  %v1661 = vadd.f32 %v1533, %v1660
  %v1662 = vpop.f32.mrb[0].mxu0
  %1663 = vmatprep.mubr.bf16.mxu0 0
  %1664 = vmatmul.mubr.bf16.gmra.mrb[0].mxu0 %v1510
  %v1665 = vpop.f32.mrb[0].mxu0
  %v1666 = vadd.f32 %v1533, %v1665
  %v1667 = vpop.f32.mrb[0].mxu0
  %v1668 = vpop.f32.mrb[0].mxu0
  %v1669 = vadd.f32 %v1533, %v1668
  %v1670 = vpop.f32.mrb[0].mxu0
  %1671 = vmatprep.mubr.bf16.mxu0 0
  %1672 = vmatmul.mubr.bf16.gmra.mrb[0].mxu0 %v1511
  %v1673 = vpop.f32.mrb[0].mxu0
  %v1674 = vadd.f32 %v1533, %v1673
  %v1675 = vpop.f32.mrb[0].mxu0
  %v1676 = vpop.f32.mrb[0].mxu0
  %v1677 = vadd.f32 %v1533, %v1676
  %v1678 = vpop.f32.mrb[0].mxu0
  %1679 = vdwg.mxu0
  %v1680 = vpack.c.bf16 %v1621, %v1618
  %v1681 = vpack.c.bf16 %v1629, %v1626
  %v1682 = vpack.c.bf16 %v1637, %v1634
  %v1683 = vpack.c.bf16 %v1645, %v1642
  %v1684 = vpack.c.bf16 %v1653, %v1650
  %v1685 = vpack.c.bf16 %v1661, %v1658
  %v1686 = vpack.c.bf16 %v1669, %v1666
  %v1687 = vpack.c.bf16 %v1677, %v1674
  %v1696 = vunpack.c.l.b16 %v1680
  %v1697 = vunpack.c.h.b16 %v1680
  %v1698 = vunpack.c.l.b16 %v1681
  %v1699 = vunpack.c.h.b16 %v1681
  %v1700 = vunpack.c.l.b16 %v1682
  %v1701 = vunpack.c.h.b16 %v1682
  %v1702 = vunpack.c.l.b16 %v1683
  %v1703 = vunpack.c.h.b16 %v1683
  %v1704 = vunpack.c.l.b16 %v1684
  %v1705 = vunpack.c.h.b16 %v1684
  %v1706 = vunpack.c.l.b16 %v1685
  %v1707 = vunpack.c.h.b16 %v1685
  %v1708 = vunpack.c.l.b16 %v1686
  %v1709 = vunpack.c.h.b16 %v1686
  %v1710 = vunpack.c.l.b16 %v1687
  %v1711 = vunpack.c.h.b16 %v1687
  %v1712 = vpack.c.b16 %v1696, %v1696
  %v1713 = vpack.c.b16 %v1697, %v1697
  %v1714 = vpack.c.b16 %v1698, %v1698
  %v1715 = vpack.c.b16 %v1699, %v1699
  %v1716 = vpack.c.b16 %v1700, %v1700
  %v1717 = vpack.c.b16 %v1701, %v1701
  %v1718 = vpack.c.b16 %v1702, %v1702
  %v1719 = vpack.c.b16 %v1703, %v1703
  %v1720 = vpack.c.b16 %v1704, %v1704
  %v1721 = vpack.c.b16 %v1705, %v1705
  %v1722 = vpack.c.b16 %v1706, %v1706
  %v1723 = vpack.c.b16 %v1707, %v1707
  %v1724 = vpack.c.b16 %v1708, %v1708
  %v1725 = vpack.c.b16 %v1709, %v1709
  %v1726 = vpack.c.b16 %v1710, %v1710
  %v1727 = vpack.c.b16 %v1711, %v1711
  %1744 = vst [vmem:[%s15] sm:$0xf] %v1712
  %1745 = vst [vmem:[%s15 + $0x4] sm:$0xf] %v1713
  %1746 = vst [vmem:[%s15 + $0x8] sm:$0xf] %v1714
  %1747 = vst [vmem:[%s15 + $0xc] sm:$0xf] %v1715
  %1748 = vst [vmem:[%s15 + $0x10] sm:$0xf] %v1716
  %1749 = vst [vmem:[%s15 + $0x14] sm:$0xf] %v1717
  %1750 = vst [vmem:[%s15 + $0x18] sm:$0xf] %v1718
  %1751 = vst [vmem:[%s15 + $0x1c] sm:$0xf] %v1719
  %1752 = vst [vmem:[%s15 + $0x20] sm:$0xf] %v1720
  %1753 = vst [vmem:[%s15 + $0x24] sm:$0xf] %v1721
  %1754 = vst [vmem:[%s15 + $0x28] sm:$0xf] %v1722
  %1755 = vst [vmem:[%s15 + $0x2c] sm:$0xf] %v1723
  %1756 = vst [vmem:[%s15 + $0x30] sm:$0xf] %v1724
  %1757 = vst [vmem:[%s15 + $0x34] sm:$0xf] %v1725
  %1758 = vst [vmem:[%s15 + $0x38] sm:$0xf] %v1726
  %1759 = vst [vmem:[%s15 + $0x3c] sm:$0xf] %v1727
  // Predicated region
  $region62: #{mpgnn_forward.9} parent=0 // pred_check
    _
  $region63: #{mpgnn_forward.9} parent=0 // pred_check_branch
    %1761 = sbr.rel (0) target = $region65
  $region64: #{mpgnn_forward.9} parent=0 // pred_region
    _
  $region65: #{mpgnn_forward.9} parent=0 // pred_fallthru
    _
  // Predicated region
  $region66: #{mpgnn_forward.9} parent=0 // pred_check
    _
  $region67: #{mpgnn_forward.9} parent=0 // pred_check_branch
    %1763 = sbr.rel (0) target = $region69
  $region68: #{mpgnn_forward.9} parent=0 // pred_region
    _
  $region69: #{mpgnn_forward.9} parent=0 // pred_fallthru
    _

</llo_original>
